<compile_context>
chip_gen: v6e
topology: v6e:2x2x1
jax: 0.10.0
libtpu: 0.0.40
codegen_flags: <defaults>
</compile_context>

<pallas_src>
import jax
import jax.numpy as jnp
from jax import lax
from jax.experimental import pallas as pl
from jax.experimental.pallas import tpu as pltpu

N_NODES = 128          # number of graph nodes
IN_FEATS = 16          # len(feat_dict[node_feat_cols])  (synthetic)
H_FEAT = 64            # h_feat in the module
NUM_CLASSES = 8        # len(feat_dict[label col])       (synthetic)
N_HIDDEN_LAYERS = 13   # conv2 .. conv14 (conv1 handled separately)
NEG_SLOPE = 0.01       # nn.LeakyReLU default

# lane-dense padded sizes (zero-padded, numerically exact)
F_PAD = 128
H_PAD = 128
C_PAD = 128


def _leaky_relu(x):
    return jnp.where(x > 0, x, NEG_SLOPE * x)


def gcn_kernel(a_ref, x_ref, w1_ref, b1_ref, ws_ref, bs_ref, wfc_ref, bfc_ref,
               out_ref):
    """Full forward pass of Net in one kernel (all operands resident in VMEM).

    a_ref   : [N, N]           normalized adjacency (bf16)
    x_ref   : [N, F_PAD]       node features (bf16, zero-padded)
    w1_ref  : [F_PAD, H_PAD]   conv1 weight (bf16),  b1_ref: [1, H_PAD] (f32)
    ws_ref  : [L, H_PAD, H_PAD] conv2..14 weights (bf16), bs_ref: [L, 1, H_PAD]
    wfc_ref : [H_PAD, C_PAD]   fc weight (bf16),     bfc_ref: [1, C_PAD] (f32)
    out_ref : [N, C_PAD]       logits (f32; caller slices to NUM_CLASSES)
    """
    a = a_ref[...]                       # bf16, reused by every layer

    # conv1: aggregate then transform, + bias, LeakyReLU (bias/activation in f32)
    agg = jnp.dot(a, x_ref[...], preferred_element_type=jnp.float32)
    h = jnp.dot(agg.astype(jnp.bfloat16), w1_ref[...],
                preferred_element_type=jnp.float32) + b1_ref[...]
    h = _leaky_relu(h)                   # f32 [N, H_PAD], register-carried

    # conv2 .. conv14 — fully unrolled, hidden state carried as a value
    def body(i, h):
        w_i = ws_ref[i]                  # bf16 [H_PAD, H_PAD] (static slice when unrolled)
        b_i = bs_ref[i]                  # f32  [1, H_PAD]
        agg_i = jnp.dot(a, h.astype(jnp.bfloat16),
                        preferred_element_type=jnp.float32)
        h_i = jnp.dot(agg_i.astype(jnp.bfloat16), w_i,
                      preferred_element_type=jnp.float32) + b_i
        return _leaky_relu(h_i)

    h = lax.fori_loop(0, N_HIDDEN_LAYERS, body, h, unroll=True)

    # fc head (no activation); padded classes are exactly zero
    out_ref[...] = (jnp.dot(h.astype(jnp.bfloat16), wfc_ref[...],
                            preferred_element_type=jnp.float32)
                    + bfc_ref[...]).astype(out_ref.dtype)


def gcn_forward(a_norm, x, w1, b1, ws, bs, wfc, bfc):
    """Pads everything to lane-dense shapes, runs the kernel, slices logits."""
    n = x.shape[0]

    # --- zero-pad to lane-dense shapes (numerically exact) and cast matmul
    #     operands to bf16; biases stay f32 for the VPU path.
    a_b = a_norm.astype(jnp.bfloat16)
    x_p = jnp.zeros((n, F_PAD), jnp.bfloat16).at[:, :IN_FEATS].set(
        x.astype(jnp.bfloat16))
    w1_p = jnp.zeros((F_PAD, H_PAD), jnp.bfloat16).at[:IN_FEATS, :H_FEAT].set(
        w1.astype(jnp.bfloat16))
    b1_p = jnp.zeros((1, H_PAD), jnp.float32).at[:, :H_FEAT].set(b1)
    ws_p = jnp.zeros((N_HIDDEN_LAYERS, H_PAD, H_PAD),
                     jnp.bfloat16).at[:, :H_FEAT, :H_FEAT].set(
        ws.astype(jnp.bfloat16))
    bs_p = jnp.zeros((N_HIDDEN_LAYERS, 1, H_PAD),
                     jnp.float32).at[:, :, :H_FEAT].set(bs)
    wfc_p = jnp.zeros((H_PAD, C_PAD), jnp.bfloat16).at[:H_FEAT, :NUM_CLASSES].set(
        wfc.astype(jnp.bfloat16))
    bfc_p = jnp.zeros((1, C_PAD), jnp.float32).at[:, :NUM_CLASSES].set(bfc)

    vmem = pl.BlockSpec(memory_space=pltpu.MemorySpace.VMEM)
    logits_padded = pl.pallas_call(
        gcn_kernel,
        out_shape=jax.ShapeDtypeStruct((n, C_PAD), jnp.float32),
        in_specs=[vmem] * 8,
        out_specs=vmem,
    )(a_b, x_p, w1_p, b1_p, ws_p, bs_p, wfc_p, bfc_p)

    return logits_padded[:, :NUM_CLASSES]


def build_normalized_adjacency(key, n):
    # Random undirected graph with self loops, DGL 'both' normalization.
    adj = (jax.random.uniform(key, (n, n)) < 0.05).astype(jnp.float32)
    adj = jnp.maximum(adj, adj.T)                           # symmetrize
    adj = jnp.maximum(adj, jnp.eye(n, dtype=jnp.float32))   # self loops
    deg = jnp.sum(adj, axis=1)
    d_inv_sqrt = 1.0 / jnp.sqrt(deg)
    return adj * d_inv_sqrt[:, None] * d_inv_sqrt[None, :]


def init_params(key):
    ks = jax.random.split(key, 4 + 2 * N_HIDDEN_LAYERS)

    def glorot(k, shape):
        fan_in, fan_out = shape[-2], shape[-1]
        scale = jnp.sqrt(6.0 / (fan_in + fan_out))
        return jax.random.uniform(k, shape, jnp.float32, -scale, scale)

    w1 = glorot(ks[0], (IN_FEATS, H_FEAT))
    b1 = jnp.zeros((1, H_FEAT), jnp.float32)
    ws = glorot(ks[1], (N_HIDDEN_LAYERS, H_FEAT, H_FEAT))
    bs = jnp.zeros((N_HIDDEN_LAYERS, 1, H_FEAT), jnp.float32)
    wfc = glorot(ks[2], (H_FEAT, NUM_CLASSES))
    bfc = jnp.zeros((1, NUM_CLASSES), jnp.float32)
    return w1, b1, ws, bs, wfc, bfc


if __name__ == "__main__":
    key = jax.random.PRNGKey(0)
    k_graph, k_feat, k_param = jax.random.split(key, 3)

    a_norm = build_normalized_adjacency(k_graph, N_NODES)
    node_feat = jax.random.normal(k_feat, (N_NODES, IN_FEATS), jnp.float32)
    w1, b1, ws, bs, wfc, bfc = init_params(k_param)

    logits = jax.jit(gcn_forward)(a_norm, node_feat, w1, b1, ws, bs, wfc, bfc)
    jax.block_until_ready(logits)

    assert logits.shape == (N_NODES, NUM_CLASSES)
    assert jnp.all(jnp.isfinite(logits))
    print("KERNEL_OK")
</pallas_src>

<mosaic_0001>
module attributes {stable_mosaic.version = 11 : i64} {
  func.func @gcn_kernel(%arg0: memref<128x128xbf16, #tpu.memory_space<vmem>>, %arg1: memref<128x128xbf16, #tpu.memory_space<vmem>>, %arg2: memref<128x128xbf16, #tpu.memory_space<vmem>>, %arg3: memref<1x128xf32, #tpu.memory_space<vmem>>, %arg4: memref<13x128x128xbf16, #tpu.memory_space<vmem>>, %arg5: memref<13x1x128xf32, #tpu.memory_space<vmem>>, %arg6: memref<128x128xbf16, #tpu.memory_space<vmem>>, %arg7: memref<1x128xf32, #tpu.memory_space<vmem>>, %arg8: memref<128x128xf32, #tpu.memory_space<vmem>>) attributes {dimension_semantics = [], scalar_prefetch = 0 : i64, scratch_operands = 0 : i64, tpu.core_type = #tpu.core_type<tc>} {
    %c0 = arith.constant 0 : index
    %c0_0 = arith.constant 0 : index
    %0 = vector.load %arg0[%c0, %c0_0] : memref<128x128xbf16, #tpu.memory_space<vmem>>, vector<128x128xbf16>
    %c0_1 = arith.constant 0 : index
    %c0_2 = arith.constant 0 : index
    %1 = vector.load %arg1[%c0_1, %c0_2] : memref<128x128xbf16, #tpu.memory_space<vmem>>, vector<128x128xbf16>
    %cst = arith.constant dense<0.000000e+00> : vector<128x128xf32>
    %2 = tpu.matmul %0, %1, %cst {dimension_numbers = #tpu.dot_dimension_numbers<[1], [0], [0], [1], [0, 0, 1, 1], [], []>} : vector<128x128xbf16>, vector<128x128xbf16>, vector<128x128xf32> -> vector<128x128xf32>
    %3 = arith.truncf %2 : vector<128x128xf32> to vector<128x128xbf16>
    %c0_3 = arith.constant 0 : index
    %c0_4 = arith.constant 0 : index
    %4 = vector.load %arg2[%c0_3, %c0_4] : memref<128x128xbf16, #tpu.memory_space<vmem>>, vector<128x128xbf16>
    %cst_5 = arith.constant dense<0.000000e+00> : vector<128x128xf32>
    %5 = tpu.matmul %3, %4, %cst_5 {dimension_numbers = #tpu.dot_dimension_numbers<[1], [0], [0], [1], [0, 0, 1, 1], [], []>} : vector<128x128xbf16>, vector<128x128xbf16>, vector<128x128xf32> -> vector<128x128xf32>
    %c0_6 = arith.constant 0 : index
    %c0_7 = arith.constant 0 : index
    %6 = vector.load %arg3[%c0_6, %c0_7] : memref<1x128xf32, #tpu.memory_space<vmem>>, vector<1x128xf32>
    %7 = vector.broadcast %6 : vector<1x128xf32> to vector<128x128xf32>
    %8 = arith.addf %5, %7 : vector<128x128xf32>
    %cst_8 = arith.constant 0.000000e+00 : f32
    %9 = vector.broadcast %cst_8 : f32 to vector<128x128xf32>
    %10 = arith.cmpf ogt, %8, %9 : vector<128x128xf32>
    %cst_9 = arith.constant 0.00999999977 : f32
    %11 = vector.broadcast %cst_9 : f32 to vector<128x128xf32>
    %12 = arith.mulf %11, %8 : vector<128x128xf32>
    %13 = arith.select %10, %8, %12 : vector<128x128xi1>, vector<128x128xf32>
    %c0_i32 = arith.constant 0 : i32
    %14 = arith.index_cast %c0_i32 : i32 to index
    %c0_10 = arith.constant 0 : index
    %c0_11 = arith.constant 0 : index
    %15 = vector.load %arg4[%14, %c0_10, %c0_11] : memref<13x128x128xbf16, #tpu.memory_space<vmem>>, vector<1x128x128xbf16>
    %16 = vector.shape_cast %15 : vector<1x128x128xbf16> to vector<128x128xbf16>
    %17 = arith.index_cast %c0_i32 : i32 to index
    %c0_12 = arith.constant 0 : index
    %c0_13 = arith.constant 0 : index
    %18 = vector.load %arg5[%17, %c0_12, %c0_13] : memref<13x1x128xf32, #tpu.memory_space<vmem>>, vector<1x1x128xf32>
    %19 = vector.shape_cast %18 : vector<1x1x128xf32> to vector<1x128xf32>
    %20 = arith.truncf %13 : vector<128x128xf32> to vector<128x128xbf16>
    %cst_14 = arith.constant dense<0.000000e+00> : vector<128x128xf32>
    %21 = tpu.matmul %0, %20, %cst_14 {dimension_numbers = #tpu.dot_dimension_numbers<[1], [0], [0], [1], [0, 0, 1, 1], [], []>} : vector<128x128xbf16>, vector<128x128xbf16>, vector<128x128xf32> -> vector<128x128xf32>
    %22 = arith.truncf %21 : vector<128x128xf32> to vector<128x128xbf16>
    %cst_15 = arith.constant dense<0.000000e+00> : vector<128x128xf32>
    %23 = tpu.matmul %22, %16, %cst_15 {dimension_numbers = #tpu.dot_dimension_numbers<[1], [0], [0], [1], [0, 0, 1, 1], [], []>} : vector<128x128xbf16>, vector<128x128xbf16>, vector<128x128xf32> -> vector<128x128xf32>
    %24 = vector.broadcast %19 : vector<1x128xf32> to vector<128x128xf32>
    %25 = arith.addf %23, %24 : vector<128x128xf32>
    %cst_16 = arith.constant 0.000000e+00 : f32
    %26 = vector.broadcast %cst_16 : f32 to vector<128x128xf32>
    %27 = arith.cmpf ogt, %25, %26 : vector<128x128xf32>
    %cst_17 = arith.constant 0.00999999977 : f32
    %28 = vector.broadcast %cst_17 : f32 to vector<128x128xf32>
    %29 = arith.mulf %28, %25 : vector<128x128xf32>
    %30 = arith.select %27, %25, %29 : vector<128x128xi1>, vector<128x128xf32>
    %c1_i32 = arith.constant 1 : i32
    %31 = arith.index_cast %c1_i32 : i32 to index
    %c0_18 = arith.constant 0 : index
    %c0_19 = arith.constant 0 : index
    %32 = vector.load %arg4[%31, %c0_18, %c0_19] : memref<13x128x128xbf16, #tpu.memory_space<vmem>>, vector<1x128x128xbf16>
    %33 = vector.shape_cast %32 : vector<1x128x128xbf16> to vector<128x128xbf16>
    %34 = arith.index_cast %c1_i32 : i32 to index
    %c0_20 = arith.constant 0 : index
    %c0_21 = arith.constant 0 : index
    %35 = vector.load %arg5[%34, %c0_20, %c0_21] : memref<13x1x128xf32, #tpu.memory_space<vmem>>, vector<1x1x128xf32>
    %36 = vector.shape_cast %35 : vector<1x1x128xf32> to vector<1x128xf32>
    %37 = arith.truncf %30 : vector<128x128xf32> to vector<128x128xbf16>
    %cst_22 = arith.constant dense<0.000000e+00> : vector<128x128xf32>
    %38 = tpu.matmul %0, %37, %cst_22 {dimension_numbers = #tpu.dot_dimension_numbers<[1], [0], [0], [1], [0, 0, 1, 1], [], []>} : vector<128x128xbf16>, vector<128x128xbf16>, vector<128x128xf32> -> vector<128x128xf32>
    %39 = arith.truncf %38 : vector<128x128xf32> to vector<128x128xbf16>
    %cst_23 = arith.constant dense<0.000000e+00> : vector<128x128xf32>
    %40 = tpu.matmul %39, %33, %cst_23 {dimension_numbers = #tpu.dot_dimension_numbers<[1], [0], [0], [1], [0, 0, 1, 1], [], []>} : vector<128x128xbf16>, vector<128x128xbf16>, vector<128x128xf32> -> vector<128x128xf32>
    %41 = vector.broadcast %36 : vector<1x128xf32> to vector<128x128xf32>
    %42 = arith.addf %40, %41 : vector<128x128xf32>
    %cst_24 = arith.constant 0.000000e+00 : f32
    %43 = vector.broadcast %cst_24 : f32 to vector<128x128xf32>
    %44 = arith.cmpf ogt, %42, %43 : vector<128x128xf32>
    %cst_25 = arith.constant 0.00999999977 : f32
    %45 = vector.broadcast %cst_25 : f32 to vector<128x128xf32>
    %46 = arith.mulf %45, %42 : vector<128x128xf32>
    %47 = arith.select %44, %42, %46 : vector<128x128xi1>, vector<128x128xf32>
    %c2_i32 = arith.constant 2 : i32
    %48 = arith.index_cast %c2_i32 : i32 to index
    %c0_26 = arith.constant 0 : index
    %c0_27 = arith.constant 0 : index
    %49 = vector.load %arg4[%48, %c0_26, %c0_27] : memref<13x128x128xbf16, #tpu.memory_space<vmem>>, vector<1x128x128xbf16>
    %50 = vector.shape_cast %49 : vector<1x128x128xbf16> to vector<128x128xbf16>
    %51 = arith.index_cast %c2_i32 : i32 to index
    %c0_28 = arith.constant 0 : index
    %c0_29 = arith.constant 0 : index
    %52 = vector.load %arg5[%51, %c0_28, %c0_29] : memref<13x1x128xf32, #tpu.memory_space<vmem>>, vector<1x1x128xf32>
    %53 = vector.shape_cast %52 : vector<1x1x128xf32> to vector<1x128xf32>
    %54 = arith.truncf %47 : vector<128x128xf32> to vector<128x128xbf16>
    %cst_30 = arith.constant dense<0.000000e+00> : vector<128x128xf32>
    %55 = tpu.matmul %0, %54, %cst_30 {dimension_numbers = #tpu.dot_dimension_numbers<[1], [0], [0], [1], [0, 0, 1, 1], [], []>} : vector<128x128xbf16>, vector<128x128xbf16>, vector<128x128xf32> -> vector<128x128xf32>
    %56 = arith.truncf %55 : vector<128x128xf32> to vector<128x128xbf16>
    %cst_31 = arith.constant dense<0.000000e+00> : vector<128x128xf32>
    %57 = tpu.matmul %56, %50, %cst_31 {dimension_numbers = #tpu.dot_dimension_numbers<[1], [0], [0], [1], [0, 0, 1, 1], [], []>} : vector<128x128xbf16>, vector<128x128xbf16>, vector<128x128xf32> -> vector<128x128xf32>
    %58 = vector.broadcast %53 : vector<1x128xf32> to vector<128x128xf32>
    %59 = arith.addf %57, %58 : vector<128x128xf32>
    %cst_32 = arith.constant 0.000000e+00 : f32
    %60 = vector.broadcast %cst_32 : f32 to vector<128x128xf32>
    %61 = arith.cmpf ogt, %59, %60 : vector<128x128xf32>
    %cst_33 = arith.constant 0.00999999977 : f32
    %62 = vector.broadcast %cst_33 : f32 to vector<128x128xf32>
    %63 = arith.mulf %62, %59 : vector<128x128xf32>
    %64 = arith.select %61, %59, %63 : vector<128x128xi1>, vector<128x128xf32>
    %c3_i32 = arith.constant 3 : i32
    %65 = arith.index_cast %c3_i32 : i32 to index
    %c0_34 = arith.constant 0 : index
    %c0_35 = arith.constant 0 : index
    %66 = vector.load %arg4[%65, %c0_34, %c0_35] : memref<13x128x128xbf16, #tpu.memory_space<vmem>>, vector<1x128x128xbf16>
    %67 = vector.shape_cast %66 : vector<1x128x128xbf16> to vector<128x128xbf16>
    %68 = arith.index_cast %c3_i32 : i32 to index
    %c0_36 = arith.constant 0 : index
    %c0_37 = arith.constant 0 : index
    %69 = vector.load %arg5[%68, %c0_36, %c0_37] : memref<13x1x128xf32, #tpu.memory_space<vmem>>, vector<1x1x128xf32>
    %70 = vector.shape_cast %69 : vector<1x1x128xf32> to vector<1x128xf32>
    %71 = arith.truncf %64 : vector<128x128xf32> to vector<128x128xbf16>
    %cst_38 = arith.constant dense<0.000000e+00> : vector<128x128xf32>
    %72 = tpu.matmul %0, %71, %cst_38 {dimension_numbers = #tpu.dot_dimension_numbers<[1], [0], [0], [1], [0, 0, 1, 1], [], []>} : vector<128x128xbf16>, vector<128x128xbf16>, vector<128x128xf32> -> vector<128x128xf32>
    %73 = arith.truncf %72 : vector<128x128xf32> to vector<128x128xbf16>
    %cst_39 = arith.constant dense<0.000000e+00> : vector<128x128xf32>
    %74 = tpu.matmul %73, %67, %cst_39 {dimension_numbers = #tpu.dot_dimension_numbers<[1], [0], [0], [1], [0, 0, 1, 1], [], []>} : vector<128x128xbf16>, vector<128x128xbf16>, vector<128x128xf32> -> vector<128x128xf32>
    %75 = vector.broadcast %70 : vector<1x128xf32> to vector<128x128xf32>
    %76 = arith.addf %74, %75 : vector<128x128xf32>
    %cst_40 = arith.constant 0.000000e+00 : f32
    %77 = vector.broadcast %cst_40 : f32 to vector<128x128xf32>
    %78 = arith.cmpf ogt, %76, %77 : vector<128x128xf32>
    %cst_41 = arith.constant 0.00999999977 : f32
    %79 = vector.broadcast %cst_41 : f32 to vector<128x128xf32>
    %80 = arith.mulf %79, %76 : vector<128x128xf32>
    %81 = arith.select %78, %76, %80 : vector<128x128xi1>, vector<128x128xf32>
    %c4_i32 = arith.constant 4 : i32
    %82 = arith.index_cast %c4_i32 : i32 to index
    %c0_42 = arith.constant 0 : index
    %c0_43 = arith.constant 0 : index
    %83 = vector.load %arg4[%82, %c0_42, %c0_43] : memref<13x128x128xbf16, #tpu.memory_space<vmem>>, vector<1x128x128xbf16>
    %84 = vector.shape_cast %83 : vector<1x128x128xbf16> to vector<128x128xbf16>
    %85 = arith.index_cast %c4_i32 : i32 to index
    %c0_44 = arith.constant 0 : index
    %c0_45 = arith.constant 0 : index
    %86 = vector.load %arg5[%85, %c0_44, %c0_45] : memref<13x1x128xf32, #tpu.memory_space<vmem>>, vector<1x1x128xf32>
    %87 = vector.shape_cast %86 : vector<1x1x128xf32> to vector<1x128xf32>
    %88 = arith.truncf %81 : vector<128x128xf32> to vector<128x128xbf16>
    %cst_46 = arith.constant dense<0.000000e+00> : vector<128x128xf32>
    %89 = tpu.matmul %0, %88, %cst_46 {dimension_numbers = #tpu.dot_dimension_numbers<[1], [0], [0], [1], [0, 0, 1, 1], [], []>} : vector<128x128xbf16>, vector<128x128xbf16>, vector<128x128xf32> -> vector<128x128xf32>
    %90 = arith.truncf %89 : vector<128x128xf32> to vector<128x128xbf16>
    %cst_47 = arith.constant dense<0.000000e+00> : vector<128x128xf32>
    %91 = tpu.matmul %90, %84, %cst_47 {dimension_numbers = #tpu.dot_dimension_numbers<[1], [0], [0], [1], [0, 0, 1, 1], [], []>} : vector<128x128xbf16>, vector<128x128xbf16>, vector<128x128xf32> -> vector<128x128xf32>
    %92 = vector.broadcast %87 : vector<1x128xf32> to vector<128x128xf32>
    %93 = arith.addf %91, %92 : vector<128x128xf32>
    %cst_48 = arith.constant 0.000000e+00 : f32
    %94 = vector.broadcast %cst_48 : f32 to vector<128x128xf32>
    %95 = arith.cmpf ogt, %93, %94 : vector<128x128xf32>
    %cst_49 = arith.constant 0.00999999977 : f32
    %96 = vector.broadcast %cst_49 : f32 to vector<128x128xf32>
    %97 = arith.mulf %96, %93 : vector<128x128xf32>
    %98 = arith.select %95, %93, %97 : vector<128x128xi1>, vector<128x128xf32>
    %c5_i32 = arith.constant 5 : i32
    %99 = arith.index_cast %c5_i32 : i32 to index
    %c0_50 = arith.constant 0 : index
    %c0_51 = arith.constant 0 : index
    %100 = vector.load %arg4[%99, %c0_50, %c0_51] : memref<13x128x128xbf16, #tpu.memory_space<vmem>>, vector<1x128x128xbf16>
    %101 = vector.shape_cast %100 : vector<1x128x128xbf16> to vector<128x128xbf16>
    %102 = arith.index_cast %c5_i32 : i32 to index
    %c0_52 = arith.constant 0 : index
    %c0_53 = arith.constant 0 : index
    %103 = vector.load %arg5[%102, %c0_52, %c0_53] : memref<13x1x128xf32, #tpu.memory_space<vmem>>, vector<1x1x128xf32>
    %104 = vector.shape_cast %103 : vector<1x1x128xf32> to vector<1x128xf32>
    %105 = arith.truncf %98 : vector<128x128xf32> to vector<128x128xbf16>
    %cst_54 = arith.constant dense<0.000000e+00> : vector<128x128xf32>
    %106 = tpu.matmul %0, %105, %cst_54 {dimension_numbers = #tpu.dot_dimension_numbers<[1], [0], [0], [1], [0, 0, 1, 1], [], []>} : vector<128x128xbf16>, vector<128x128xbf16>, vector<128x128xf32> -> vector<128x128xf32>
    %107 = arith.truncf %106 : vector<128x128xf32> to vector<128x128xbf16>
    %cst_55 = arith.constant dense<0.000000e+00> : vector<128x128xf32>
    %108 = tpu.matmul %107, %101, %cst_55 {dimension_numbers = #tpu.dot_dimension_numbers<[1], [0], [0], [1], [0, 0, 1, 1], [], []>} : vector<128x128xbf16>, vector<128x128xbf16>, vector<128x128xf32> -> vector<128x128xf32>
    %109 = vector.broadcast %104 : vector<1x128xf32> to vector<128x128xf32>
    %110 = arith.addf %108, %109 : vector<128x128xf32>
    %cst_56 = arith.constant 0.000000e+00 : f32
    %111 = vector.broadcast %cst_56 : f32 to vector<128x128xf32>
    %112 = arith.cmpf ogt, %110, %111 : vector<128x128xf32>
    %cst_57 = arith.constant 0.00999999977 : f32
    %113 = vector.broadcast %cst_57 : f32 to vector<128x128xf32>
    %114 = arith.mulf %113, %110 : vector<128x128xf32>
    %115 = arith.select %112, %110, %114 : vector<128x128xi1>, vector<128x128xf32>
    %c6_i32 = arith.constant 6 : i32
    %116 = arith.index_cast %c6_i32 : i32 to index
    %c0_58 = arith.constant 0 : index
    %c0_59 = arith.constant 0 : index
    %117 = vector.load %arg4[%116, %c0_58, %c0_59] : memref<13x128x128xbf16, #tpu.memory_space<vmem>>, vector<1x128x128xbf16>
    %118 = vector.shape_cast %117 : vector<1x128x128xbf16> to vector<128x128xbf16>
    %119 = arith.index_cast %c6_i32 : i32 to index
    %c0_60 = arith.constant 0 : index
    %c0_61 = arith.constant 0 : index
    %120 = vector.load %arg5[%119, %c0_60, %c0_61] : memref<13x1x128xf32, #tpu.memory_space<vmem>>, vector<1x1x128xf32>
    %121 = vector.shape_cast %120 : vector<1x1x128xf32> to vector<1x128xf32>
    %122 = arith.truncf %115 : vector<128x128xf32> to vector<128x128xbf16>
    %cst_62 = arith.constant dense<0.000000e+00> : vector<128x128xf32>
    %123 = tpu.matmul %0, %122, %cst_62 {dimension_numbers = #tpu.dot_dimension_numbers<[1], [0], [0], [1], [0, 0, 1, 1], [], []>} : vector<128x128xbf16>, vector<128x128xbf16>, vector<128x128xf32> -> vector<128x128xf32>
    %124 = arith.truncf %123 : vector<128x128xf32> to vector<128x128xbf16>
    %cst_63 = arith.constant dense<0.000000e+00> : vector<128x128xf32>
    %125 = tpu.matmul %124, %118, %cst_63 {dimension_numbers = #tpu.dot_dimension_numbers<[1], [0], [0], [1], [0, 0, 1, 1], [], []>} : vector<128x128xbf16>, vector<128x128xbf16>, vector<128x128xf32> -> vector<128x128xf32>
    %126 = vector.broadcast %121 : vector<1x128xf32> to vector<128x128xf32>
    %127 = arith.addf %125, %126 : vector<128x128xf32>
    %cst_64 = arith.constant 0.000000e+00 : f32
    %128 = vector.broadcast %cst_64 : f32 to vector<128x128xf32>
    %129 = arith.cmpf ogt, %127, %128 : vector<128x128xf32>
    %cst_65 = arith.constant 0.00999999977 : f32
    %130 = vector.broadcast %cst_65 : f32 to vector<128x128xf32>
    %131 = arith.mulf %130, %127 : vector<128x128xf32>
    %132 = arith.select %129, %127, %131 : vector<128x128xi1>, vector<128x128xf32>
    %c7_i32 = arith.constant 7 : i32
    %133 = arith.index_cast %c7_i32 : i32 to index
    %c0_66 = arith.constant 0 : index
    %c0_67 = arith.constant 0 : index
    %134 = vector.load %arg4[%133, %c0_66, %c0_67] : memref<13x128x128xbf16, #tpu.memory_space<vmem>>, vector<1x128x128xbf16>
    %135 = vector.shape_cast %134 : vector<1x128x128xbf16> to vector<128x128xbf16>
    %136 = arith.index_cast %c7_i32 : i32 to index
    %c0_68 = arith.constant 0 : index
    %c0_69 = arith.constant 0 : index
    %137 = vector.load %arg5[%136, %c0_68, %c0_69] : memref<13x1x128xf32, #tpu.memory_space<vmem>>, vector<1x1x128xf32>
    %138 = vector.shape_cast %137 : vector<1x1x128xf32> to vector<1x128xf32>
    %139 = arith.truncf %132 : vector<128x128xf32> to vector<128x128xbf16>
    %cst_70 = arith.constant dense<0.000000e+00> : vector<128x128xf32>
    %140 = tpu.matmul %0, %139, %cst_70 {dimension_numbers = #tpu.dot_dimension_numbers<[1], [0], [0], [1], [0, 0, 1, 1], [], []>} : vector<128x128xbf16>, vector<128x128xbf16>, vector<128x128xf32> -> vector<128x128xf32>
    %141 = arith.truncf %140 : vector<128x128xf32> to vector<128x128xbf16>
    %cst_71 = arith.constant dense<0.000000e+00> : vector<128x128xf32>
    %142 = tpu.matmul %141, %135, %cst_71 {dimension_numbers = #tpu.dot_dimension_numbers<[1], [0], [0], [1], [0, 0, 1, 1], [], []>} : vector<128x128xbf16>, vector<128x128xbf16>, vector<128x128xf32> -> vector<128x128xf32>
    %143 = vector.broadcast %138 : vector<1x128xf32> to vector<128x128xf32>
    %144 = arith.addf %142, %143 : vector<128x128xf32>
    %cst_72 = arith.constant 0.000000e+00 : f32
    %145 = vector.broadcast %cst_72 : f32 to vector<128x128xf32>
    %146 = arith.cmpf ogt, %144, %145 : vector<128x128xf32>
    %cst_73 = arith.constant 0.00999999977 : f32
    %147 = vector.broadcast %cst_73 : f32 to vector<128x128xf32>
    %148 = arith.mulf %147, %144 : vector<128x128xf32>
    %149 = arith.select %146, %144, %148 : vector<128x128xi1>, vector<128x128xf32>
    %c8_i32 = arith.constant 8 : i32
    %150 = arith.index_cast %c8_i32 : i32 to index
    %c0_74 = arith.constant 0 : index
    %c0_75 = arith.constant 0 : index
    %151 = vector.load %arg4[%150, %c0_74, %c0_75] : memref<13x128x128xbf16, #tpu.memory_space<vmem>>, vector<1x128x128xbf16>
    %152 = vector.shape_cast %151 : vector<1x128x128xbf16> to vector<128x128xbf16>
    %153 = arith.index_cast %c8_i32 : i32 to index
    %c0_76 = arith.constant 0 : index
    %c0_77 = arith.constant 0 : index
    %154 = vector.load %arg5[%153, %c0_76, %c0_77] : memref<13x1x128xf32, #tpu.memory_space<vmem>>, vector<1x1x128xf32>
    %155 = vector.shape_cast %154 : vector<1x1x128xf32> to vector<1x128xf32>
    %156 = arith.truncf %149 : vector<128x128xf32> to vector<128x128xbf16>
    %cst_78 = arith.constant dense<0.000000e+00> : vector<128x128xf32>
    %157 = tpu.matmul %0, %156, %cst_78 {dimension_numbers = #tpu.dot_dimension_numbers<[1], [0], [0], [1], [0, 0, 1, 1], [], []>} : vector<128x128xbf16>, vector<128x128xbf16>, vector<128x128xf32> -> vector<128x128xf32>
    %158 = arith.truncf %157 : vector<128x128xf32> to vector<128x128xbf16>
    %cst_79 = arith.constant dense<0.000000e+00> : vector<128x128xf32>
    %159 = tpu.matmul %158, %152, %cst_79 {dimension_numbers = #tpu.dot_dimension_numbers<[1], [0], [0], [1], [0, 0, 1, 1], [], []>} : vector<128x128xbf16>, vector<128x128xbf16>, vector<128x128xf32> -> vector<128x128xf32>
    %160 = vector.broadcast %155 : vector<1x128xf32> to vector<128x128xf32>
    %161 = arith.addf %159, %160 : vector<128x128xf32>
    %cst_80 = arith.constant 0.000000e+00 : f32
    %162 = vector.broadcast %cst_80 : f32 to vector<128x128xf32>
    %163 = arith.cmpf ogt, %161, %162 : vector<128x128xf32>
    %cst_81 = arith.constant 0.00999999977 : f32
    %164 = vector.broadcast %cst_81 : f32 to vector<128x128xf32>
    %165 = arith.mulf %164, %161 : vector<128x128xf32>
    %166 = arith.select %163, %161, %165 : vector<128x128xi1>, vector<128x128xf32>
    %c9_i32 = arith.constant 9 : i32
    %167 = arith.index_cast %c9_i32 : i32 to index
    %c0_82 = arith.constant 0 : index
    %c0_83 = arith.constant 0 : index
    %168 = vector.load %arg4[%167, %c0_82, %c0_83] : memref<13x128x128xbf16, #tpu.memory_space<vmem>>, vector<1x128x128xbf16>
    %169 = vector.shape_cast %168 : vector<1x128x128xbf16> to vector<128x128xbf16>
    %170 = arith.index_cast %c9_i32 : i32 to index
    %c0_84 = arith.constant 0 : index
    %c0_85 = arith.constant 0 : index
    %171 = vector.load %arg5[%170, %c0_84, %c0_85] : memref<13x1x128xf32, #tpu.memory_space<vmem>>, vector<1x1x128xf32>
    %172 = vector.shape_cast %171 : vector<1x1x128xf32> to vector<1x128xf32>
    %173 = arith.truncf %166 : vector<128x128xf32> to vector<128x128xbf16>
    %cst_86 = arith.constant dense<0.000000e+00> : vector<128x128xf32>
    %174 = tpu.matmul %0, %173, %cst_86 {dimension_numbers = #tpu.dot_dimension_numbers<[1], [0], [0], [1], [0, 0, 1, 1], [], []>} : vector<128x128xbf16>, vector<128x128xbf16>, vector<128x128xf32> -> vector<128x128xf32>
    %175 = arith.truncf %174 : vector<128x128xf32> to vector<128x128xbf16>
    %cst_87 = arith.constant dense<0.000000e+00> : vector<128x128xf32>
    %176 = tpu.matmul %175, %169, %cst_87 {dimension_numbers = #tpu.dot_dimension_numbers<[1], [0], [0], [1], [0, 0, 1, 1], [], []>} : vector<128x128xbf16>, vector<128x128xbf16>, vector<128x128xf32> -> vector<128x128xf32>
    %177 = vector.broadcast %172 : vector<1x128xf32> to vector<128x128xf32>
    %178 = arith.addf %176, %177 : vector<128x128xf32>
    %cst_88 = arith.constant 0.000000e+00 : f32
    %179 = vector.broadcast %cst_88 : f32 to vector<128x128xf32>
    %180 = arith.cmpf ogt, %178, %179 : vector<128x128xf32>
    %cst_89 = arith.constant 0.00999999977 : f32
    %181 = vector.broadcast %cst_89 : f32 to vector<128x128xf32>
    %182 = arith.mulf %181, %178 : vector<128x128xf32>
    %183 = arith.select %180, %178, %182 : vector<128x128xi1>, vector<128x128xf32>
    %c10_i32 = arith.constant 10 : i32
    %184 = arith.index_cast %c10_i32 : i32 to index
    %c0_90 = arith.constant 0 : index
    %c0_91 = arith.constant 0 : index
    %185 = vector.load %arg4[%184, %c0_90, %c0_91] : memref<13x128x128xbf16, #tpu.memory_space<vmem>>, vector<1x128x128xbf16>
    %186 = vector.shape_cast %185 : vector<1x128x128xbf16> to vector<128x128xbf16>
    %187 = arith.index_cast %c10_i32 : i32 to index
    %c0_92 = arith.constant 0 : index
    %c0_93 = arith.constant 0 : index
    %188 = vector.load %arg5[%187, %c0_92, %c0_93] : memref<13x1x128xf32, #tpu.memory_space<vmem>>, vector<1x1x128xf32>
    %189 = vector.shape_cast %188 : vector<1x1x128xf32> to vector<1x128xf32>
    %190 = arith.truncf %183 : vector<128x128xf32> to vector<128x128xbf16>
    %cst_94 = arith.constant dense<0.000000e+00> : vector<128x128xf32>
    %191 = tpu.matmul %0, %190, %cst_94 {dimension_numbers = #tpu.dot_dimension_numbers<[1], [0], [0], [1], [0, 0, 1, 1], [], []>} : vector<128x128xbf16>, vector<128x128xbf16>, vector<128x128xf32> -> vector<128x128xf32>
    %192 = arith.truncf %191 : vector<128x128xf32> to vector<128x128xbf16>
    %cst_95 = arith.constant dense<0.000000e+00> : vector<128x128xf32>
    %193 = tpu.matmul %192, %186, %cst_95 {dimension_numbers = #tpu.dot_dimension_numbers<[1], [0], [0], [1], [0, 0, 1, 1], [], []>} : vector<128x128xbf16>, vector<128x128xbf16>, vector<128x128xf32> -> vector<128x128xf32>
    %194 = vector.broadcast %189 : vector<1x128xf32> to vector<128x128xf32>
    %195 = arith.addf %193, %194 : vector<128x128xf32>
    %cst_96 = arith.constant 0.000000e+00 : f32
    %196 = vector.broadcast %cst_96 : f32 to vector<128x128xf32>
    %197 = arith.cmpf ogt, %195, %196 : vector<128x128xf32>
    %cst_97 = arith.constant 0.00999999977 : f32
    %198 = vector.broadcast %cst_97 : f32 to vector<128x128xf32>
    %199 = arith.mulf %198, %195 : vector<128x128xf32>
    %200 = arith.select %197, %195, %199 : vector<128x128xi1>, vector<128x128xf32>
    %c11_i32 = arith.constant 11 : i32
    %201 = arith.index_cast %c11_i32 : i32 to index
    %c0_98 = arith.constant 0 : index
    %c0_99 = arith.constant 0 : index
    %202 = vector.load %arg4[%201, %c0_98, %c0_99] : memref<13x128x128xbf16, #tpu.memory_space<vmem>>, vector<1x128x128xbf16>
    %203 = vector.shape_cast %202 : vector<1x128x128xbf16> to vector<128x128xbf16>
    %204 = arith.index_cast %c11_i32 : i32 to index
    %c0_100 = arith.constant 0 : index
    %c0_101 = arith.constant 0 : index
    %205 = vector.load %arg5[%204, %c0_100, %c0_101] : memref<13x1x128xf32, #tpu.memory_space<vmem>>, vector<1x1x128xf32>
    %206 = vector.shape_cast %205 : vector<1x1x128xf32> to vector<1x128xf32>
    %207 = arith.truncf %200 : vector<128x128xf32> to vector<128x128xbf16>
    %cst_102 = arith.constant dense<0.000000e+00> : vector<128x128xf32>
    %208 = tpu.matmul %0, %207, %cst_102 {dimension_numbers = #tpu.dot_dimension_numbers<[1], [0], [0], [1], [0, 0, 1, 1], [], []>} : vector<128x128xbf16>, vector<128x128xbf16>, vector<128x128xf32> -> vector<128x128xf32>
    %209 = arith.truncf %208 : vector<128x128xf32> to vector<128x128xbf16>
    %cst_103 = arith.constant dense<0.000000e+00> : vector<128x128xf32>
    %210 = tpu.matmul %209, %203, %cst_103 {dimension_numbers = #tpu.dot_dimension_numbers<[1], [0], [0], [1], [0, 0, 1, 1], [], []>} : vector<128x128xbf16>, vector<128x128xbf16>, vector<128x128xf32> -> vector<128x128xf32>
    %211 = vector.broadcast %206 : vector<1x128xf32> to vector<128x128xf32>
    %212 = arith.addf %210, %211 : vector<128x128xf32>
    %cst_104 = arith.constant 0.000000e+00 : f32
    %213 = vector.broadcast %cst_104 : f32 to vector<128x128xf32>
    %214 = arith.cmpf ogt, %212, %213 : vector<128x128xf32>
    %cst_105 = arith.constant 0.00999999977 : f32
    %215 = vector.broadcast %cst_105 : f32 to vector<128x128xf32>
    %216 = arith.mulf %215, %212 : vector<128x128xf32>
    %217 = arith.select %214, %212, %216 : vector<128x128xi1>, vector<128x128xf32>
    %c12_i32 = arith.constant 12 : i32
    %218 = arith.index_cast %c12_i32 : i32 to index
    %c0_106 = arith.constant 0 : index
    %c0_107 = arith.constant 0 : index
    %219 = vector.load %arg4[%218, %c0_106, %c0_107] : memref<13x128x128xbf16, #tpu.memory_space<vmem>>, vector<1x128x128xbf16>
    %220 = vector.shape_cast %219 : vector<1x128x128xbf16> to vector<128x128xbf16>
    %221 = arith.index_cast %c12_i32 : i32 to index
    %c0_108 = arith.constant 0 : index
    %c0_109 = arith.constant 0 : index
    %222 = vector.load %arg5[%221, %c0_108, %c0_109] : memref<13x1x128xf32, #tpu.memory_space<vmem>>, vector<1x1x128xf32>
    %223 = vector.shape_cast %222 : vector<1x1x128xf32> to vector<1x128xf32>
    %224 = arith.truncf %217 : vector<128x128xf32> to vector<128x128xbf16>
    %cst_110 = arith.constant dense<0.000000e+00> : vector<128x128xf32>
    %225 = tpu.matmul %0, %224, %cst_110 {dimension_numbers = #tpu.dot_dimension_numbers<[1], [0], [0], [1], [0, 0, 1, 1], [], []>} : vector<128x128xbf16>, vector<128x128xbf16>, vector<128x128xf32> -> vector<128x128xf32>
    %226 = arith.truncf %225 : vector<128x128xf32> to vector<128x128xbf16>
    %cst_111 = arith.constant dense<0.000000e+00> : vector<128x128xf32>
    %227 = tpu.matmul %226, %220, %cst_111 {dimension_numbers = #tpu.dot_dimension_numbers<[1], [0], [0], [1], [0, 0, 1, 1], [], []>} : vector<128x128xbf16>, vector<128x128xbf16>, vector<128x128xf32> -> vector<128x128xf32>
    %228 = vector.broadcast %223 : vector<1x128xf32> to vector<128x128xf32>
    %229 = arith.addf %227, %228 : vector<128x128xf32>
    %cst_112 = arith.constant 0.000000e+00 : f32
    %230 = vector.broadcast %cst_112 : f32 to vector<128x128xf32>
    %231 = arith.cmpf ogt, %229, %230 : vector<128x128xf32>
    %cst_113 = arith.constant 0.00999999977 : f32
    %232 = vector.broadcast %cst_113 : f32 to vector<128x128xf32>
    %233 = arith.mulf %232, %229 : vector<128x128xf32>
    %234 = arith.select %231, %229, %233 : vector<128x128xi1>, vector<128x128xf32>
    %c13_i32 = arith.constant 13 : i32
    %235 = arith.truncf %234 : vector<128x128xf32> to vector<128x128xbf16>
    %c0_114 = arith.constant 0 : index
    %c0_115 = arith.constant 0 : index
    %236 = vector.load %arg6[%c0_114, %c0_115] : memref<128x128xbf16, #tpu.memory_space<vmem>>, vector<128x128xbf16>
    %cst_116 = arith.constant dense<0.000000e+00> : vector<128x128xf32>
    %237 = tpu.matmul %235, %236, %cst_116 {dimension_numbers = #tpu.dot_dimension_numbers<[1], [0], [0], [1], [0, 0, 1, 1], [], []>} : vector<128x128xbf16>, vector<128x128xbf16>, vector<128x128xf32> -> vector<128x128xf32>
    %c0_117 = arith.constant 0 : index
    %c0_118 = arith.constant 0 : index
    %238 = vector.load %arg7[%c0_117, %c0_118] : memref<1x128xf32, #tpu.memory_space<vmem>>, vector<1x128xf32>
    %239 = vector.broadcast %238 : vector<1x128xf32> to vector<128x128xf32>
    %240 = arith.addf %237, %239 : vector<128x128xf32>
    %c0_119 = arith.constant 0 : index
    %c0_120 = arith.constant 0 : index
    %241 = vector.load %arg8[%c0_119, %c0_120] : memref<128x128xf32, #tpu.memory_space<vmem>>, vector<128x128xf32>
    tpu.vector_store %arg8[%c0_119, %c0_120], %240 {strides = array<i32>} : memref<128x128xf32, #tpu.memory_space<vmem>>, vector<128x128xf32>,
    return
  }
}

</mosaic_0001>

<llo_original>
// kernel: gcn_forward.1
$region0: #{gcn_forward.1}
  #allocation0 [shape = 'u32[]', space=smem, size = 0x4, offset = 0x4, fixed_abs, tag = 'smem constant byte address 0x4 - core index']
  #allocation1 [shape = 'u32[144,128]{1,0:T(1,128)}', space=vmem, size = 0x12000, scoped, tag = 'internal scratch']
  %s0 = inlined_call_operand.vmem [shape: bf16[128,128], index: 0, kind: input, shape index: {}]
  %s1 = inlined_call_operand.vmem [shape: bf16[128,128], index: 1, kind: input, shape index: {}]
  %s2 = inlined_call_operand.vmem [shape: bf16[128,128], index: 2, kind: input, shape index: {}]
  %s3 = inlined_call_operand.vmem [shape: f32[1,128], index: 3, kind: input, shape index: {}]
  %s4 = inlined_call_operand.vmem [shape: bf16[13,128,128], index: 4, kind: input, shape index: {}]
  %s5 = inlined_call_operand.vmem [shape: f32[13,1,128], index: 5, kind: input, shape index: {}]
  %s6 = inlined_call_operand.vmem [shape: bf16[128,128], index: 6, kind: input, shape index: {}]
  %s7 = inlined_call_operand.vmem [shape: f32[1,128], index: 7, kind: input, shape index: {}]
  %s8 = inlined_call_operand.vmem [shape: f32[128,128], index: 8, kind: output, shape index: {}]
  %s9 = sld [smem:[#allocation0]]
  $region42: #{gcn_forward.1} parent=0
    _
  %s11 = ssub.s32 1, %s9
  %s12 = scalar_select 0, %s11, %s9
  // Predicated region
  $region2: #{gcn_forward.1} parent=0 // pred_check
    _
  $region3: #{gcn_forward.1} parent=0 // pred_check_branch
    %14 = sbr.rel (0) target = $region5
  $region4: #{gcn_forward.1} parent=0 // pred_region
    _
  $region5: #{gcn_forward.1} parent=0 // pred_fallthru
    _
  // Predicated region
  $region6: #{gcn_forward.1} parent=0 // pred_check
    _
  $region7: #{gcn_forward.1} parent=0 // pred_check_branch
    %16 = sbr.rel (0) target = $region9
  $region8: #{gcn_forward.1} parent=0 // pred_region
    _
  $region9: #{gcn_forward.1} parent=0 // pred_fallthru
    _
  // Predicated region
  $region10: #{gcn_forward.1} parent=0 // pred_check
    _
  $region11: #{gcn_forward.1} parent=0 // pred_check_branch
    %18 = sbr.rel (0) target = $region13
  $region12: #{gcn_forward.1} parent=0 // pred_region
    _
  $region13: #{gcn_forward.1} parent=0 // pred_fallthru
    _
  // Predicated region
  $region14: #{gcn_forward.1} parent=0 // pred_check
    _
  $region15: #{gcn_forward.1} parent=0 // pred_check_branch
    %20 = sbr.rel (0) target = $region17
  $region16: #{gcn_forward.1} parent=0 // pred_region
    _
  $region17: #{gcn_forward.1} parent=0 // pred_fallthru
    _
  // Predicated region
  $region18: #{gcn_forward.1} parent=0 // pred_check
    _
  $region19: #{gcn_forward.1} parent=0 // pred_check_branch
    %22 = sbr.rel (0) target = $region21
  $region20: #{gcn_forward.1} parent=0 // pred_region
    _
  $region21: #{gcn_forward.1} parent=0 // pred_fallthru
    _
  // Predicated region
  $region22: #{gcn_forward.1} parent=0 // pred_check
    _
  $region23: #{gcn_forward.1} parent=0 // pred_check_branch
    %24 = sbr.rel (0) target = $region25
  $region24: #{gcn_forward.1} parent=0 // pred_region
    _
  $region25: #{gcn_forward.1} parent=0 // pred_fallthru
    _
  // Predicated region
  $region26: #{gcn_forward.1} parent=0 // pred_check
    _
  $region27: #{gcn_forward.1} parent=0 // pred_check_branch
    %26 = sbr.rel (0) target = $region29
  $region28: #{gcn_forward.1} parent=0 // pred_region
    _
  $region29: #{gcn_forward.1} parent=0 // pred_fallthru
    _
  // Predicated region
  $region30: #{gcn_forward.1} parent=0 // pred_check
    _
  $region31: #{gcn_forward.1} parent=0 // pred_check_branch
    %28 = sbr.rel (0) target = $region33
  $region32: #{gcn_forward.1} parent=0 // pred_region
    _
  $region33: #{gcn_forward.1} parent=0 // pred_fallthru
    _
  %v30 = vld [vmem:[%s0] sm:$0xf]
  %v31 = vld [vmem:[%s0 + $0x4] sm:$0xf]
  %v32 = vld [vmem:[%s0 + $0x8] sm:$0xf]
  %v33 = vld [vmem:[%s0 + $0xc] sm:$0xf]
  %v34 = vld [vmem:[%s0 + $0x10] sm:$0xf]
  %v35 = vld [vmem:[%s0 + $0x14] sm:$0xf]
  %v36 = vld [vmem:[%s0 + $0x18] sm:$0xf]
  %v37 = vld [vmem:[%s0 + $0x1c] sm:$0xf]
  %v38 = vld [vmem:[%s0 + $0x20] sm:$0xf]
  %v39 = vld [vmem:[%s0 + $0x24] sm:$0xf]
  %v40 = vld [vmem:[%s0 + $0x28] sm:$0xf]
  %v41 = vld [vmem:[%s0 + $0x2c] sm:$0xf]
  %v42 = vld [vmem:[%s0 + $0x30] sm:$0xf]
  %v43 = vld [vmem:[%s0 + $0x34] sm:$0xf]
  %v44 = vld [vmem:[%s0 + $0x38] sm:$0xf]
  %v45 = vld [vmem:[%s0 + $0x3c] sm:$0xf]
  %v46 = vld [vmem:[%s1] sm:$0xf]
  %v47 = vld [vmem:[%s1 + $0x4] sm:$0xf]
  %v48 = vld [vmem:[%s1 + $0x8] sm:$0xf]
  %v49 = vld [vmem:[%s1 + $0xc] sm:$0xf]
  %v50 = vld [vmem:[%s1 + $0x10] sm:$0xf]
  %v51 = vld [vmem:[%s1 + $0x14] sm:$0xf]
  %v52 = vld [vmem:[%s1 + $0x18] sm:$0xf]
  %v53 = vld [vmem:[%s1 + $0x1c] sm:$0xf]
  %v54 = vld [vmem:[%s1 + $0x20] sm:$0xf]
  %v55 = vld [vmem:[%s1 + $0x24] sm:$0xf]
  %v56 = vld [vmem:[%s1 + $0x28] sm:$0xf]
  %v57 = vld [vmem:[%s1 + $0x2c] sm:$0xf]
  %v58 = vld [vmem:[%s1 + $0x30] sm:$0xf]
  %v59 = vld [vmem:[%s1 + $0x34] sm:$0xf]
  %v60 = vld [vmem:[%s1 + $0x38] sm:$0xf]
  %v61 = vld [vmem:[%s1 + $0x3c] sm:$0xf]
  %v78 = vunpack.c.l.b16 %v30
  %v79 = vunpack.c.l.b16 %v31
  %v80 = vunpack.c.l.b16 %v32
  %v81 = vunpack.c.l.b16 %v33
  %v82 = vunpack.c.l.b16 %v34
  %v83 = vunpack.c.l.b16 %v35
  %v84 = vunpack.c.l.b16 %v36
  %v85 = vunpack.c.l.b16 %v37
  %v86 = vunpack.c.l.b16 %v38
  %v87 = vunpack.c.l.b16 %v39
  %v88 = vunpack.c.l.b16 %v40
  %v89 = vunpack.c.l.b16 %v41
  %v90 = vunpack.c.l.b16 %v42
  %v91 = vunpack.c.l.b16 %v43
  %v92 = vunpack.c.l.b16 %v44
  %v93 = vunpack.c.l.b16 %v45
  %v94 = vpack.c.b16 %v79, %v78
  %v95 = vpack.c.b16 %v81, %v80
  %v96 = vpack.c.b16 %v83, %v82
  %v97 = vpack.c.b16 %v85, %v84
  %v98 = vpack.c.b16 %v87, %v86
  %v99 = vpack.c.b16 %v89, %v88
  %v100 = vpack.c.b16 %v91, %v90
  %v101 = vpack.c.b16 %v93, %v92
  %v126 = vunpack.c.l.b16 %v46
  %v127 = vunpack.c.l.b16 %v47
  %v128 = vunpack.c.l.b16 %v48
  %v129 = vunpack.c.l.b16 %v49
  %v130 = vunpack.c.l.b16 %v50
  %v131 = vunpack.c.l.b16 %v51
  %v132 = vunpack.c.l.b16 %v52
  %v133 = vunpack.c.l.b16 %v53
  %v134 = vunpack.c.l.b16 %v54
  %v135 = vunpack.c.l.b16 %v55
  %v136 = vunpack.c.l.b16 %v56
  %v137 = vunpack.c.l.b16 %v57
  %v138 = vunpack.c.l.b16 %v58
  %v139 = vunpack.c.l.b16 %v59
  %v140 = vunpack.c.l.b16 %v60
  %v141 = vunpack.c.l.b16 %v61
  %v142 = vpack.c.b16 %v127, %v126
  %v143 = vpack.c.b16 %v129, %v128
  %v144 = vpack.c.b16 %v131, %v130
  %v145 = vpack.c.b16 %v133, %v132
  %v146 = vpack.c.b16 %v135, %v134
  %v147 = vpack.c.b16 %v137, %v136
  %v148 = vpack.c.b16 %v139, %v138
  %v149 = vpack.c.b16 %v141, %v140
  %158 = vmatprep.subr.bf16.mxu0 0
  %159 = vmatpush1.bf16.msra.mxu0 %v149
  %160 = vmatprep.subr.bf16.mxu0 0
  %161 = vmatpush1.bf16.msra.mxu0 %v148
  %162 = vmatprep.subr.bf16.mxu0 0
  %163 = vmatpush1.bf16.msra.mxu0 %v147
  %164 = vmatprep.subr.bf16.mxu0 0
  %165 = vmatpush1.bf16.msra.mxu0 %v146
  %166 = vmatprep.subr.bf16.mxu0 0
  %167 = vmatpush1.bf16.msra.mxu0 %v145
  %168 = vmatprep.subr.bf16.mxu0 0
  %169 = vmatpush1.bf16.msra.mxu0 %v144
  %170 = vmatprep.subr.bf16.mxu0 0
  %171 = vmatpush1.bf16.msra.mxu0 %v143
  %172 = vmatprep.subr.bf16.mxu0 0
  %173 = vmatpush1.bf16.msra.mxu0 %v142
  %174 = vmatprep.subr.bf16.mxu0 0
  %175 = vmatpush2.bf16.msra.mxu0 0
  %176 = vmatprep.subr.bf16.mxu0 0
  %177 = vmatpush2.bf16.msra.mxu0 0
  %178 = vmatprep.subr.bf16.mxu0 0
  %179 = vmatpush2.bf16.msra.mxu0 0
  %180 = vmatprep.subr.bf16.mxu0 0
  %181 = vmatpush2.bf16.msra.mxu0 0
  %182 = vmatprep.subr.bf16.mxu0 0
  %183 = vmatpush2.bf16.msra.mxu0 0
  %184 = vmatprep.subr.bf16.mxu0 0
  %185 = vmatpush2.bf16.msra.mxu0 0
  %186 = vmatprep.subr.bf16.mxu0 0
  %187 = vmatpush2.bf16.msra.mxu0 0
  %188 = vmatprep.subr.bf16.mxu0 0
  %189 = vmatpush2.bf16.msra.mxu0 0
  %190 = vmatprep.mubr.bf16.mxu0 0
  %191 = vmatmul.mubr.bf16.gmra.mxu0 %v94
  %v192 = vpop.f32.mrf.mxu0
  %v193 = vadd.f32 0.0, %v192
  %v194 = vpop.f32.mrf.mxu0
  %v195 = vpop.f32.mrf.mxu0
  %v196 = vadd.f32 0.0, %v195
  %v197 = vpop.f32.mrf.mxu0
  %198 = vmatprep.mubr.bf16.mxu0 0
  %199 = vmatmul.mubr.bf16.gmra.mxu0 %v95
  %v200 = vpop.f32.mrf.mxu0
  %v201 = vadd.f32 0.0, %v200
  %v202 = vpop.f32.mrf.mxu0
  %v203 = vpop.f32.mrf.mxu0
  %v204 = vadd.f32 0.0, %v203
  %v205 = vpop.f32.mrf.mxu0
  %206 = vmatprep.mubr.bf16.mxu0 0
  %207 = vmatmul.mubr.bf16.gmra.mxu0 %v96
  %v208 = vpop.f32.mrf.mxu0
  %v209 = vadd.f32 0.0, %v208
  %v210 = vpop.f32.mrf.mxu0
  %v211 = vpop.f32.mrf.mxu0
  %v212 = vadd.f32 0.0, %v211
  %v213 = vpop.f32.mrf.mxu0
  %214 = vmatprep.mubr.bf16.mxu0 0
  %215 = vmatmul.mubr.bf16.gmra.mxu0 %v97
  %v216 = vpop.f32.mrf.mxu0
  %v217 = vadd.f32 0.0, %v216
  %v218 = vpop.f32.mrf.mxu0
  %v219 = vpop.f32.mrf.mxu0
  %v220 = vadd.f32 0.0, %v219
  %v221 = vpop.f32.mrf.mxu0
  %222 = vmatprep.mubr.bf16.mxu0 0
  %223 = vmatmul.mubr.bf16.gmra.mxu0 %v98
  %v224 = vpop.f32.mrf.mxu0
  %v225 = vadd.f32 0.0, %v224
  %v226 = vpop.f32.mrf.mxu0
  %v227 = vpop.f32.mrf.mxu0
  %v228 = vadd.f32 0.0, %v227
  %v229 = vpop.f32.mrf.mxu0
  %230 = vmatprep.mubr.bf16.mxu0 0
  %231 = vmatmul.mubr.bf16.gmra.mxu0 %v99
  %v232 = vpop.f32.mrf.mxu0
  %v233 = vadd.f32 0.0, %v232
  %v234 = vpop.f32.mrf.mxu0
  %v235 = vpop.f32.mrf.mxu0
  %v236 = vadd.f32 0.0, %v235
  %v237 = vpop.f32.mrf.mxu0
  %238 = vmatprep.mubr.bf16.mxu0 0
  %239 = vmatmul.mubr.bf16.gmra.mxu0 %v100
  %v240 = vpop.f32.mrf.mxu0
  %v241 = vadd.f32 0.0, %v240
  %v242 = vpop.f32.mrf.mxu0
  %v243 = vpop.f32.mrf.mxu0
  %v244 = vadd.f32 0.0, %v243
  %v245 = vpop.f32.mrf.mxu0
  %246 = vmatprep.mubr.bf16.mxu0 0
  %247 = vmatmul.mubr.bf16.gmra.mxu0 %v101
  %v248 = vpop.f32.mrf.mxu0
  %v249 = vadd.f32 0.0, %v248
  %v250 = vpop.f32.mrf.mxu0
  %v251 = vpop.f32.mrf.mxu0
  %v252 = vadd.f32 0.0, %v251
  %v253 = vpop.f32.mrf.mxu0
  %254 = vdwg.mxu0
  %v255 = vpack.c.bf16 %v196, %v193
  %v256 = vpack.c.bf16 %v204, %v201
  %v257 = vpack.c.bf16 %v212, %v209
  %v258 = vpack.c.bf16 %v220, %v217
  %v259 = vpack.c.bf16 %v228, %v225
  %v260 = vpack.c.bf16 %v236, %v233
  %v261 = vpack.c.bf16 %v244, %v241
  %v262 = vpack.c.bf16 %v252, %v249
  %v263 = vld [vmem:[%s2] sm:$0xf]
  %v264 = vld [vmem:[%s2 + $0x4] sm:$0xf]
  %v265 = vld [vmem:[%s2 + $0x8] sm:$0xf]
  %v266 = vld [vmem:[%s2 + $0xc] sm:$0xf]
  %v267 = vld [vmem:[%s2 + $0x10] sm:$0xf]
  %v268 = vld [vmem:[%s2 + $0x14] sm:$0xf]
  %v269 = vld [vmem:[%s2 + $0x18] sm:$0xf]
  %v270 = vld [vmem:[%s2 + $0x1c] sm:$0xf]
  %v271 = vld [vmem:[%s2 + $0x20] sm:$0xf]
  %v272 = vld [vmem:[%s2 + $0x24] sm:$0xf]
  %v273 = vld [vmem:[%s2 + $0x28] sm:$0xf]
  %v274 = vld [vmem:[%s2 + $0x2c] sm:$0xf]
  %v275 = vld [vmem:[%s2 + $0x30] sm:$0xf]
  %v276 = vld [vmem:[%s2 + $0x34] sm:$0xf]
  %v277 = vld [vmem:[%s2 + $0x38] sm:$0xf]
  %v278 = vld [vmem:[%s2 + $0x3c] sm:$0xf]
  %v279 = vld [vmem:[%s3] sm:$0x1]
  %v281 = vlaneseq
  %v282 = vshrl.u32 %v281, 7
  %v283 = vsub.s32 0, %v282
  %v284 = vrot.slane %v279, %v283
  %v302 = vunpack.c.l.b16 %v263
  %v303 = vunpack.c.l.b16 %v264
  %v304 = vunpack.c.l.b16 %v265
  %v305 = vunpack.c.l.b16 %v266
  %v306 = vunpack.c.l.b16 %v267
  %v307 = vunpack.c.l.b16 %v268
  %v308 = vunpack.c.l.b16 %v269
  %v309 = vunpack.c.l.b16 %v270
  %v310 = vunpack.c.l.b16 %v271
  %v311 = vunpack.c.l.b16 %v272
  %v312 = vunpack.c.l.b16 %v273
  %v313 = vunpack.c.l.b16 %v274
  %v314 = vunpack.c.l.b16 %v275
  %v315 = vunpack.c.l.b16 %v276
  %v316 = vunpack.c.l.b16 %v277
  %v317 = vunpack.c.l.b16 %v278
  %v318 = vpack.c.b16 %v303, %v302
  %v319 = vpack.c.b16 %v305, %v304
  %v320 = vpack.c.b16 %v307, %v306
  %v321 = vpack.c.b16 %v309, %v308
  %v322 = vpack.c.b16 %v311, %v310
  %v323 = vpack.c.b16 %v313, %v312
  %v324 = vpack.c.b16 %v315, %v314
  %v325 = vpack.c.b16 %v317, %v316
  %334 = vmatprep.subr.bf16.mxu0 0
  %335 = vmatpush1.bf16.msra.mxu0 %v325
  %336 = vmatprep.subr.bf16.mxu0 0
  %337 = vmatpush1.bf16.msra.mxu0 %v324
  %338 = vmatprep.subr.bf16.mxu0 0
  %339 = vmatpush1.bf16.msra.mxu0 %v323
  %340 = vmatprep.subr.bf16.mxu0 0
  %341 = vmatpush1.bf16.msra.mxu0 %v322
  %342 = vmatprep.subr.bf16.mxu0 0
  %343 = vmatpush1.bf16.msra.mxu0 %v321
  %344 = vmatprep.subr.bf16.mxu0 0
  %345 = vmatpush1.bf16.msra.mxu0 %v320
  %346 = vmatprep.subr.bf16.mxu0 0
  %347 = vmatpush1.bf16.msra.mxu0 %v319
  %348 = vmatprep.subr.bf16.mxu0 0
  %349 = vmatpush1.bf16.msra.mxu0 %v318
  %350 = vmatprep.subr.bf16.mxu0 0
  %351 = vmatpush2.bf16.msra.mxu0 0
  %352 = vmatprep.subr.bf16.mxu0 0
  %353 = vmatpush2.bf16.msra.mxu0 0
  %354 = vmatprep.subr.bf16.mxu0 0
  %355 = vmatpush2.bf16.msra.mxu0 0
  %356 = vmatprep.subr.bf16.mxu0 0
  %357 = vmatpush2.bf16.msra.mxu0 0
  %358 = vmatprep.subr.bf16.mxu0 0
  %359 = vmatpush2.bf16.msra.mxu0 0
  %360 = vmatprep.subr.bf16.mxu0 0
  %361 = vmatpush2.bf16.msra.mxu0 0
  %362 = vmatprep.subr.bf16.mxu0 0
  %363 = vmatpush2.bf16.msra.mxu0 0
  %364 = vmatprep.subr.bf16.mxu0 0
  %365 = vmatpush2.bf16.msra.mxu0 0
  %366 = vmatprep.mubr.bf16.mxu0 0
  %367 = vmatmul.mubr.bf16.gmra.mxu0 %v255
  %v368 = vpop.f32.mrf.mxu0
  %v369 = vadd.f32 %v284, %v368
  %v370 = vpop.f32.mrf.mxu0
  %v371 = vpop.f32.mrf.mxu0
  %v372 = vadd.f32 %v284, %v371
  %v373 = vpop.f32.mrf.mxu0
  %374 = vmatprep.mubr.bf16.mxu0 0
  %375 = vmatmul.mubr.bf16.gmra.mxu0 %v256
  %v376 = vpop.f32.mrf.mxu0
  %v377 = vadd.f32 %v284, %v376
  %v378 = vpop.f32.mrf.mxu0
  %v379 = vpop.f32.mrf.mxu0
  %v380 = vadd.f32 %v284, %v379
  %v381 = vpop.f32.mrf.mxu0
  %382 = vmatprep.mubr.bf16.mxu0 0
  %383 = vmatmul.mubr.bf16.gmra.mxu0 %v257
  %v384 = vpop.f32.mrf.mxu0
  %v385 = vadd.f32 %v284, %v384
  %v386 = vpop.f32.mrf.mxu0
  %v387 = vpop.f32.mrf.mxu0
  %v388 = vadd.f32 %v284, %v387
  %v389 = vpop.f32.mrf.mxu0
  %390 = vmatprep.mubr.bf16.mxu0 0
  %391 = vmatmul.mubr.bf16.gmra.mxu0 %v258
  %v392 = vpop.f32.mrf.mxu0
  %v393 = vadd.f32 %v284, %v392
  %v394 = vpop.f32.mrf.mxu0
  %v395 = vpop.f32.mrf.mxu0
  %v396 = vadd.f32 %v284, %v395
  %v397 = vpop.f32.mrf.mxu0
  %398 = vmatprep.mubr.bf16.mxu0 0
  %399 = vmatmul.mubr.bf16.gmra.mxu0 %v259
  %v400 = vpop.f32.mrf.mxu0
  %v401 = vadd.f32 %v284, %v400
  %v402 = vpop.f32.mrf.mxu0
  %v403 = vpop.f32.mrf.mxu0
  %v404 = vadd.f32 %v284, %v403
  %v405 = vpop.f32.mrf.mxu0
  %406 = vmatprep.mubr.bf16.mxu0 0
  %407 = vmatmul.mubr.bf16.gmra.mxu0 %v260
  %v408 = vpop.f32.mrf.mxu0
  %v409 = vadd.f32 %v284, %v408
  %v410 = vpop.f32.mrf.mxu0
  %v411 = vpop.f32.mrf.mxu0
  %v412 = vadd.f32 %v284, %v411
  %v413 = vpop.f32.mrf.mxu0
  %414 = vmatprep.mubr.bf16.mxu0 0
  %415 = vmatmul.mubr.bf16.gmra.mxu0 %v261
  %v416 = vpop.f32.mrf.mxu0
  %v417 = vadd.f32 %v284, %v416
  %v418 = vpop.f32.mrf.mxu0
  %v419 = vpop.f32.mrf.mxu0
  %v420 = vadd.f32 %v284, %v419
  %v421 = vpop.f32.mrf.mxu0
  %422 = vmatprep.mubr.bf16.mxu0 0
  %423 = vmatmul.mubr.bf16.gmra.mxu0 %v262
  %v424 = vpop.f32.mrf.mxu0
  %v425 = vadd.f32 %v284, %v424
  %v426 = vpop.f32.mrf.mxu0
  %v427 = vpop.f32.mrf.mxu0
  %v428 = vadd.f32 %v284, %v427
  %v429 = vpop.f32.mrf.mxu0
  %430 = vdwg.mxu0
  %vm431 = vcmp.gt.f32.partialorder %v369, 0.0
  %vm432 = vcmp.gt.f32.partialorder %v372, 0.0
  %vm433 = vcmp.gt.f32.partialorder %v377, 0.0
  %vm434 = vcmp.gt.f32.partialorder %v380, 0.0
  %vm435 = vcmp.gt.f32.partialorder %v385, 0.0
  %vm436 = vcmp.gt.f32.partialorder %v388, 0.0
  %vm437 = vcmp.gt.f32.partialorder %v393, 0.0
  %vm438 = vcmp.gt.f32.partialorder %v396, 0.0
  %vm439 = vcmp.gt.f32.partialorder %v401, 0.0
  %vm440 = vcmp.gt.f32.partialorder %v404, 0.0
  %vm441 = vcmp.gt.f32.partialorder %v409, 0.0
  %vm442 = vcmp.gt.f32.partialorder %v412, 0.0
  %vm443 = vcmp.gt.f32.partialorder %v417, 0.0
  %vm444 = vcmp.gt.f32.partialorder %v420, 0.0
  %vm445 = vcmp.gt.f32.partialorder %v425, 0.0
  %vm446 = vcmp.gt.f32.partialorder %v428, 0.0
  %v447 = vmul.f32 %v369, 0.01
  %v448 = vmul.f32 %v372, 0.01
  %v449 = vmul.f32 %v377, 0.01
  %v450 = vmul.f32 %v380, 0.01
  %v451 = vmul.f32 %v385, 0.01
  %v452 = vmul.f32 %v388, 0.01
  %v453 = vmul.f32 %v393, 0.01
  %v454 = vmul.f32 %v396, 0.01
  %v455 = vmul.f32 %v401, 0.01
  %v456 = vmul.f32 %v404, 0.01
  %v457 = vmul.f32 %v409, 0.01
  %v458 = vmul.f32 %v412, 0.01
  %v459 = vmul.f32 %v417, 0.01
  %v460 = vmul.f32 %v420, 0.01
  %v461 = vmul.f32 %v425, 0.01
  %v462 = vmul.f32 %v428, 0.01
  %v463 = vsel %vm431, %v369, %v447
  %v464 = vsel %vm432, %v372, %v448
  %v465 = vsel %vm433, %v377, %v449
  %v466 = vsel %vm434, %v380, %v450
  %v467 = vsel %vm435, %v385, %v451
  %v468 = vsel %vm436, %v388, %v452
  %v469 = vsel %vm437, %v393, %v453
  %v470 = vsel %vm438, %v396, %v454
  %v471 = vsel %vm439, %v401, %v455
  %v472 = vsel %vm440, %v404, %v456
  %v473 = vsel %vm441, %v409, %v457
  %v474 = vsel %vm442, %v412, %v458
  %v475 = vsel %vm443, %v417, %v459
  %v476 = vsel %vm444, %v420, %v460
  %v477 = vsel %vm445, %v425, %v461
  %v478 = vsel %vm446, %v428, %v462
  %v479 = vld [vmem:[%s4] sm:$0xf]
  %v480 = vld [vmem:[%s4 + $0x4] sm:$0xf]
  %v481 = vld [vmem:[%s4 + $0x8] sm:$0xf]
  %v482 = vld [vmem:[%s4 + $0xc] sm:$0xf]
  %v483 = vld [vmem:[%s4 + $0x10] sm:$0xf]
  %v484 = vld [vmem:[%s4 + $0x14] sm:$0xf]
  %v485 = vld [vmem:[%s4 + $0x18] sm:$0xf]
  %v486 = vld [vmem:[%s4 + $0x1c] sm:$0xf]
  %v487 = vld [vmem:[%s4 + $0x20] sm:$0xf]
  %v488 = vld [vmem:[%s4 + $0x24] sm:$0xf]
  %v489 = vld [vmem:[%s4 + $0x28] sm:$0xf]
  %v490 = vld [vmem:[%s4 + $0x2c] sm:$0xf]
  %v491 = vld [vmem:[%s4 + $0x30] sm:$0xf]
  %v492 = vld [vmem:[%s4 + $0x34] sm:$0xf]
  %v493 = vld [vmem:[%s4 + $0x38] sm:$0xf]
  %v494 = vld [vmem:[%s4 + $0x3c] sm:$0xf]
  %v495 = vld [vmem:[%s5] sm:$0x1]
  %v496 = vpack.c.bf16 %v464, %v463
  %v497 = vpack.c.bf16 %v466, %v465
  %v498 = vpack.c.bf16 %v468, %v467
  %v499 = vpack.c.bf16 %v470, %v469
  %v500 = vpack.c.bf16 %v472, %v471
  %v501 = vpack.c.bf16 %v474, %v473
  %v502 = vpack.c.bf16 %v476, %v475
  %v503 = vpack.c.bf16 %v478, %v477
  %504 = vmatprep.subr.bf16.mxu0 0
  %505 = vmatpush1.bf16.msra.mxu0 %v503
  %506 = vmatprep.subr.bf16.mxu0 0
  %507 = vmatpush1.bf16.msra.mxu0 %v502
  %508 = vmatprep.subr.bf16.mxu0 0
  %509 = vmatpush1.bf16.msra.mxu0 %v501
  %510 = vmatprep.subr.bf16.mxu0 0
  %511 = vmatpush1.bf16.msra.mxu0 %v500
  %512 = vmatprep.subr.bf16.mxu0 0
  %513 = vmatpush1.bf16.msra.mxu0 %v499
  %514 = vmatprep.subr.bf16.mxu0 0
  %515 = vmatpush1.bf16.msra.mxu0 %v498
  %516 = vmatprep.subr.bf16.mxu0 0
  %517 = vmatpush1.bf16.msra.mxu0 %v497
  %518 = vmatprep.subr.bf16.mxu0 0
  %519 = vmatpush1.bf16.msra.mxu0 %v496
  %520 = vmatprep.subr.bf16.mxu0 0
  %521 = vmatpush2.bf16.msra.mxu0 0
  %522 = vmatprep.subr.bf16.mxu0 0
  %523 = vmatpush2.bf16.msra.mxu0 0
  %524 = vmatprep.subr.bf16.mxu0 0
  %525 = vmatpush2.bf16.msra.mxu0 0
  %526 = vmatprep.subr.bf16.mxu0 0
  %527 = vmatpush2.bf16.msra.mxu0 0
  %528 = vmatprep.subr.bf16.mxu0 0
  %529 = vmatpush2.bf16.msra.mxu0 0
  %530 = vmatprep.subr.bf16.mxu0 0
  %531 = vmatpush2.bf16.msra.mxu0 0
  %532 = vmatprep.subr.bf16.mxu0 0
  %533 = vmatpush2.bf16.msra.mxu0 0
  %534 = vmatprep.subr.bf16.mxu0 0
  %535 = vmatpush2.bf16.msra.mxu0 0
  %536 = vmatprep.mubr.bf16.mxu0 0
  %537 = vmatmul.mubr.bf16.gmra.mxu0 %v94
  %v538 = vpop.f32.mrf.mxu0
  %v539 = vadd.f32 0.0, %v538
  %v540 = vpop.f32.mrf.mxu0
  %v541 = vpop.f32.mrf.mxu0
  %v542 = vadd.f32 0.0, %v541
  %v543 = vpop.f32.mrf.mxu0
  %544 = vmatprep.mubr.bf16.mxu0 0
  %545 = vmatmul.mubr.bf16.gmra.mxu0 %v95
  %v546 = vpop.f32.mrf.mxu0
  %v547 = vadd.f32 0.0, %v546
  %v548 = vpop.f32.mrf.mxu0
  %v549 = vpop.f32.mrf.mxu0
  %v550 = vadd.f32 0.0, %v549
  %v551 = vpop.f32.mrf.mxu0
  %552 = vmatprep.mubr.bf16.mxu0 0
  %553 = vmatmul.mubr.bf16.gmra.mxu0 %v96
  %v554 = vpop.f32.mrf.mxu0
  %v555 = vadd.f32 0.0, %v554
  %v556 = vpop.f32.mrf.mxu0
  %v557 = vpop.f32.mrf.mxu0
  %v558 = vadd.f32 0.0, %v557
  %v559 = vpop.f32.mrf.mxu0
  %560 = vmatprep.mubr.bf16.mxu0 0
  %561 = vmatmul.mubr.bf16.gmra.mxu0 %v97
  %v562 = vpop.f32.mrf.mxu0
  %v563 = vadd.f32 0.0, %v562
  %v564 = vpop.f32.mrf.mxu0
  %v565 = vpop.f32.mrf.mxu0
  %v566 = vadd.f32 0.0, %v565
  %v567 = vpop.f32.mrf.mxu0
  %568 = vmatprep.mubr.bf16.mxu0 0
  %569 = vmatmul.mubr.bf16.gmra.mxu0 %v98
  %v570 = vpop.f32.mrf.mxu0
  %v571 = vadd.f32 0.0, %v570
  %v572 = vpop.f32.mrf.mxu0
  %v573 = vpop.f32.mrf.mxu0
  %v574 = vadd.f32 0.0, %v573
  %v575 = vpop.f32.mrf.mxu0
  %576 = vmatprep.mubr.bf16.mxu0 0
  %577 = vmatmul.mubr.bf16.gmra.mxu0 %v99
  %v578 = vpop.f32.mrf.mxu0
  %v579 = vadd.f32 0.0, %v578
  %v580 = vpop.f32.mrf.mxu0
  %v581 = vpop.f32.mrf.mxu0
  %v582 = vadd.f32 0.0, %v581
  %v583 = vpop.f32.mrf.mxu0
  %584 = vmatprep.mubr.bf16.mxu0 0
  %585 = vmatmul.mubr.bf16.gmra.mxu0 %v100
  %v586 = vpop.f32.mrf.mxu0
  %v587 = vadd.f32 0.0, %v586
  %v588 = vpop.f32.mrf.mxu0
  %v589 = vpop.f32.mrf.mxu0
  %v590 = vadd.f32 0.0, %v589
  %v591 = vpop.f32.mrf.mxu0
  %592 = vmatprep.mubr.bf16.mxu0 0
  %593 = vmatmul.mubr.bf16.gmra.mxu0 %v101
  %v594 = vpop.f32.mrf.mxu0
  %v595 = vadd.f32 0.0, %v594
  %v596 = vpop.f32.mrf.mxu0
  %v597 = vpop.f32.mrf.mxu0
  %v598 = vadd.f32 0.0, %v597
  %v599 = vpop.f32.mrf.mxu0
  %600 = vdwg.mxu0
  %v601 = vpack.c.bf16 %v542, %v539
  %v602 = vpack.c.bf16 %v550, %v547
  %v603 = vpack.c.bf16 %v558, %v555
  %v604 = vpack.c.bf16 %v566, %v563
  %v605 = vpack.c.bf16 %v574, %v571
  %v606 = vpack.c.bf16 %v582, %v579
  %v607 = vpack.c.bf16 %v590, %v587
  %v608 = vpack.c.bf16 %v598, %v595
  %v610 = vlaneseq
  %v611 = vshrl.u32 %v610, 7
  %v612 = vsub.s32 0, %v611
  %v613 = vrot.slane %v495, %v612
  %v631 = vunpack.c.l.b16 %v479
  %v632 = vunpack.c.l.b16 %v480
  %v633 = vunpack.c.l.b16 %v481
  %v634 = vunpack.c.l.b16 %v482
  %v635 = vunpack.c.l.b16 %v483
  %v636 = vunpack.c.l.b16 %v484
  %v637 = vunpack.c.l.b16 %v485
  %v638 = vunpack.c.l.b16 %v486
  %v639 = vunpack.c.l.b16 %v487
  %v640 = vunpack.c.l.b16 %v488
  %v641 = vunpack.c.l.b16 %v489
  %v642 = vunpack.c.l.b16 %v490
  %v643 = vunpack.c.l.b16 %v491
  %v644 = vunpack.c.l.b16 %v492
  %v645 = vunpack.c.l.b16 %v493
  %v646 = vunpack.c.l.b16 %v494
  %v647 = vpack.c.b16 %v632, %v631
  %v648 = vpack.c.b16 %v634, %v633
  %v649 = vpack.c.b16 %v636, %v635
  %v650 = vpack.c.b16 %v638, %v637
  %v651 = vpack.c.b16 %v640, %v639
  %v652 = vpack.c.b16 %v642, %v641
  %v653 = vpack.c.b16 %v644, %v643
  %v654 = vpack.c.b16 %v646, %v645
  %663 = vmatprep.subr.bf16.mxu0 0
  %664 = vmatpush1.bf16.msra.mxu0 %v654
  %665 = vmatprep.subr.bf16.mxu0 0
  %666 = vmatpush1.bf16.msra.mxu0 %v653
  %667 = vmatprep.subr.bf16.mxu0 0
  %668 = vmatpush1.bf16.msra.mxu0 %v652
  %669 = vmatprep.subr.bf16.mxu0 0
  %670 = vmatpush1.bf16.msra.mxu0 %v651
  %671 = vmatprep.subr.bf16.mxu0 0
  %672 = vmatpush1.bf16.msra.mxu0 %v650
  %673 = vmatprep.subr.bf16.mxu0 0
  %674 = vmatpush1.bf16.msra.mxu0 %v649
  %675 = vmatprep.subr.bf16.mxu0 0
  %676 = vmatpush1.bf16.msra.mxu0 %v648
  %677 = vmatprep.subr.bf16.mxu0 0
  %678 = vmatpush1.bf16.msra.mxu0 %v647
  %679 = vmatprep.subr.bf16.mxu0 0
  %680 = vmatpush2.bf16.msra.mxu0 0
  %681 = vmatprep.subr.bf16.mxu0 0
  %682 = vmatpush2.bf16.msra.mxu0 0
  %683 = vmatprep.subr.bf16.mxu0 0
  %684 = vmatpush2.bf16.msra.mxu0 0
  %685 = vmatprep.subr.bf16.mxu0 0
  %686 = vmatpush2.bf16.msra.mxu0 0
  %687 = vmatprep.subr.bf16.mxu0 0
  %688 = vmatpush2.bf16.msra.mxu0 0
  %689 = vmatprep.subr.bf16.mxu0 0
  %690 = vmatpush2.bf16.msra.mxu0 0
  %691 = vmatprep.subr.bf16.mxu0 0
  %692 = vmatpush2.bf16.msra.mxu0 0
  %693 = vmatprep.subr.bf16.mxu0 0
  %694 = vmatpush2.bf16.msra.mxu0 0
  %695 = vmatprep.mubr.bf16.mxu0 0
  %696 = vmatmul.mubr.bf16.gmra.mxu0 %v601
  %v697 = vpop.f32.mrf.mxu0
  %v698 = vadd.f32 %v613, %v697
  %v699 = vpop.f32.mrf.mxu0
  %v700 = vpop.f32.mrf.mxu0
  %v701 = vadd.f32 %v613, %v700
  %v702 = vpop.f32.mrf.mxu0
  %703 = vmatprep.mubr.bf16.mxu0 0
  %704 = vmatmul.mubr.bf16.gmra.mxu0 %v602
  %v705 = vpop.f32.mrf.mxu0
  %v706 = vadd.f32 %v613, %v705
  %v707 = vpop.f32.mrf.mxu0
  %v708 = vpop.f32.mrf.mxu0
  %v709 = vadd.f32 %v613, %v708
  %v710 = vpop.f32.mrf.mxu0
  %711 = vmatprep.mubr.bf16.mxu0 0
  %712 = vmatmul.mubr.bf16.gmra.mxu0 %v603
  %v713 = vpop.f32.mrf.mxu0
  %v714 = vadd.f32 %v613, %v713
  %v715 = vpop.f32.mrf.mxu0
  %v716 = vpop.f32.mrf.mxu0
  %v717 = vadd.f32 %v613, %v716
  %v718 = vpop.f32.mrf.mxu0
  %719 = vmatprep.mubr.bf16.mxu0 0
  %720 = vmatmul.mubr.bf16.gmra.mxu0 %v604
  %v721 = vpop.f32.mrf.mxu0
  %v722 = vadd.f32 %v613, %v721
  %v723 = vpop.f32.mrf.mxu0
  %v724 = vpop.f32.mrf.mxu0
  %v725 = vadd.f32 %v613, %v724
  %v726 = vpop.f32.mrf.mxu0
  %727 = vmatprep.mubr.bf16.mxu0 0
  %728 = vmatmul.mubr.bf16.gmra.mxu0 %v605
  %v729 = vpop.f32.mrf.mxu0
  %v730 = vadd.f32 %v613, %v729
  %v731 = vpop.f32.mrf.mxu0
  %v732 = vpop.f32.mrf.mxu0
  %v733 = vadd.f32 %v613, %v732
  %v734 = vpop.f32.mrf.mxu0
  %735 = vmatprep.mubr.bf16.mxu0 0
  %736 = vmatmul.mubr.bf16.gmra.mxu0 %v606
  %v737 = vpop.f32.mrf.mxu0
  %v738 = vadd.f32 %v613, %v737
  %v739 = vpop.f32.mrf.mxu0
  %v740 = vpop.f32.mrf.mxu0
  %v741 = vadd.f32 %v613, %v740
  %v742 = vpop.f32.mrf.mxu0
  %743 = vmatprep.mubr.bf16.mxu0 0
  %744 = vmatmul.mubr.bf16.gmra.mxu0 %v607
  %v745 = vpop.f32.mrf.mxu0
  %v746 = vadd.f32 %v613, %v745
  %v747 = vpop.f32.mrf.mxu0
  %v748 = vpop.f32.mrf.mxu0
  %v749 = vadd.f32 %v613, %v748
  %v750 = vpop.f32.mrf.mxu0
  %751 = vmatprep.mubr.bf16.mxu0 0
  %752 = vmatmul.mubr.bf16.gmra.mxu0 %v608
  %v753 = vpop.f32.mrf.mxu0
  %v754 = vadd.f32 %v613, %v753
  %v755 = vpop.f32.mrf.mxu0
  %v756 = vpop.f32.mrf.mxu0
  %v757 = vadd.f32 %v613, %v756
  %v758 = vpop.f32.mrf.mxu0
  %759 = vdwg.mxu0
  %vm760 = vcmp.gt.f32.partialorder %v698, 0.0
  %vm761 = vcmp.gt.f32.partialorder %v701, 0.0
  %vm762 = vcmp.gt.f32.partialorder %v706, 0.0
  %vm763 = vcmp.gt.f32.partialorder %v709, 0.0
  %vm764 = vcmp.gt.f32.partialorder %v714, 0.0
  %vm765 = vcmp.gt.f32.partialorder %v717, 0.0
  %vm766 = vcmp.gt.f32.partialorder %v722, 0.0
  %vm767 = vcmp.gt.f32.partialorder %v725, 0.0
  %vm768 = vcmp.gt.f32.partialorder %v730, 0.0
  %vm769 = vcmp.gt.f32.partialorder %v733, 0.0
  %vm770 = vcmp.gt.f32.partialorder %v738, 0.0
  %vm771 = vcmp.gt.f32.partialorder %v741, 0.0
  %vm772 = vcmp.gt.f32.partialorder %v746, 0.0
  %vm773 = vcmp.gt.f32.partialorder %v749, 0.0
  %vm774 = vcmp.gt.f32.partialorder %v754, 0.0
  %vm775 = vcmp.gt.f32.partialorder %v757, 0.0
  %v776 = vmul.f32 %v698, 0.01
  %v777 = vmul.f32 %v701, 0.01
  %v778 = vmul.f32 %v706, 0.01
  %v779 = vmul.f32 %v709, 0.01
  %v780 = vmul.f32 %v714, 0.01
  %v781 = vmul.f32 %v717, 0.01
  %v782 = vmul.f32 %v722, 0.01
  %v783 = vmul.f32 %v725, 0.01
  %v784 = vmul.f32 %v730, 0.01
  %v785 = vmul.f32 %v733, 0.01
  %v786 = vmul.f32 %v738, 0.01
  %v787 = vmul.f32 %v741, 0.01
  %v788 = vmul.f32 %v746, 0.01
  %v789 = vmul.f32 %v749, 0.01
  %v790 = vmul.f32 %v754, 0.01
  %v791 = vmul.f32 %v757, 0.01
  %v792 = vsel %vm760, %v698, %v776
  %v793 = vsel %vm761, %v701, %v777
  %v794 = vsel %vm762, %v706, %v778
  %v795 = vsel %vm763, %v709, %v779
  %v796 = vsel %vm764, %v714, %v780
  %v797 = vsel %vm765, %v717, %v781
  %v798 = vsel %vm766, %v722, %v782
  %v799 = vsel %vm767, %v725, %v783
  %v800 = vsel %vm768, %v730, %v784
  %v801 = vsel %vm769, %v733, %v785
  %v802 = vsel %vm770, %v738, %v786
  %v803 = vsel %vm771, %v741, %v787
  %v804 = vsel %vm772, %v746, %v788
  %v805 = vsel %vm773, %v749, %v789
  %v806 = vsel %vm774, %v754, %v790
  %v807 = vsel %vm775, %v757, %v791
  %s808 = scalar_lea.vmem %s4, 64
  %v809 = vld [vmem:[%s808] sm:$0xf]
  %v810 = vld [vmem:[%s808 + $0x4] sm:$0xf]
  %v811 = vld [vmem:[%s808 + $0x8] sm:$0xf]
  %v812 = vld [vmem:[%s808 + $0xc] sm:$0xf]
  %v813 = vld [vmem:[%s808 + $0x10] sm:$0xf]
  %v814 = vld [vmem:[%s808 + $0x14] sm:$0xf]
  %v815 = vld [vmem:[%s808 + $0x18] sm:$0xf]
  %v816 = vld [vmem:[%s808 + $0x1c] sm:$0xf]
  %v817 = vld [vmem:[%s808 + $0x20] sm:$0xf]
  %v818 = vld [vmem:[%s808 + $0x24] sm:$0xf]
  %v819 = vld [vmem:[%s808 + $0x28] sm:$0xf]
  %v820 = vld [vmem:[%s808 + $0x2c] sm:$0xf]
  %v821 = vld [vmem:[%s808 + $0x30] sm:$0xf]
  %v822 = vld [vmem:[%s808 + $0x34] sm:$0xf]
  %v823 = vld [vmem:[%s808 + $0x38] sm:$0xf]
  %v824 = vld [vmem:[%s808 + $0x3c] sm:$0xf]
  %s825 = scalar_lea.vmem %s5, 1
  %v826 = vld [vmem:[%s825] sm:$0x1]
  %v827 = vpack.c.bf16 %v793, %v792
  %v828 = vpack.c.bf16 %v795, %v794
  %v829 = vpack.c.bf16 %v797, %v796
  %v830 = vpack.c.bf16 %v799, %v798
  %v831 = vpack.c.bf16 %v801, %v800
  %v832 = vpack.c.bf16 %v803, %v802
  %v833 = vpack.c.bf16 %v805, %v804
  %v834 = vpack.c.bf16 %v807, %v806
  %835 = vmatprep.subr.bf16.mxu0 0
  %836 = vmatpush1.bf16.msra.mxu0 %v834
  %837 = vmatprep.subr.bf16.mxu0 0
  %838 = vmatpush1.bf16.msra.mxu0 %v833
  %839 = vmatprep.subr.bf16.mxu0 0
  %840 = vmatpush1.bf16.msra.mxu0 %v832
  %841 = vmatprep.subr.bf16.mxu0 0
  %842 = vmatpush1.bf16.msra.mxu0 %v831
  %843 = vmatprep.subr.bf16.mxu0 0
  %844 = vmatpush1.bf16.msra.mxu0 %v830
  %845 = vmatprep.subr.bf16.mxu0 0
  %846 = vmatpush1.bf16.msra.mxu0 %v829
  %847 = vmatprep.subr.bf16.mxu0 0
  %848 = vmatpush1.bf16.msra.mxu0 %v828
  %849 = vmatprep.subr.bf16.mxu0 0
  %850 = vmatpush1.bf16.msra.mxu0 %v827
  %851 = vmatprep.subr.bf16.mxu0 0
  %852 = vmatpush2.bf16.msra.mxu0 0
  %853 = vmatprep.subr.bf16.mxu0 0
  %854 = vmatpush2.bf16.msra.mxu0 0
  %855 = vmatprep.subr.bf16.mxu0 0
  %856 = vmatpush2.bf16.msra.mxu0 0
  %857 = vmatprep.subr.bf16.mxu0 0
  %858 = vmatpush2.bf16.msra.mxu0 0
  %859 = vmatprep.subr.bf16.mxu0 0
  %860 = vmatpush2.bf16.msra.mxu0 0
  %861 = vmatprep.subr.bf16.mxu0 0
  %862 = vmatpush2.bf16.msra.mxu0 0
  %863 = vmatprep.subr.bf16.mxu0 0
  %864 = vmatpush2.bf16.msra.mxu0 0
  %865 = vmatprep.subr.bf16.mxu0 0
  %866 = vmatpush2.bf16.msra.mxu0 0
  %867 = vmatprep.mubr.bf16.mxu0 0
  %868 = vmatmul.mubr.bf16.gmra.mxu0 %v94
  %v869 = vpop.f32.mrf.mxu0
  %v870 = vadd.f32 0.0, %v869
  %v871 = vpop.f32.mrf.mxu0
  %v872 = vpop.f32.mrf.mxu0
  %v873 = vadd.f32 0.0, %v872
  %v874 = vpop.f32.mrf.mxu0
  %875 = vmatprep.mubr.bf16.mxu0 0
  %876 = vmatmul.mubr.bf16.gmra.mxu0 %v95
  %v877 = vpop.f32.mrf.mxu0
  %v878 = vadd.f32 0.0, %v877
  %v879 = vpop.f32.mrf.mxu0
  %v880 = vpop.f32.mrf.mxu0
  %v881 = vadd.f32 0.0, %v880
  %v882 = vpop.f32.mrf.mxu0
  %883 = vmatprep.mubr.bf16.mxu0 0
  %884 = vmatmul.mubr.bf16.gmra.mxu0 %v96
  %v885 = vpop.f32.mrf.mxu0
  %v886 = vadd.f32 0.0, %v885
  %v887 = vpop.f32.mrf.mxu0
  %v888 = vpop.f32.mrf.mxu0
  %v889 = vadd.f32 0.0, %v888
  %v890 = vpop.f32.mrf.mxu0
  %891 = vmatprep.mubr.bf16.mxu0 0
  %892 = vmatmul.mubr.bf16.gmra.mxu0 %v97
  %v893 = vpop.f32.mrf.mxu0
  %v894 = vadd.f32 0.0, %v893
  %v895 = vpop.f32.mrf.mxu0
  %v896 = vpop.f32.mrf.mxu0
  %v897 = vadd.f32 0.0, %v896
  %v898 = vpop.f32.mrf.mxu0
  %899 = vmatprep.mubr.bf16.mxu0 0
  %900 = vmatmul.mubr.bf16.gmra.mxu0 %v98
  %v901 = vpop.f32.mrf.mxu0
  %v902 = vadd.f32 0.0, %v901
  %v903 = vpop.f32.mrf.mxu0
  %v904 = vpop.f32.mrf.mxu0
  %v905 = vadd.f32 0.0, %v904
  %v906 = vpop.f32.mrf.mxu0
  %907 = vmatprep.mubr.bf16.mxu0 0
  %908 = vmatmul.mubr.bf16.gmra.mxu0 %v99
  %v909 = vpop.f32.mrf.mxu0
  %v910 = vadd.f32 0.0, %v909
  %v911 = vpop.f32.mrf.mxu0
  %v912 = vpop.f32.mrf.mxu0
  %v913 = vadd.f32 0.0, %v912
  %v914 = vpop.f32.mrf.mxu0
  %915 = vmatprep.mubr.bf16.mxu0 0
  %916 = vmatmul.mubr.bf16.gmra.mxu0 %v100
  %v917 = vpop.f32.mrf.mxu0
  %v918 = vadd.f32 0.0, %v917
  %v919 = vpop.f32.mrf.mxu0
  %v920 = vpop.f32.mrf.mxu0
  %v921 = vadd.f32 0.0, %v920
  %v922 = vpop.f32.mrf.mxu0
  %923 = vmatprep.mubr.bf16.mxu0 0
  %924 = vmatmul.mubr.bf16.gmra.mxu0 %v101
  %v925 = vpop.f32.mrf.mxu0
  %v926 = vadd.f32 0.0, %v925
  %v927 = vpop.f32.mrf.mxu0
  %v928 = vpop.f32.mrf.mxu0
  %v929 = vadd.f32 0.0, %v928
  %v930 = vpop.f32.mrf.mxu0
  %931 = vdwg.mxu0
  %v932 = vpack.c.bf16 %v873, %v870
  %v933 = vpack.c.bf16 %v881, %v878
  %v934 = vpack.c.bf16 %v889, %v886
  %v935 = vpack.c.bf16 %v897, %v894
  %v936 = vpack.c.bf16 %v905, %v902
  %v937 = vpack.c.bf16 %v913, %v910
  %v938 = vpack.c.bf16 %v921, %v918
  %v939 = vpack.c.bf16 %v929, %v926
  %v941 = vlaneseq
  %v942 = vshrl.u32 %v941, 7
  %v943 = vsub.s32 0, %v942
  %v944 = vrot.slane %v826, %v943
  %v962 = vunpack.c.l.b16 %v809
  %v963 = vunpack.c.l.b16 %v810
  %v964 = vunpack.c.l.b16 %v811
  %v965 = vunpack.c.l.b16 %v812
  %v966 = vunpack.c.l.b16 %v813
  %v967 = vunpack.c.l.b16 %v814
  %v968 = vunpack.c.l.b16 %v815
  %v969 = vunpack.c.l.b16 %v816
  %v970 = vunpack.c.l.b16 %v817
  %v971 = vunpack.c.l.b16 %v818
  %v972 = vunpack.c.l.b16 %v819
  %v973 = vunpack.c.l.b16 %v820
  %v974 = vunpack.c.l.b16 %v821
  %v975 = vunpack.c.l.b16 %v822
  %v976 = vunpack.c.l.b16 %v823
  %v977 = vunpack.c.l.b16 %v824
  %v978 = vpack.c.b16 %v963, %v962
  %v979 = vpack.c.b16 %v965, %v964
  %v980 = vpack.c.b16 %v967, %v966
  %v981 = vpack.c.b16 %v969, %v968
  %v982 = vpack.c.b16 %v971, %v970
  %v983 = vpack.c.b16 %v973, %v972
  %v984 = vpack.c.b16 %v975, %v974
  %v985 = vpack.c.b16 %v977, %v976
  %994 = vmatprep.subr.bf16.mxu0 0
  %995 = vmatpush1.bf16.msra.mxu0 %v985
  %996 = vmatprep.subr.bf16.mxu0 0
  %997 = vmatpush1.bf16.msra.mxu0 %v984
  %998 = vmatprep.subr.bf16.mxu0 0
  %999 = vmatpush1.bf16.msra.mxu0 %v983
  %1000 = vmatprep.subr.bf16.mxu0 0
  %1001 = vmatpush1.bf16.msra.mxu0 %v982
  %1002 = vmatprep.subr.bf16.mxu0 0
  %1003 = vmatpush1.bf16.msra.mxu0 %v981
  %1004 = vmatprep.subr.bf16.mxu0 0
  %1005 = vmatpush1.bf16.msra.mxu0 %v980
  %1006 = vmatprep.subr.bf16.mxu0 0
  %1007 = vmatpush1.bf16.msra.mxu0 %v979
  %1008 = vmatprep.subr.bf16.mxu0 0
  %1009 = vmatpush1.bf16.msra.mxu0 %v978
  %1010 = vmatprep.subr.bf16.mxu0 0
  %1011 = vmatpush2.bf16.msra.mxu0 0
  %1012 = vmatprep.subr.bf16.mxu0 0
  %1013 = vmatpush2.bf16.msra.mxu0 0
  %1014 = vmatprep.subr.bf16.mxu0 0
  %1015 = vmatpush2.bf16.msra.mxu0 0
  %1016 = vmatprep.subr.bf16.mxu0 0
  %1017 = vmatpush2.bf16.msra.mxu0 0
  %1018 = vmatprep.subr.bf16.mxu0 0
  %1019 = vmatpush2.bf16.msra.mxu0 0
  %1020 = vmatprep.subr.bf16.mxu0 0
  %1021 = vmatpush2.bf16.msra.mxu0 0
  %1022 = vmatprep.subr.bf16.mxu0 0
  %1023 = vmatpush2.bf16.msra.mxu0 0
  %1024 = vmatprep.subr.bf16.mxu0 0
  %1025 = vmatpush2.bf16.msra.mxu0 0
  %1026 = vmatprep.mubr.bf16.mxu0 0
  %1027 = vmatmul.mubr.bf16.gmra.mxu0 %v932
  %v1028 = vpop.f32.mrf.mxu0
  %v1029 = vadd.f32 %v944, %v1028
  %v1030 = vpop.f32.mrf.mxu0
  %v1031 = vpop.f32.mrf.mxu0
  %v1032 = vadd.f32 %v944, %v1031
  %v1033 = vpop.f32.mrf.mxu0
  %1034 = vmatprep.mubr.bf16.mxu0 0
  %1035 = vmatmul.mubr.bf16.gmra.mxu0 %v933
  %v1036 = vpop.f32.mrf.mxu0
  %v1037 = vadd.f32 %v944, %v1036
  %v1038 = vpop.f32.mrf.mxu0
  %v1039 = vpop.f32.mrf.mxu0
  %v1040 = vadd.f32 %v944, %v1039
  %v1041 = vpop.f32.mrf.mxu0
  %1042 = vmatprep.mubr.bf16.mxu0 0
  %1043 = vmatmul.mubr.bf16.gmra.mxu0 %v934
  %v1044 = vpop.f32.mrf.mxu0
  %v1045 = vadd.f32 %v944, %v1044
  %v1046 = vpop.f32.mrf.mxu0
  %v1047 = vpop.f32.mrf.mxu0
  %v1048 = vadd.f32 %v944, %v1047
  %v1049 = vpop.f32.mrf.mxu0
  %1050 = vmatprep.mubr.bf16.mxu0 0
  %1051 = vmatmul.mubr.bf16.gmra.mxu0 %v935
  %v1052 = vpop.f32.mrf.mxu0
  %v1053 = vadd.f32 %v944, %v1052
  %v1054 = vpop.f32.mrf.mxu0
  %v1055 = vpop.f32.mrf.mxu0
  %v1056 = vadd.f32 %v944, %v1055
  %v1057 = vpop.f32.mrf.mxu0
  %1058 = vmatprep.mubr.bf16.mxu0 0
  %1059 = vmatmul.mubr.bf16.gmra.mxu0 %v936
  %v1060 = vpop.f32.mrf.mxu0
  %v1061 = vadd.f32 %v944, %v1060
  %v1062 = vpop.f32.mrf.mxu0
  %v1063 = vpop.f32.mrf.mxu0
  %v1064 = vadd.f32 %v944, %v1063
  %v1065 = vpop.f32.mrf.mxu0
  %1066 = vmatprep.mubr.bf16.mxu0 0
  %1067 = vmatmul.mubr.bf16.gmra.mxu0 %v937
  %v1068 = vpop.f32.mrf.mxu0
  %v1069 = vadd.f32 %v944, %v1068
  %v1070 = vpop.f32.mrf.mxu0
  %v1071 = vpop.f32.mrf.mxu0
  %v1072 = vadd.f32 %v944, %v1071
  %v1073 = vpop.f32.mrf.mxu0
  %1074 = vmatprep.mubr.bf16.mxu0 0
  %1075 = vmatmul.mubr.bf16.gmra.mxu0 %v938
  %v1076 = vpop.f32.mrf.mxu0
  %v1077 = vadd.f32 %v944, %v1076
  %v1078 = vpop.f32.mrf.mxu0
  %v1079 = vpop.f32.mrf.mxu0
  %v1080 = vadd.f32 %v944, %v1079
  %v1081 = vpop.f32.mrf.mxu0
  %1082 = vmatprep.mubr.bf16.mxu0 0
  %1083 = vmatmul.mubr.bf16.gmra.mxu0 %v939
  %v1084 = vpop.f32.mrf.mxu0
  %v1085 = vadd.f32 %v944, %v1084
  %v1086 = vpop.f32.mrf.mxu0
  %v1087 = vpop.f32.mrf.mxu0
  %v1088 = vadd.f32 %v944, %v1087
  %v1089 = vpop.f32.mrf.mxu0
  %1090 = vdwg.mxu0
  %vm1091 = vcmp.gt.f32.partialorder %v1029, 0.0
  %vm1092 = vcmp.gt.f32.partialorder %v1032, 0.0
  %vm1093 = vcmp.gt.f32.partialorder %v1037, 0.0
  %vm1094 = vcmp.gt.f32.partialorder %v1040, 0.0
  %vm1095 = vcmp.gt.f32.partialorder %v1045, 0.0
  %vm1096 = vcmp.gt.f32.partialorder %v1048, 0.0
  %vm1097 = vcmp.gt.f32.partialorder %v1053, 0.0
  %vm1098 = vcmp.gt.f32.partialorder %v1056, 0.0
  %vm1099 = vcmp.gt.f32.partialorder %v1061, 0.0
  %vm1100 = vcmp.gt.f32.partialorder %v1064, 0.0
  %vm1101 = vcmp.gt.f32.partialorder %v1069, 0.0
  %vm1102 = vcmp.gt.f32.partialorder %v1072, 0.0
  %vm1103 = vcmp.gt.f32.partialorder %v1077, 0.0
  %vm1104 = vcmp.gt.f32.partialorder %v1080, 0.0
  %vm1105 = vcmp.gt.f32.partialorder %v1085, 0.0
  %vm1106 = vcmp.gt.f32.partialorder %v1088, 0.0
  %v1107 = vmul.f32 %v1029, 0.01
  %v1108 = vmul.f32 %v1032, 0.01
  %v1109 = vmul.f32 %v1037, 0.01
  %v1110 = vmul.f32 %v1040, 0.01
  %v1111 = vmul.f32 %v1045, 0.01
  %v1112 = vmul.f32 %v1048, 0.01
  %v1113 = vmul.f32 %v1053, 0.01
  %v1114 = vmul.f32 %v1056, 0.01
  %v1115 = vmul.f32 %v1061, 0.01
  %v1116 = vmul.f32 %v1064, 0.01
  %v1117 = vmul.f32 %v1069, 0.01
  %v1118 = vmul.f32 %v1072, 0.01
  %v1119 = vmul.f32 %v1077, 0.01
  %v1120 = vmul.f32 %v1080, 0.01
  %v1121 = vmul.f32 %v1085, 0.01
  %v1122 = vmul.f32 %v1088, 0.01
  %v1123 = vsel %vm1091, %v1029, %v1107
  %v1124 = vsel %vm1092, %v1032, %v1108
  %v1125 = vsel %vm1093, %v1037, %v1109
  %v1126 = vsel %vm1094, %v1040, %v1110
  %v1127 = vsel %vm1095, %v1045, %v1111
  %v1128 = vsel %vm1096, %v1048, %v1112
  %v1129 = vsel %vm1097, %v1053, %v1113
  %v1130 = vsel %vm1098, %v1056, %v1114
  %v1131 = vsel %vm1099, %v1061, %v1115
  %v1132 = vsel %vm1100, %v1064, %v1116
  %v1133 = vsel %vm1101, %v1069, %v1117
  %v1134 = vsel %vm1102, %v1072, %v1118
  %v1135 = vsel %vm1103, %v1077, %v1119
  %v1136 = vsel %vm1104, %v1080, %v1120
  %v1137 = vsel %vm1105, %v1085, %v1121
  %v1138 = vsel %vm1106, %v1088, %v1122
  %s1139 = scalar_lea.vmem %s4, 128
  %v1140 = vld [vmem:[%s1139] sm:$0xf]
  %v1141 = vld [vmem:[%s1139 + $0x4] sm:$0xf]
  %v1142 = vld [vmem:[%s1139 + $0x8] sm:$0xf]
  %v1143 = vld [vmem:[%s1139 + $0xc] sm:$0xf]
  %v1144 = vld [vmem:[%s1139 + $0x10] sm:$0xf]
  %v1145 = vld [vmem:[%s1139 + $0x14] sm:$0xf]
  %v1146 = vld [vmem:[%s1139 + $0x18] sm:$0xf]
  %v1147 = vld [vmem:[%s1139 + $0x1c] sm:$0xf]
  %v1148 = vld [vmem:[%s1139 + $0x20] sm:$0xf]
  %v1149 = vld [vmem:[%s1139 + $0x24] sm:$0xf]
  %v1150 = vld [vmem:[%s1139 + $0x28] sm:$0xf]
  %v1151 = vld [vmem:[%s1139 + $0x2c] sm:$0xf]
  %v1152 = vld [vmem:[%s1139 + $0x30] sm:$0xf]
  %v1153 = vld [vmem:[%s1139 + $0x34] sm:$0xf]
  %v1154 = vld [vmem:[%s1139 + $0x38] sm:$0xf]
  %v1155 = vld [vmem:[%s1139 + $0x3c] sm:$0xf]
  %s1156 = scalar_lea.vmem %s5, 2
  %v1157 = vld [vmem:[%s1156] sm:$0x1]
  %v1158 = vpack.c.bf16 %v1124, %v1123
  %v1159 = vpack.c.bf16 %v1126, %v1125
  %v1160 = vpack.c.bf16 %v1128, %v1127
  %v1161 = vpack.c.bf16 %v1130, %v1129
  %v1162 = vpack.c.bf16 %v1132, %v1131
  %v1163 = vpack.c.bf16 %v1134, %v1133
  %v1164 = vpack.c.bf16 %v1136, %v1135
  %v1165 = vpack.c.bf16 %v1138, %v1137
  %1166 = vmatprep.subr.bf16.mxu0 0
  %1167 = vmatpush1.bf16.msra.mxu0 %v1165
  %1168 = vmatprep.subr.bf16.mxu0 0
  %1169 = vmatpush1.bf16.msra.mxu0 %v1164
  %1170 = vmatprep.subr.bf16.mxu0 0
  %1171 = vmatpush1.bf16.msra.mxu0 %v1163
  %1172 = vmatprep.subr.bf16.mxu0 0
  %1173 = vmatpush1.bf16.msra.mxu0 %v1162
  %1174 = vmatprep.subr.bf16.mxu0 0
  %1175 = vmatpush1.bf16.msra.mxu0 %v1161
  %1176 = vmatprep.subr.bf16.mxu0 0
  %1177 = vmatpush1.bf16.msra.mxu0 %v1160
  %1178 = vmatprep.subr.bf16.mxu0 0
  %1179 = vmatpush1.bf16.msra.mxu0 %v1159
  %1180 = vmatprep.subr.bf16.mxu0 0
  %1181 = vmatpush1.bf16.msra.mxu0 %v1158
  %1182 = vmatprep.subr.bf16.mxu0 0
  %1183 = vmatpush2.bf16.msra.mxu0 0
  %1184 = vmatprep.subr.bf16.mxu0 0
  %1185 = vmatpush2.bf16.msra.mxu0 0
  %1186 = vmatprep.subr.bf16.mxu0 0
  %1187 = vmatpush2.bf16.msra.mxu0 0
  %1188 = vmatprep.subr.bf16.mxu0 0
  %1189 = vmatpush2.bf16.msra.mxu0 0
  %1190 = vmatprep.subr.bf16.mxu0 0
  %1191 = vmatpush2.bf16.msra.mxu0 0
  %1192 = vmatprep.subr.bf16.mxu0 0
  %1193 = vmatpush2.bf16.msra.mxu0 0
  %1194 = vmatprep.subr.bf16.mxu0 0
  %1195 = vmatpush2.bf16.msra.mxu0 0
  %1196 = vmatprep.subr.bf16.mxu0 0
  %1197 = vmatpush2.bf16.msra.mxu0 0
  %1198 = vmatprep.mubr.bf16.mxu0 0
  %1199 = vmatmul.mubr.bf16.gmra.mxu0 %v94
  %v1200 = vpop.f32.mrf.mxu0
  %v1201 = vadd.f32 0.0, %v1200
  %v1202 = vpop.f32.mrf.mxu0
  %v1203 = vpop.f32.mrf.mxu0
  %v1204 = vadd.f32 0.0, %v1203
  %v1205 = vpop.f32.mrf.mxu0
  %1206 = vmatprep.mubr.bf16.mxu0 0
  %1207 = vmatmul.mubr.bf16.gmra.mxu0 %v95
  %v1208 = vpop.f32.mrf.mxu0
  %v1209 = vadd.f32 0.0, %v1208
  %v1210 = vpop.f32.mrf.mxu0
  %v1211 = vpop.f32.mrf.mxu0
  %v1212 = vadd.f32 0.0, %v1211
  %v1213 = vpop.f32.mrf.mxu0
  %1214 = vmatprep.mubr.bf16.mxu0 0
  %1215 = vmatmul.mubr.bf16.gmra.mxu0 %v96
  %v1216 = vpop.f32.mrf.mxu0
  %v1217 = vadd.f32 0.0, %v1216
  %v1218 = vpop.f32.mrf.mxu0
  %v1219 = vpop.f32.mrf.mxu0
  %v1220 = vadd.f32 0.0, %v1219
  %v1221 = vpop.f32.mrf.mxu0
  %1222 = vmatprep.mubr.bf16.mxu0 0
  %1223 = vmatmul.mubr.bf16.gmra.mxu0 %v97
  %v1224 = vpop.f32.mrf.mxu0
  %v1225 = vadd.f32 0.0, %v1224
  %v1226 = vpop.f32.mrf.mxu0
  %v1227 = vpop.f32.mrf.mxu0
  %v1228 = vadd.f32 0.0, %v1227
  %v1229 = vpop.f32.mrf.mxu0
  %1230 = vmatprep.mubr.bf16.mxu0 0
  %1231 = vmatmul.mubr.bf16.gmra.mxu0 %v98
  %v1232 = vpop.f32.mrf.mxu0
  %v1233 = vadd.f32 0.0, %v1232
  %v1234 = vpop.f32.mrf.mxu0
  %v1235 = vpop.f32.mrf.mxu0
  %v1236 = vadd.f32 0.0, %v1235
  %v1237 = vpop.f32.mrf.mxu0
  %1238 = vmatprep.mubr.bf16.mxu0 0
  %1239 = vmatmul.mubr.bf16.gmra.mxu0 %v99
  %v1240 = vpop.f32.mrf.mxu0
  %v1241 = vadd.f32 0.0, %v1240
  %v1242 = vpop.f32.mrf.mxu0
  %v1243 = vpop.f32.mrf.mxu0
  %v1244 = vadd.f32 0.0, %v1243
  %v1245 = vpop.f32.mrf.mxu0
  %1246 = vmatprep.mubr.bf16.mxu0 0
  %1247 = vmatmul.mubr.bf16.gmra.mxu0 %v100
  %v1248 = vpop.f32.mrf.mxu0
  %v1249 = vadd.f32 0.0, %v1248
  %v1250 = vpop.f32.mrf.mxu0
  %v1251 = vpop.f32.mrf.mxu0
  %v1252 = vadd.f32 0.0, %v1251
  %v1253 = vpop.f32.mrf.mxu0
  %1254 = vmatprep.mubr.bf16.mxu0 0
  %1255 = vmatmul.mubr.bf16.gmra.mxu0 %v101
  %v1256 = vpop.f32.mrf.mxu0
  %v1257 = vadd.f32 0.0, %v1256
  %v1258 = vpop.f32.mrf.mxu0
  %v1259 = vpop.f32.mrf.mxu0
  %v1260 = vadd.f32 0.0, %v1259
  %v1261 = vpop.f32.mrf.mxu0
  %1262 = vdwg.mxu0
  %v1263 = vpack.c.bf16 %v1204, %v1201
  %v1264 = vpack.c.bf16 %v1212, %v1209
  %v1265 = vpack.c.bf16 %v1220, %v1217
  %v1266 = vpack.c.bf16 %v1228, %v1225
  %v1267 = vpack.c.bf16 %v1236, %v1233
  %v1268 = vpack.c.bf16 %v1244, %v1241
  %v1269 = vpack.c.bf16 %v1252, %v1249
  %v1270 = vpack.c.bf16 %v1260, %v1257
  %v1272 = vlaneseq
  %v1273 = vshrl.u32 %v1272, 7
  %v1274 = vsub.s32 0, %v1273
  %v1275 = vrot.slane %v1157, %v1274
  %v1293 = vunpack.c.l.b16 %v1140
  %v1294 = vunpack.c.l.b16 %v1141
  %v1295 = vunpack.c.l.b16 %v1142
  %v1296 = vunpack.c.l.b16 %v1143
  %v1297 = vunpack.c.l.b16 %v1144
  %v1298 = vunpack.c.l.b16 %v1145
  %v1299 = vunpack.c.l.b16 %v1146
  %v1300 = vunpack.c.l.b16 %v1147
  %v1301 = vunpack.c.l.b16 %v1148
  %v1302 = vunpack.c.l.b16 %v1149
  %v1303 = vunpack.c.l.b16 %v1150
  %v1304 = vunpack.c.l.b16 %v1151
  %v1305 = vunpack.c.l.b16 %v1152
  %v1306 = vunpack.c.l.b16 %v1153
  %v1307 = vunpack.c.l.b16 %v1154
  %v1308 = vunpack.c.l.b16 %v1155
  %v1309 = vpack.c.b16 %v1294, %v1293
  %v1310 = vpack.c.b16 %v1296, %v1295
  %v1311 = vpack.c.b16 %v1298, %v1297
  %v1312 = vpack.c.b16 %v1300, %v1299
  %v1313 = vpack.c.b16 %v1302, %v1301
  %v1314 = vpack.c.b16 %v1304, %v1303
  %v1315 = vpack.c.b16 %v1306, %v1305
  %v1316 = vpack.c.b16 %v1308, %v1307
  %1325 = vmatprep.subr.bf16.mxu0 0
  %1326 = vmatpush1.bf16.msra.mxu0 %v1316
  %1327 = vmatprep.subr.bf16.mxu0 0
  %1328 = vmatpush1.bf16.msra.mxu0 %v1315
  %1329 = vmatprep.subr.bf16.mxu0 0
  %1330 = vmatpush1.bf16.msra.mxu0 %v1314
  %1331 = vmatprep.subr.bf16.mxu0 0
  %1332 = vmatpush1.bf16.msra.mxu0 %v1313
  %1333 = vmatprep.subr.bf16.mxu0 0
  %1334 = vmatpush1.bf16.msra.mxu0 %v1312
  %1335 = vmatprep.subr.bf16.mxu0 0
  %1336 = vmatpush1.bf16.msra.mxu0 %v1311
  %1337 = vmatprep.subr.bf16.mxu0 0
  %1338 = vmatpush1.bf16.msra.mxu0 %v1310
  %1339 = vmatprep.subr.bf16.mxu0 0
  %1340 = vmatpush1.bf16.msra.mxu0 %v1309
  %1341 = vmatprep.subr.bf16.mxu0 0
  %1342 = vmatpush2.bf16.msra.mxu0 0
  %1343 = vmatprep.subr.bf16.mxu0 0
  %1344 = vmatpush2.bf16.msra.mxu0 0
  %1345 = vmatprep.subr.bf16.mxu0 0
  %1346 = vmatpush2.bf16.msra.mxu0 0
  %1347 = vmatprep.subr.bf16.mxu0 0
  %1348 = vmatpush2.bf16.msra.mxu0 0
  %1349 = vmatprep.subr.bf16.mxu0 0
  %1350 = vmatpush2.bf16.msra.mxu0 0
  %1351 = vmatprep.subr.bf16.mxu0 0
  %1352 = vmatpush2.bf16.msra.mxu0 0
  %1353 = vmatprep.subr.bf16.mxu0 0
  %1354 = vmatpush2.bf16.msra.mxu0 0
  %1355 = vmatprep.subr.bf16.mxu0 0
  %1356 = vmatpush2.bf16.msra.mxu0 0
  %1357 = vmatprep.mubr.bf16.mxu0 0
  %1358 = vmatmul.mubr.bf16.gmra.mxu0 %v1263
  %v1359 = vpop.f32.mrf.mxu0
  %v1360 = vadd.f32 %v1275, %v1359
  %v1361 = vpop.f32.mrf.mxu0
  %v1362 = vpop.f32.mrf.mxu0
  %v1363 = vadd.f32 %v1275, %v1362
  %v1364 = vpop.f32.mrf.mxu0
  %1365 = vmatprep.mubr.bf16.mxu0 0
  %1366 = vmatmul.mubr.bf16.gmra.mxu0 %v1264
  %v1367 = vpop.f32.mrf.mxu0
  %v1368 = vadd.f32 %v1275, %v1367
  %v1369 = vpop.f32.mrf.mxu0
  %v1370 = vpop.f32.mrf.mxu0
  %v1371 = vadd.f32 %v1275, %v1370
  %v1372 = vpop.f32.mrf.mxu0
  %1373 = vmatprep.mubr.bf16.mxu0 0
  %1374 = vmatmul.mubr.bf16.gmra.mxu0 %v1265
  %v1375 = vpop.f32.mrf.mxu0
  %v1376 = vadd.f32 %v1275, %v1375
  %v1377 = vpop.f32.mrf.mxu0
  %v1378 = vpop.f32.mrf.mxu0
  %v1379 = vadd.f32 %v1275, %v1378
  %v1380 = vpop.f32.mrf.mxu0
  %1381 = vmatprep.mubr.bf16.mxu0 0
  %1382 = vmatmul.mubr.bf16.gmra.mxu0 %v1266
  %v1383 = vpop.f32.mrf.mxu0
  %v1384 = vadd.f32 %v1275, %v1383
  %v1385 = vpop.f32.mrf.mxu0
  %v1386 = vpop.f32.mrf.mxu0
  %v1387 = vadd.f32 %v1275, %v1386
  %v1388 = vpop.f32.mrf.mxu0
  %1389 = vmatprep.mubr.bf16.mxu0 0
  %1390 = vmatmul.mubr.bf16.gmra.mxu0 %v1267
  %v1391 = vpop.f32.mrf.mxu0
  %v1392 = vadd.f32 %v1275, %v1391
  %v1393 = vpop.f32.mrf.mxu0
  %v1394 = vpop.f32.mrf.mxu0
  %v1395 = vadd.f32 %v1275, %v1394
  %v1396 = vpop.f32.mrf.mxu0
  %1397 = vmatprep.mubr.bf16.mxu0 0
  %1398 = vmatmul.mubr.bf16.gmra.mxu0 %v1268
  %v1399 = vpop.f32.mrf.mxu0
  %v1400 = vadd.f32 %v1275, %v1399
  %v1401 = vpop.f32.mrf.mxu0
  %v1402 = vpop.f32.mrf.mxu0
  %v1403 = vadd.f32 %v1275, %v1402
  %v1404 = vpop.f32.mrf.mxu0
  %1405 = vmatprep.mubr.bf16.mxu0 0
  %1406 = vmatmul.mubr.bf16.gmra.mxu0 %v1269
  %v1407 = vpop.f32.mrf.mxu0
  %v1408 = vadd.f32 %v1275, %v1407
  %v1409 = vpop.f32.mrf.mxu0
  %v1410 = vpop.f32.mrf.mxu0
  %v1411 = vadd.f32 %v1275, %v1410
  %v1412 = vpop.f32.mrf.mxu0
  %1413 = vmatprep.mubr.bf16.mxu0 0
  %1414 = vmatmul.mubr.bf16.gmra.mxu0 %v1270
  %v1415 = vpop.f32.mrf.mxu0
  %v1416 = vadd.f32 %v1275, %v1415
  %v1417 = vpop.f32.mrf.mxu0
  %v1418 = vpop.f32.mrf.mxu0
  %v1419 = vadd.f32 %v1275, %v1418
  %v1420 = vpop.f32.mrf.mxu0
  %1421 = vdwg.mxu0
  %vm1422 = vcmp.gt.f32.partialorder %v1360, 0.0
  %vm1423 = vcmp.gt.f32.partialorder %v1363, 0.0
  %vm1424 = vcmp.gt.f32.partialorder %v1368, 0.0
  %vm1425 = vcmp.gt.f32.partialorder %v1371, 0.0
  %vm1426 = vcmp.gt.f32.partialorder %v1376, 0.0
  %vm1427 = vcmp.gt.f32.partialorder %v1379, 0.0
  %vm1428 = vcmp.gt.f32.partialorder %v1384, 0.0
  %vm1429 = vcmp.gt.f32.partialorder %v1387, 0.0
  %vm1430 = vcmp.gt.f32.partialorder %v1392, 0.0
  %vm1431 = vcmp.gt.f32.partialorder %v1395, 0.0
  %vm1432 = vcmp.gt.f32.partialorder %v1400, 0.0
  %vm1433 = vcmp.gt.f32.partialorder %v1403, 0.0
  %vm1434 = vcmp.gt.f32.partialorder %v1408, 0.0
  %vm1435 = vcmp.gt.f32.partialorder %v1411, 0.0
  %vm1436 = vcmp.gt.f32.partialorder %v1416, 0.0
  %vm1437 = vcmp.gt.f32.partialorder %v1419, 0.0
  %v1438 = vmul.f32 %v1360, 0.01
  %v1439 = vmul.f32 %v1363, 0.01
  %v1440 = vmul.f32 %v1368, 0.01
  %v1441 = vmul.f32 %v1371, 0.01
  %v1442 = vmul.f32 %v1376, 0.01
  %v1443 = vmul.f32 %v1379, 0.01
  %v1444 = vmul.f32 %v1384, 0.01
  %v1445 = vmul.f32 %v1387, 0.01
  %v1446 = vmul.f32 %v1392, 0.01
  %v1447 = vmul.f32 %v1395, 0.01
  %v1448 = vmul.f32 %v1400, 0.01
  %v1449 = vmul.f32 %v1403, 0.01
  %v1450 = vmul.f32 %v1408, 0.01
  %v1451 = vmul.f32 %v1411, 0.01
  %v1452 = vmul.f32 %v1416, 0.01
  %v1453 = vmul.f32 %v1419, 0.01
  %v1454 = vsel %vm1422, %v1360, %v1438
  %v1455 = vsel %vm1423, %v1363, %v1439
  %v1456 = vsel %vm1424, %v1368, %v1440
  %v1457 = vsel %vm1425, %v1371, %v1441
  %v1458 = vsel %vm1426, %v1376, %v1442
  %v1459 = vsel %vm1427, %v1379, %v1443
  %v1460 = vsel %vm1428, %v1384, %v1444
  %v1461 = vsel %vm1429, %v1387, %v1445
  %v1462 = vsel %vm1430, %v1392, %v1446
  %v1463 = vsel %vm1431, %v1395, %v1447
  %v1464 = vsel %vm1432, %v1400, %v1448
  %v1465 = vsel %vm1433, %v1403, %v1449
  %v1466 = vsel %vm1434, %v1408, %v1450
  %v1467 = vsel %vm1435, %v1411, %v1451
  %v1468 = vsel %vm1436, %v1416, %v1452
  %v1469 = vsel %vm1437, %v1419, %v1453
  %s1470 = scalar_lea.vmem %s4, 192
  %v1471 = vld [vmem:[%s1470] sm:$0xf]
  %v1472 = vld [vmem:[%s1470 + $0x4] sm:$0xf]
  %v1473 = vld [vmem:[%s1470 + $0x8] sm:$0xf]
  %v1474 = vld [vmem:[%s1470 + $0xc] sm:$0xf]
  %v1475 = vld [vmem:[%s1470 + $0x10] sm:$0xf]
  %v1476 = vld [vmem:[%s1470 + $0x14] sm:$0xf]
  %v1477 = vld [vmem:[%s1470 + $0x18] sm:$0xf]
  %v1478 = vld [vmem:[%s1470 + $0x1c] sm:$0xf]
  %v1479 = vld [vmem:[%s1470 + $0x20] sm:$0xf]
  %v1480 = vld [vmem:[%s1470 + $0x24] sm:$0xf]
  %v1481 = vld [vmem:[%s1470 + $0x28] sm:$0xf]
  %v1482 = vld [vmem:[%s1470 + $0x2c] sm:$0xf]
  %v1483 = vld [vmem:[%s1470 + $0x30] sm:$0xf]
  %v1484 = vld [vmem:[%s1470 + $0x34] sm:$0xf]
  %v1485 = vld [vmem:[%s1470 + $0x38] sm:$0xf]
  %v1486 = vld [vmem:[%s1470 + $0x3c] sm:$0xf]
  %s1487 = scalar_lea.vmem %s5, 3
  %v1488 = vld [vmem:[%s1487] sm:$0x1]
  %v1489 = vpack.c.bf16 %v1455, %v1454
  %v1490 = vpack.c.bf16 %v1457, %v1456
  %v1491 = vpack.c.bf16 %v1459, %v1458
  %v1492 = vpack.c.bf16 %v1461, %v1460
  %v1493 = vpack.c.bf16 %v1463, %v1462
  %v1494 = vpack.c.bf16 %v1465, %v1464
  %v1495 = vpack.c.bf16 %v1467, %v1466
  %v1496 = vpack.c.bf16 %v1469, %v1468
  %1497 = vmatprep.subr.bf16.mxu0 0
  %1498 = vmatpush1.bf16.msra.mxu0 %v1496
  %1499 = vmatprep.subr.bf16.mxu0 0
  %1500 = vmatpush1.bf16.msra.mxu0 %v1495
  %1501 = vmatprep.subr.bf16.mxu0 0
  %1502 = vmatpush1.bf16.msra.mxu0 %v1494
  %1503 = vmatprep.subr.bf16.mxu0 0
  %1504 = vmatpush1.bf16.msra.mxu0 %v1493
  %1505 = vmatprep.subr.bf16.mxu0 0
  %1506 = vmatpush1.bf16.msra.mxu0 %v1492
  %1507 = vmatprep.subr.bf16.mxu0 0
  %1508 = vmatpush1.bf16.msra.mxu0 %v1491
  %1509 = vmatprep.subr.bf16.mxu0 0
  %1510 = vmatpush1.bf16.msra.mxu0 %v1490
  %1511 = vmatprep.subr.bf16.mxu0 0
  %1512 = vmatpush1.bf16.msra.mxu0 %v1489
  %1513 = vmatprep.subr.bf16.mxu0 0
  %1514 = vmatpush2.bf16.msra.mxu0 0
  %1515 = vmatprep.subr.bf16.mxu0 0
  %1516 = vmatpush2.bf16.msra.mxu0 0
  %1517 = vmatprep.subr.bf16.mxu0 0
  %1518 = vmatpush2.bf16.msra.mxu0 0
  %1519 = vmatprep.subr.bf16.mxu0 0
  %1520 = vmatpush2.bf16.msra.mxu0 0
  %1521 = vmatprep.subr.bf16.mxu0 0
  %1522 = vmatpush2.bf16.msra.mxu0 0
  %1523 = vmatprep.subr.bf16.mxu0 0
  %1524 = vmatpush2.bf16.msra.mxu0 0
  %1525 = vmatprep.subr.bf16.mxu0 0
  %1526 = vmatpush2.bf16.msra.mxu0 0
  %1527 = vmatprep.subr.bf16.mxu0 0
  %1528 = vmatpush2.bf16.msra.mxu0 0
  %1529 = vmatprep.mubr.bf16.mxu0 0
  %1530 = vmatmul.mubr.bf16.gmra.mxu0 %v94
  %v1531 = vpop.f32.mrf.mxu0
  %v1532 = vadd.f32 0.0, %v1531
  %v1533 = vpop.f32.mrf.mxu0
  %v1534 = vpop.f32.mrf.mxu0
  %v1535 = vadd.f32 0.0, %v1534
  %v1536 = vpop.f32.mrf.mxu0
  %1537 = vmatprep.mubr.bf16.mxu0 0
  %1538 = vmatmul.mubr.bf16.gmra.mxu0 %v95
  %v1539 = vpop.f32.mrf.mxu0
  %v1540 = vadd.f32 0.0, %v1539
  %v1541 = vpop.f32.mrf.mxu0
  %v1542 = vpop.f32.mrf.mxu0
  %v1543 = vadd.f32 0.0, %v1542
  %v1544 = vpop.f32.mrf.mxu0
  %1545 = vmatprep.mubr.bf16.mxu0 0
  %1546 = vmatmul.mubr.bf16.gmra.mxu0 %v96
  %v1547 = vpop.f32.mrf.mxu0
  %v1548 = vadd.f32 0.0, %v1547
  %v1549 = vpop.f32.mrf.mxu0
  %v1550 = vpop.f32.mrf.mxu0
  %v1551 = vadd.f32 0.0, %v1550
  %v1552 = vpop.f32.mrf.mxu0
  %1553 = vmatprep.mubr.bf16.mxu0 0
  %1554 = vmatmul.mubr.bf16.gmra.mxu0 %v97
  %v1555 = vpop.f32.mrf.mxu0
  %v1556 = vadd.f32 0.0, %v1555
  %v1557 = vpop.f32.mrf.mxu0
  %v1558 = vpop.f32.mrf.mxu0
  %v1559 = vadd.f32 0.0, %v1558
  %v1560 = vpop.f32.mrf.mxu0
  %1561 = vmatprep.mubr.bf16.mxu0 0
  %1562 = vmatmul.mubr.bf16.gmra.mxu0 %v98
  %v1563 = vpop.f32.mrf.mxu0
  %v1564 = vadd.f32 0.0, %v1563
  %v1565 = vpop.f32.mrf.mxu0
  %v1566 = vpop.f32.mrf.mxu0
  %v1567 = vadd.f32 0.0, %v1566
  %v1568 = vpop.f32.mrf.mxu0
  %1569 = vmatprep.mubr.bf16.mxu0 0
  %1570 = vmatmul.mubr.bf16.gmra.mxu0 %v99
  %v1571 = vpop.f32.mrf.mxu0
  %v1572 = vadd.f32 0.0, %v1571
  %v1573 = vpop.f32.mrf.mxu0
  %v1574 = vpop.f32.mrf.mxu0
  %v1575 = vadd.f32 0.0, %v1574
  %v1576 = vpop.f32.mrf.mxu0
  %1577 = vmatprep.mubr.bf16.mxu0 0
  %1578 = vmatmul.mubr.bf16.gmra.mxu0 %v100
  %v1579 = vpop.f32.mrf.mxu0
  %v1580 = vadd.f32 0.0, %v1579
  %v1581 = vpop.f32.mrf.mxu0
  %v1582 = vpop.f32.mrf.mxu0
  %v1583 = vadd.f32 0.0, %v1582
  %v1584 = vpop.f32.mrf.mxu0
  %1585 = vmatprep.mubr.bf16.mxu0 0
  %1586 = vmatmul.mubr.bf16.gmra.mxu0 %v101
  %v1587 = vpop.f32.mrf.mxu0
  %v1588 = vadd.f32 0.0, %v1587
  %v1589 = vpop.f32.mrf.mxu0
  %v1590 = vpop.f32.mrf.mxu0
  %v1591 = vadd.f32 0.0, %v1590
  %v1592 = vpop.f32.mrf.mxu0
  %1593 = vdwg.mxu0
  %v1594 = vpack.c.bf16 %v1535, %v1532
  %v1595 = vpack.c.bf16 %v1543, %v1540
  %v1596 = vpack.c.bf16 %v1551, %v1548
  %v1597 = vpack.c.bf16 %v1559, %v1556
  %v1598 = vpack.c.bf16 %v1567, %v1564
  %v1599 = vpack.c.bf16 %v1575, %v1572
  %v1600 = vpack.c.bf16 %v1583, %v1580
  %v1601 = vpack.c.bf16 %v1591, %v1588
  %v1603 = vlaneseq
  %v1604 = vshrl.u32 %v1603, 7
  %v1605 = vsub.s32 0, %v1604
  %v1606 = vrot.slane %v1488, %v1605
  %v1624 = vunpack.c.l.b16 %v1471
  %v1625 = vunpack.c.l.b16 %v1472
  %v1626 = vunpack.c.l.b16 %v1473
  %v1627 = vunpack.c.l.b16 %v1474
  %v1628 = vunpack.c.l.b16 %v1475
  %v1629 = vunpack.c.l.b16 %v1476
  %v1630 = vunpack.c.l.b16 %v1477
  %v1631 = vunpack.c.l.b16 %v1478
  %v1632 = vunpack.c.l.b16 %v1479
  %v1633 = vunpack.c.l.b16 %v1480
  %v1634 = vunpack.c.l.b16 %v1481
  %v1635 = vunpack.c.l.b16 %v1482
  %v1636 = vunpack.c.l.b16 %v1483
  %v1637 = vunpack.c.l.b16 %v1484
  %v1638 = vunpack.c.l.b16 %v1485
  %v1639 = vunpack.c.l.b16 %v1486
  %v1640 = vpack.c.b16 %v1625, %v1624
  %v1641 = vpack.c.b16 %v1627, %v1626
  %v1642 = vpack.c.b16 %v1629, %v1628
  %v1643 = vpack.c.b16 %v1631, %v1630
  %v1644 = vpack.c.b16 %v1633, %v1632
  %v1645 = vpack.c.b16 %v1635, %v1634
  %v1646 = vpack.c.b16 %v1637, %v1636
  %v1647 = vpack.c.b16 %v1639, %v1638
  %1656 = vmatprep.subr.bf16.mxu0 0
  %1657 = vmatpush1.bf16.msra.mxu0 %v1647
  %1658 = vmatprep.subr.bf16.mxu0 0
  %1659 = vmatpush1.bf16.msra.mxu0 %v1646
  %1660 = vmatprep.subr.bf16.mxu0 0
  %1661 = vmatpush1.bf16.msra.mxu0 %v1645
  %1662 = vmatprep.subr.bf16.mxu0 0
  %1663 = vmatpush1.bf16.msra.mxu0 %v1644
  %1664 = vmatprep.subr.bf16.mxu0 0
  %1665 = vmatpush1.bf16.msra.mxu0 %v1643
  %1666 = vmatprep.subr.bf16.mxu0 0
  %1667 = vmatpush1.bf16.msra.mxu0 %v1642
  %1668 = vmatprep.subr.bf16.mxu0 0
  %1669 = vmatpush1.bf16.msra.mxu0 %v1641
  %1670 = vmatprep.subr.bf16.mxu0 0
  %1671 = vmatpush1.bf16.msra.mxu0 %v1640
  %1672 = vmatprep.subr.bf16.mxu0 0
  %1673 = vmatpush2.bf16.msra.mxu0 0
  %1674 = vmatprep.subr.bf16.mxu0 0
  %1675 = vmatpush2.bf16.msra.mxu0 0
  %1676 = vmatprep.subr.bf16.mxu0 0
  %1677 = vmatpush2.bf16.msra.mxu0 0
  %1678 = vmatprep.subr.bf16.mxu0 0
  %1679 = vmatpush2.bf16.msra.mxu0 0
  %1680 = vmatprep.subr.bf16.mxu0 0
  %1681 = vmatpush2.bf16.msra.mxu0 0
  %1682 = vmatprep.subr.bf16.mxu0 0
  %1683 = vmatpush2.bf16.msra.mxu0 0
  %1684 = vmatprep.subr.bf16.mxu0 0
  %1685 = vmatpush2.bf16.msra.mxu0 0
  %1686 = vmatprep.subr.bf16.mxu0 0
  %1687 = vmatpush2.bf16.msra.mxu0 0
  %1688 = vmatprep.mubr.bf16.mxu0 0
  %1689 = vmatmul.mubr.bf16.gmra.mxu0 %v1594
  %v1690 = vpop.f32.mrf.mxu0
  %v1691 = vadd.f32 %v1606, %v1690
  %v1692 = vpop.f32.mrf.mxu0
  %v1693 = vpop.f32.mrf.mxu0
  %v1694 = vadd.f32 %v1606, %v1693
  %v1695 = vpop.f32.mrf.mxu0
  %1696 = vmatprep.mubr.bf16.mxu0 0
  %1697 = vmatmul.mubr.bf16.gmra.mxu0 %v1595
  %v1698 = vpop.f32.mrf.mxu0
  %v1699 = vadd.f32 %v1606, %v1698
  %v1700 = vpop.f32.mrf.mxu0
  %v1701 = vpop.f32.mrf.mxu0
  %v1702 = vadd.f32 %v1606, %v1701
  %v1703 = vpop.f32.mrf.mxu0
  %1704 = vmatprep.mubr.bf16.mxu0 0
  %1705 = vmatmul.mubr.bf16.gmra.mxu0 %v1596
  %v1706 = vpop.f32.mrf.mxu0
  %v1707 = vadd.f32 %v1606, %v1706
  %v1708 = vpop.f32.mrf.mxu0
  %v1709 = vpop.f32.mrf.mxu0
  %v1710 = vadd.f32 %v1606, %v1709
  %v1711 = vpop.f32.mrf.mxu0
  %1712 = vmatprep.mubr.bf16.mxu0 0
  %1713 = vmatmul.mubr.bf16.gmra.mxu0 %v1597
  %v1714 = vpop.f32.mrf.mxu0
  %v1715 = vadd.f32 %v1606, %v1714
  %v1716 = vpop.f32.mrf.mxu0
  %v1717 = vpop.f32.mrf.mxu0
  %v1718 = vadd.f32 %v1606, %v1717
  %v1719 = vpop.f32.mrf.mxu0
  %1720 = vmatprep.mubr.bf16.mxu0 0
  %1721 = vmatmul.mubr.bf16.gmra.mxu0 %v1598
  %v1722 = vpop.f32.mrf.mxu0
  %v1723 = vadd.f32 %v1606, %v1722
  %v1724 = vpop.f32.mrf.mxu0
  %v1725 = vpop.f32.mrf.mxu0
  %v1726 = vadd.f32 %v1606, %v1725
  %v1727 = vpop.f32.mrf.mxu0
  %1728 = vmatprep.mubr.bf16.mxu0 0
  %1729 = vmatmul.mubr.bf16.gmra.mxu0 %v1599
  %v1730 = vpop.f32.mrf.mxu0
  %v1731 = vadd.f32 %v1606, %v1730
  %v1732 = vpop.f32.mrf.mxu0
  %v1733 = vpop.f32.mrf.mxu0
  %v1734 = vadd.f32 %v1606, %v1733
  %v1735 = vpop.f32.mrf.mxu0
  %1736 = vmatprep.mubr.bf16.mxu0 0
  %1737 = vmatmul.mubr.bf16.gmra.mxu0 %v1600
  %v1738 = vpop.f32.mrf.mxu0
  %v1739 = vadd.f32 %v1606, %v1738
  %v1740 = vpop.f32.mrf.mxu0
  %v1741 = vpop.f32.mrf.mxu0
  %v1742 = vadd.f32 %v1606, %v1741
  %v1743 = vpop.f32.mrf.mxu0
  %1744 = vmatprep.mubr.bf16.mxu0 0
  %1745 = vmatmul.mubr.bf16.gmra.mxu0 %v1601
  %v1746 = vpop.f32.mrf.mxu0
  %v1747 = vadd.f32 %v1606, %v1746
  %v1748 = vpop.f32.mrf.mxu0
  %v1749 = vpop.f32.mrf.mxu0
  %v1750 = vadd.f32 %v1606, %v1749
  %v1751 = vpop.f32.mrf.mxu0
  %1752 = vdwg.mxu0
  %vm1753 = vcmp.gt.f32.partialorder %v1691, 0.0
  %vm1754 = vcmp.gt.f32.partialorder %v1694, 0.0
  %vm1755 = vcmp.gt.f32.partialorder %v1699, 0.0
  %vm1756 = vcmp.gt.f32.partialorder %v1702, 0.0
  %vm1757 = vcmp.gt.f32.partialorder %v1707, 0.0
  %vm1758 = vcmp.gt.f32.partialorder %v1710, 0.0
  %vm1759 = vcmp.gt.f32.partialorder %v1715, 0.0
  %vm1760 = vcmp.gt.f32.partialorder %v1718, 0.0
  %vm1761 = vcmp.gt.f32.partialorder %v1723, 0.0
  %vm1762 = vcmp.gt.f32.partialorder %v1726, 0.0
  %vm1763 = vcmp.gt.f32.partialorder %v1731, 0.0
  %vm1764 = vcmp.gt.f32.partialorder %v1734, 0.0
  %vm1765 = vcmp.gt.f32.partialorder %v1739, 0.0
  %vm1766 = vcmp.gt.f32.partialorder %v1742, 0.0
  %vm1767 = vcmp.gt.f32.partialorder %v1747, 0.0
  %vm1768 = vcmp.gt.f32.partialorder %v1750, 0.0
  %v1769 = vmul.f32 %v1691, 0.01
  %v1770 = vmul.f32 %v1694, 0.01
  %v1771 = vmul.f32 %v1699, 0.01
  %v1772 = vmul.f32 %v1702, 0.01
  %v1773 = vmul.f32 %v1707, 0.01
  %v1774 = vmul.f32 %v1710, 0.01
  %v1775 = vmul.f32 %v1715, 0.01
  %v1776 = vmul.f32 %v1718, 0.01
  %v1777 = vmul.f32 %v1723, 0.01
  %v1778 = vmul.f32 %v1726, 0.01
  %v1779 = vmul.f32 %v1731, 0.01
  %v1780 = vmul.f32 %v1734, 0.01
  %v1781 = vmul.f32 %v1739, 0.01
  %v1782 = vmul.f32 %v1742, 0.01
  %v1783 = vmul.f32 %v1747, 0.01
  %v1784 = vmul.f32 %v1750, 0.01
  %v1785 = vsel %vm1753, %v1691, %v1769
  %v1786 = vsel %vm1754, %v1694, %v1770
  %v1787 = vsel %vm1755, %v1699, %v1771
  %v1788 = vsel %vm1756, %v1702, %v1772
  %v1789 = vsel %vm1757, %v1707, %v1773
  %v1790 = vsel %vm1758, %v1710, %v1774
  %v1791 = vsel %vm1759, %v1715, %v1775
  %v1792 = vsel %vm1760, %v1718, %v1776
  %v1793 = vsel %vm1761, %v1723, %v1777
  %v1794 = vsel %vm1762, %v1726, %v1778
  %v1795 = vsel %vm1763, %v1731, %v1779
  %v1796 = vsel %vm1764, %v1734, %v1780
  %v1797 = vsel %vm1765, %v1739, %v1781
  %v1798 = vsel %vm1766, %v1742, %v1782
  %v1799 = vsel %vm1767, %v1747, %v1783
  %v1800 = vsel %vm1768, %v1750, %v1784
  %s1801 = scalar_lea.vmem %s4, 256
  %v1802 = vld [vmem:[%s1801] sm:$0xf]
  %v1803 = vld [vmem:[%s1801 + $0x4] sm:$0xf]
  %v1804 = vld [vmem:[%s1801 + $0x8] sm:$0xf]
  %v1805 = vld [vmem:[%s1801 + $0xc] sm:$0xf]
  %v1806 = vld [vmem:[%s1801 + $0x10] sm:$0xf]
  %v1807 = vld [vmem:[%s1801 + $0x14] sm:$0xf]
  %v1808 = vld [vmem:[%s1801 + $0x18] sm:$0xf]
  %v1809 = vld [vmem:[%s1801 + $0x1c] sm:$0xf]
  %v1810 = vld [vmem:[%s1801 + $0x20] sm:$0xf]
  %v1811 = vld [vmem:[%s1801 + $0x24] sm:$0xf]
  %v1812 = vld [vmem:[%s1801 + $0x28] sm:$0xf]
  %v1813 = vld [vmem:[%s1801 + $0x2c] sm:$0xf]
  %v1814 = vld [vmem:[%s1801 + $0x30] sm:$0xf]
  %v1815 = vld [vmem:[%s1801 + $0x34] sm:$0xf]
  %v1816 = vld [vmem:[%s1801 + $0x38] sm:$0xf]
  %v1817 = vld [vmem:[%s1801 + $0x3c] sm:$0xf]
  %s1818 = scalar_lea.vmem %s5, 4
  %v1819 = vld [vmem:[%s1818] sm:$0x1]
  %v1820 = vpack.c.bf16 %v1786, %v1785
  %v1821 = vpack.c.bf16 %v1788, %v1787
  %v1822 = vpack.c.bf16 %v1790, %v1789
  %v1823 = vpack.c.bf16 %v1792, %v1791
  %v1824 = vpack.c.bf16 %v1794, %v1793
  %v1825 = vpack.c.bf16 %v1796, %v1795
  %v1826 = vpack.c.bf16 %v1798, %v1797
  %v1827 = vpack.c.bf16 %v1800, %v1799
  %1828 = vmatprep.subr.bf16.mxu0 0
  %1829 = vmatpush1.bf16.msra.mxu0 %v1827
  %1830 = vmatprep.subr.bf16.mxu0 0
  %1831 = vmatpush1.bf16.msra.mxu0 %v1826
  %1832 = vmatprep.subr.bf16.mxu0 0
  %1833 = vmatpush1.bf16.msra.mxu0 %v1825
  %1834 = vmatprep.subr.bf16.mxu0 0
  %1835 = vmatpush1.bf16.msra.mxu0 %v1824
  %1836 = vmatprep.subr.bf16.mxu0 0
  %1837 = vmatpush1.bf16.msra.mxu0 %v1823
  %1838 = vmatprep.subr.bf16.mxu0 0
  %1839 = vmatpush1.bf16.msra.mxu0 %v1822
  %1840 = vmatprep.subr.bf16.mxu0 0
  %1841 = vmatpush1.bf16.msra.mxu0 %v1821
  %1842 = vmatprep.subr.bf16.mxu0 0
  %1843 = vmatpush1.bf16.msra.mxu0 %v1820
  %1844 = vmatprep.subr.bf16.mxu0 0
  %1845 = vmatpush2.bf16.msra.mxu0 0
  %1846 = vmatprep.subr.bf16.mxu0 0
  %1847 = vmatpush2.bf16.msra.mxu0 0
  %1848 = vmatprep.subr.bf16.mxu0 0
  %1849 = vmatpush2.bf16.msra.mxu0 0
  %1850 = vmatprep.subr.bf16.mxu0 0
  %1851 = vmatpush2.bf16.msra.mxu0 0
  %1852 = vmatprep.subr.bf16.mxu0 0
  %1853 = vmatpush2.bf16.msra.mxu0 0
  %1854 = vmatprep.subr.bf16.mxu0 0
  %1855 = vmatpush2.bf16.msra.mxu0 0
  %1856 = vmatprep.subr.bf16.mxu0 0
  %1857 = vmatpush2.bf16.msra.mxu0 0
  %1858 = vmatprep.subr.bf16.mxu0 0
  %1859 = vmatpush2.bf16.msra.mxu0 0
  %1860 = vmatprep.mubr.bf16.mxu0 0
  %1861 = vmatmul.mubr.bf16.gmra.mxu0 %v94
  %v1862 = vpop.f32.mrf.mxu0
  %v1863 = vadd.f32 0.0, %v1862
  %v1864 = vpop.f32.mrf.mxu0
  %v1865 = vpop.f32.mrf.mxu0
  %v1866 = vadd.f32 0.0, %v1865
  %v1867 = vpop.f32.mrf.mxu0
  %1868 = vmatprep.mubr.bf16.mxu0 0
  %1869 = vmatmul.mubr.bf16.gmra.mxu0 %v95
  %v1870 = vpop.f32.mrf.mxu0
  %v1871 = vadd.f32 0.0, %v1870
  %v1872 = vpop.f32.mrf.mxu0
  %v1873 = vpop.f32.mrf.mxu0
  %v1874 = vadd.f32 0.0, %v1873
  %v1875 = vpop.f32.mrf.mxu0
  %1876 = vmatprep.mubr.bf16.mxu0 0
  %1877 = vmatmul.mubr.bf16.gmra.mxu0 %v96
  %v1878 = vpop.f32.mrf.mxu0
  %v1879 = vadd.f32 0.0, %v1878
  %v1880 = vpop.f32.mrf.mxu0
  %v1881 = vpop.f32.mrf.mxu0
  %v1882 = vadd.f32 0.0, %v1881
  %v1883 = vpop.f32.mrf.mxu0
  %1884 = vmatprep.mubr.bf16.mxu0 0
  %1885 = vmatmul.mubr.bf16.gmra.mxu0 %v97
  %v1886 = vpop.f32.mrf.mxu0
  %v1887 = vadd.f32 0.0, %v1886
  %v1888 = vpop.f32.mrf.mxu0
  %v1889 = vpop.f32.mrf.mxu0
  %v1890 = vadd.f32 0.0, %v1889
  %v1891 = vpop.f32.mrf.mxu0
  %1892 = vmatprep.mubr.bf16.mxu0 0
  %1893 = vmatmul.mubr.bf16.gmra.mxu0 %v98
  %v1894 = vpop.f32.mrf.mxu0
  %v1895 = vadd.f32 0.0, %v1894
  %v1896 = vpop.f32.mrf.mxu0
  %v1897 = vpop.f32.mrf.mxu0
  %v1898 = vadd.f32 0.0, %v1897
  %v1899 = vpop.f32.mrf.mxu0
  %1900 = vmatprep.mubr.bf16.mxu0 0
  %1901 = vmatmul.mubr.bf16.gmra.mxu0 %v99
  %v1902 = vpop.f32.mrf.mxu0
  %v1903 = vadd.f32 0.0, %v1902
  %v1904 = vpop.f32.mrf.mxu0
  %v1905 = vpop.f32.mrf.mxu0
  %v1906 = vadd.f32 0.0, %v1905
  %v1907 = vpop.f32.mrf.mxu0
  %1908 = vmatprep.mubr.bf16.mxu0 0
  %1909 = vmatmul.mubr.bf16.gmra.mxu0 %v100
  %v1910 = vpop.f32.mrf.mxu0
  %v1911 = vadd.f32 0.0, %v1910
  %v1912 = vpop.f32.mrf.mxu0
  %v1913 = vpop.f32.mrf.mxu0
  %v1914 = vadd.f32 0.0, %v1913
  %v1915 = vpop.f32.mrf.mxu0
  %1916 = vmatprep.mubr.bf16.mxu0 0
  %1917 = vmatmul.mubr.bf16.gmra.mxu0 %v101
  %v1918 = vpop.f32.mrf.mxu0
  %v1919 = vadd.f32 0.0, %v1918
  %v1920 = vpop.f32.mrf.mxu0
  %v1921 = vpop.f32.mrf.mxu0
  %v1922 = vadd.f32 0.0, %v1921
  %v1923 = vpop.f32.mrf.mxu0
  %1924 = vdwg.mxu0
  %v1925 = vpack.c.bf16 %v1866, %v1863
  %v1926 = vpack.c.bf16 %v1874, %v1871
  %v1927 = vpack.c.bf16 %v1882, %v1879
  %v1928 = vpack.c.bf16 %v1890, %v1887
  %v1929 = vpack.c.bf16 %v1898, %v1895
  %v1930 = vpack.c.bf16 %v1906, %v1903
  %v1931 = vpack.c.bf16 %v1914, %v1911
  %v1932 = vpack.c.bf16 %v1922, %v1919
  %v1934 = vlaneseq
  %v1935 = vshrl.u32 %v1934, 7
  %v1936 = vsub.s32 0, %v1935
  %v1937 = vrot.slane %v1819, %v1936
  %v1955 = vunpack.c.l.b16 %v1802
  %v1956 = vunpack.c.l.b16 %v1803
  %v1957 = vunpack.c.l.b16 %v1804
  %v1958 = vunpack.c.l.b16 %v1805
  %v1959 = vunpack.c.l.b16 %v1806
  %v1960 = vunpack.c.l.b16 %v1807
  %v1961 = vunpack.c.l.b16 %v1808
  %v1962 = vunpack.c.l.b16 %v1809
  %v1963 = vunpack.c.l.b16 %v1810
  %v1964 = vunpack.c.l.b16 %v1811
  %v1965 = vunpack.c.l.b16 %v1812
  %v1966 = vunpack.c.l.b16 %v1813
  %v1967 = vunpack.c.l.b16 %v1814
  %v1968 = vunpack.c.l.b16 %v1815
  %v1969 = vunpack.c.l.b16 %v1816
  %v1970 = vunpack.c.l.b16 %v1817
  %v1971 = vpack.c.b16 %v1956, %v1955
  %v1972 = vpack.c.b16 %v1958, %v1957
  %v1973 = vpack.c.b16 %v1960, %v1959
  %v1974 = vpack.c.b16 %v1962, %v1961
  %v1975 = vpack.c.b16 %v1964, %v1963
  %v1976 = vpack.c.b16 %v1966, %v1965
  %v1977 = vpack.c.b16 %v1968, %v1967
  %v1978 = vpack.c.b16 %v1970, %v1969
  %1987 = vmatprep.subr.bf16.mxu0 0
  %1988 = vmatpush1.bf16.msra.mxu0 %v1978
  %1989 = vmatprep.subr.bf16.mxu0 0
  %1990 = vmatpush1.bf16.msra.mxu0 %v1977
  %1991 = vmatprep.subr.bf16.mxu0 0
  %1992 = vmatpush1.bf16.msra.mxu0 %v1976
  %1993 = vmatprep.subr.bf16.mxu0 0
  %1994 = vmatpush1.bf16.msra.mxu0 %v1975
  %1995 = vmatprep.subr.bf16.mxu0 0
  %1996 = vmatpush1.bf16.msra.mxu0 %v1974
  %1997 = vmatprep.subr.bf16.mxu0 0
  %1998 = vmatpush1.bf16.msra.mxu0 %v1973
  %1999 = vmatprep.subr.bf16.mxu0 0
  %2000 = vmatpush1.bf16.msra.mxu0 %v1972
  %2001 = vmatprep.subr.bf16.mxu0 0
  %2002 = vmatpush1.bf16.msra.mxu0 %v1971
  %2003 = vmatprep.subr.bf16.mxu0 0
  %2004 = vmatpush2.bf16.msra.mxu0 0
  %2005 = vmatprep.subr.bf16.mxu0 0
  %2006 = vmatpush2.bf16.msra.mxu0 0
  %2007 = vmatprep.subr.bf16.mxu0 0
  %2008 = vmatpush2.bf16.msra.mxu0 0
  %2009 = vmatprep.subr.bf16.mxu0 0
  %2010 = vmatpush2.bf16.msra.mxu0 0
  %2011 = vmatprep.subr.bf16.mxu0 0
  %2012 = vmatpush2.bf16.msra.mxu0 0
  %2013 = vmatprep.subr.bf16.mxu0 0
  %2014 = vmatpush2.bf16.msra.mxu0 0
  %2015 = vmatprep.subr.bf16.mxu0 0
  %2016 = vmatpush2.bf16.msra.mxu0 0
  %2017 = vmatprep.subr.bf16.mxu0 0
  %2018 = vmatpush2.bf16.msra.mxu0 0
  %2019 = vmatprep.mubr.bf16.mxu0 0
  %2020 = vmatmul.mubr.bf16.gmra.mxu0 %v1925
  %v2021 = vpop.f32.mrf.mxu0
  %v2022 = vadd.f32 %v1937, %v2021
  %v2023 = vpop.f32.mrf.mxu0
  %v2024 = vpop.f32.mrf.mxu0
  %v2025 = vadd.f32 %v1937, %v2024
  %v2026 = vpop.f32.mrf.mxu0
  %2027 = vmatprep.mubr.bf16.mxu0 0
  %2028 = vmatmul.mubr.bf16.gmra.mxu0 %v1926
  %v2029 = vpop.f32.mrf.mxu0
  %v2030 = vadd.f32 %v1937, %v2029
  %v2031 = vpop.f32.mrf.mxu0
  %v2032 = vpop.f32.mrf.mxu0
  %v2033 = vadd.f32 %v1937, %v2032
  %v2034 = vpop.f32.mrf.mxu0
  %2035 = vmatprep.mubr.bf16.mxu0 0
  %2036 = vmatmul.mubr.bf16.gmra.mxu0 %v1927
  %v2037 = vpop.f32.mrf.mxu0
  %v2038 = vadd.f32 %v1937, %v2037
  %v2039 = vpop.f32.mrf.mxu0
  %v2040 = vpop.f32.mrf.mxu0
  %v2041 = vadd.f32 %v1937, %v2040
  %v2042 = vpop.f32.mrf.mxu0
  %2043 = vmatprep.mubr.bf16.mxu0 0
  %2044 = vmatmul.mubr.bf16.gmra.mxu0 %v1928
  %v2045 = vpop.f32.mrf.mxu0
  %v2046 = vadd.f32 %v1937, %v2045
  %v2047 = vpop.f32.mrf.mxu0
  %v2048 = vpop.f32.mrf.mxu0
  %v2049 = vadd.f32 %v1937, %v2048
  %v2050 = vpop.f32.mrf.mxu0
  %2051 = vmatprep.mubr.bf16.mxu0 0
  %2052 = vmatmul.mubr.bf16.gmra.mxu0 %v1929
  %v2053 = vpop.f32.mrf.mxu0
  %v2054 = vadd.f32 %v1937, %v2053
  %v2055 = vpop.f32.mrf.mxu0
  %v2056 = vpop.f32.mrf.mxu0
  %v2057 = vadd.f32 %v1937, %v2056
  %v2058 = vpop.f32.mrf.mxu0
  %2059 = vmatprep.mubr.bf16.mxu0 0
  %2060 = vmatmul.mubr.bf16.gmra.mxu0 %v1930
  %v2061 = vpop.f32.mrf.mxu0
  %v2062 = vadd.f32 %v1937, %v2061
  %v2063 = vpop.f32.mrf.mxu0
  %v2064 = vpop.f32.mrf.mxu0
  %v2065 = vadd.f32 %v1937, %v2064
  %v2066 = vpop.f32.mrf.mxu0
  %2067 = vmatprep.mubr.bf16.mxu0 0
  %2068 = vmatmul.mubr.bf16.gmra.mxu0 %v1931
  %v2069 = vpop.f32.mrf.mxu0
  %v2070 = vadd.f32 %v1937, %v2069
  %v2071 = vpop.f32.mrf.mxu0
  %v2072 = vpop.f32.mrf.mxu0
  %v2073 = vadd.f32 %v1937, %v2072
  %v2074 = vpop.f32.mrf.mxu0
  %2075 = vmatprep.mubr.bf16.mxu0 0
  %2076 = vmatmul.mubr.bf16.gmra.mxu0 %v1932
  %v2077 = vpop.f32.mrf.mxu0
  %v2078 = vadd.f32 %v1937, %v2077
  %v2079 = vpop.f32.mrf.mxu0
  %v2080 = vpop.f32.mrf.mxu0
  %v2081 = vadd.f32 %v1937, %v2080
  %v2082 = vpop.f32.mrf.mxu0
  %2083 = vdwg.mxu0
  %vm2084 = vcmp.gt.f32.partialorder %v2022, 0.0
  %vm2085 = vcmp.gt.f32.partialorder %v2025, 0.0
  %vm2086 = vcmp.gt.f32.partialorder %v2030, 0.0
  %vm2087 = vcmp.gt.f32.partialorder %v2033, 0.0
  %vm2088 = vcmp.gt.f32.partialorder %v2038, 0.0
  %vm2089 = vcmp.gt.f32.partialorder %v2041, 0.0
  %vm2090 = vcmp.gt.f32.partialorder %v2046, 0.0
  %vm2091 = vcmp.gt.f32.partialorder %v2049, 0.0
  %vm2092 = vcmp.gt.f32.partialorder %v2054, 0.0
  %vm2093 = vcmp.gt.f32.partialorder %v2057, 0.0
  %vm2094 = vcmp.gt.f32.partialorder %v2062, 0.0
  %vm2095 = vcmp.gt.f32.partialorder %v2065, 0.0
  %vm2096 = vcmp.gt.f32.partialorder %v2070, 0.0
  %vm2097 = vcmp.gt.f32.partialorder %v2073, 0.0
  %vm2098 = vcmp.gt.f32.partialorder %v2078, 0.0
  %vm2099 = vcmp.gt.f32.partialorder %v2081, 0.0
  %v2100 = vmul.f32 %v2022, 0.01
  %v2101 = vmul.f32 %v2025, 0.01
  %v2102 = vmul.f32 %v2030, 0.01
  %v2103 = vmul.f32 %v2033, 0.01
  %v2104 = vmul.f32 %v2038, 0.01
  %v2105 = vmul.f32 %v2041, 0.01
  %v2106 = vmul.f32 %v2046, 0.01
  %v2107 = vmul.f32 %v2049, 0.01
  %v2108 = vmul.f32 %v2054, 0.01
  %v2109 = vmul.f32 %v2057, 0.01
  %v2110 = vmul.f32 %v2062, 0.01
  %v2111 = vmul.f32 %v2065, 0.01
  %v2112 = vmul.f32 %v2070, 0.01
  %v2113 = vmul.f32 %v2073, 0.01
  %v2114 = vmul.f32 %v2078, 0.01
  %v2115 = vmul.f32 %v2081, 0.01
  %v2116 = vsel %vm2084, %v2022, %v2100
  %v2117 = vsel %vm2085, %v2025, %v2101
  %v2118 = vsel %vm2086, %v2030, %v2102
  %v2119 = vsel %vm2087, %v2033, %v2103
  %v2120 = vsel %vm2088, %v2038, %v2104
  %v2121 = vsel %vm2089, %v2041, %v2105
  %v2122 = vsel %vm2090, %v2046, %v2106
  %v2123 = vsel %vm2091, %v2049, %v2107
  %v2124 = vsel %vm2092, %v2054, %v2108
  %v2125 = vsel %vm2093, %v2057, %v2109
  %v2126 = vsel %vm2094, %v2062, %v2110
  %v2127 = vsel %vm2095, %v2065, %v2111
  %v2128 = vsel %vm2096, %v2070, %v2112
  %v2129 = vsel %vm2097, %v2073, %v2113
  %v2130 = vsel %vm2098, %v2078, %v2114
  %v2131 = vsel %vm2099, %v2081, %v2115
  %s2132 = scalar_lea.vmem %s4, 320
  %v2133 = vld [vmem:[%s2132] sm:$0xf]
  %v2134 = vld [vmem:[%s2132 + $0x4] sm:$0xf]
  %v2135 = vld [vmem:[%s2132 + $0x8] sm:$0xf]
  %v2136 = vld [vmem:[%s2132 + $0xc] sm:$0xf]
  %v2137 = vld [vmem:[%s2132 + $0x10] sm:$0xf]
  %v2138 = vld [vmem:[%s2132 + $0x14] sm:$0xf]
  %v2139 = vld [vmem:[%s2132 + $0x18] sm:$0xf]
  %v2140 = vld [vmem:[%s2132 + $0x1c] sm:$0xf]
  %v2141 = vld [vmem:[%s2132 + $0x20] sm:$0xf]
  %v2142 = vld [vmem:[%s2132 + $0x24] sm:$0xf]
  %v2143 = vld [vmem:[%s2132 + $0x28] sm:$0xf]
  %v2144 = vld [vmem:[%s2132 + $0x2c] sm:$0xf]
  %v2145 = vld [vmem:[%s2132 + $0x30] sm:$0xf]
  %v2146 = vld [vmem:[%s2132 + $0x34] sm:$0xf]
  %v2147 = vld [vmem:[%s2132 + $0x38] sm:$0xf]
  %v2148 = vld [vmem:[%s2132 + $0x3c] sm:$0xf]
  %s2149 = scalar_lea.vmem %s5, 5
  %v2150 = vld [vmem:[%s2149] sm:$0x1]
  %v2151 = vpack.c.bf16 %v2117, %v2116
  %v2152 = vpack.c.bf16 %v2119, %v2118
  %v2153 = vpack.c.bf16 %v2121, %v2120
  %v2154 = vpack.c.bf16 %v2123, %v2122
  %v2155 = vpack.c.bf16 %v2125, %v2124
  %v2156 = vpack.c.bf16 %v2127, %v2126
  %v2157 = vpack.c.bf16 %v2129, %v2128
  %v2158 = vpack.c.bf16 %v2131, %v2130
  %2159 = vmatprep.subr.bf16.mxu0 0
  %2160 = vmatpush1.bf16.msra.mxu0 %v2158
  %2161 = vmatprep.subr.bf16.mxu0 0
  %2162 = vmatpush1.bf16.msra.mxu0 %v2157
  %2163 = vmatprep.subr.bf16.mxu0 0
  %2164 = vmatpush1.bf16.msra.mxu0 %v2156
  %2165 = vmatprep.subr.bf16.mxu0 0
  %2166 = vmatpush1.bf16.msra.mxu0 %v2155
  %2167 = vmatprep.subr.bf16.mxu0 0
  %2168 = vmatpush1.bf16.msra.mxu0 %v2154
  %2169 = vmatprep.subr.bf16.mxu0 0
  %2170 = vmatpush1.bf16.msra.mxu0 %v2153
  %2171 = vmatprep.subr.bf16.mxu0 0
  %2172 = vmatpush1.bf16.msra.mxu0 %v2152
  %2173 = vmatprep.subr.bf16.mxu0 0
  %2174 = vmatpush1.bf16.msra.mxu0 %v2151
  %2175 = vmatprep.subr.bf16.mxu0 0
  %2176 = vmatpush2.bf16.msra.mxu0 0
  %2177 = vmatprep.subr.bf16.mxu0 0
  %2178 = vmatpush2.bf16.msra.mxu0 0
  %2179 = vmatprep.subr.bf16.mxu0 0
  %2180 = vmatpush2.bf16.msra.mxu0 0
  %2181 = vmatprep.subr.bf16.mxu0 0
  %2182 = vmatpush2.bf16.msra.mxu0 0
  %2183 = vmatprep.subr.bf16.mxu0 0
  %2184 = vmatpush2.bf16.msra.mxu0 0
  %2185 = vmatprep.subr.bf16.mxu0 0
  %2186 = vmatpush2.bf16.msra.mxu0 0
  %2187 = vmatprep.subr.bf16.mxu0 0
  %2188 = vmatpush2.bf16.msra.mxu0 0
  %2189 = vmatprep.subr.bf16.mxu0 0
  %2190 = vmatpush2.bf16.msra.mxu0 0
  %2191 = vmatprep.mubr.bf16.mxu0 0
  %2192 = vmatmul.mubr.bf16.gmra.mxu0 %v94
  %v2193 = vpop.f32.mrf.mxu0
  %v2194 = vadd.f32 0.0, %v2193
  %v2195 = vpop.f32.mrf.mxu0
  %v2196 = vpop.f32.mrf.mxu0
  %v2197 = vadd.f32 0.0, %v2196
  %v2198 = vpop.f32.mrf.mxu0
  %2199 = vmatprep.mubr.bf16.mxu0 0
  %2200 = vmatmul.mubr.bf16.gmra.mxu0 %v95
  %v2201 = vpop.f32.mrf.mxu0
  %v2202 = vadd.f32 0.0, %v2201
  %v2203 = vpop.f32.mrf.mxu0
  %v2204 = vpop.f32.mrf.mxu0
  %v2205 = vadd.f32 0.0, %v2204
  %v2206 = vpop.f32.mrf.mxu0
  %2207 = vmatprep.mubr.bf16.mxu0 0
  %2208 = vmatmul.mubr.bf16.gmra.mxu0 %v96
  %v2209 = vpop.f32.mrf.mxu0
  %v2210 = vadd.f32 0.0, %v2209
  %v2211 = vpop.f32.mrf.mxu0
  %v2212 = vpop.f32.mrf.mxu0
  %v2213 = vadd.f32 0.0, %v2212
  %v2214 = vpop.f32.mrf.mxu0
  %2215 = vmatprep.mubr.bf16.mxu0 0
  %2216 = vmatmul.mubr.bf16.gmra.mxu0 %v97
  %v2217 = vpop.f32.mrf.mxu0
  %v2218 = vadd.f32 0.0, %v2217
  %v2219 = vpop.f32.mrf.mxu0
  %v2220 = vpop.f32.mrf.mxu0
  %v2221 = vadd.f32 0.0, %v2220
  %v2222 = vpop.f32.mrf.mxu0
  %2223 = vmatprep.mubr.bf16.mxu0 0
  %2224 = vmatmul.mubr.bf16.gmra.mxu0 %v98
  %v2225 = vpop.f32.mrf.mxu0
  %v2226 = vadd.f32 0.0, %v2225
  %v2227 = vpop.f32.mrf.mxu0
  %v2228 = vpop.f32.mrf.mxu0
  %v2229 = vadd.f32 0.0, %v2228
  %v2230 = vpop.f32.mrf.mxu0
  %2231 = vmatprep.mubr.bf16.mxu0 0
  %2232 = vmatmul.mubr.bf16.gmra.mxu0 %v99
  %v2233 = vpop.f32.mrf.mxu0
  %v2234 = vadd.f32 0.0, %v2233
  %v2235 = vpop.f32.mrf.mxu0
  %v2236 = vpop.f32.mrf.mxu0
  %v2237 = vadd.f32 0.0, %v2236
  %v2238 = vpop.f32.mrf.mxu0
  %2239 = vmatprep.mubr.bf16.mxu0 0
  %2240 = vmatmul.mubr.bf16.gmra.mxu0 %v100
  %v2241 = vpop.f32.mrf.mxu0
  %v2242 = vadd.f32 0.0, %v2241
  %v2243 = vpop.f32.mrf.mxu0
  %v2244 = vpop.f32.mrf.mxu0
  %v2245 = vadd.f32 0.0, %v2244
  %v2246 = vpop.f32.mrf.mxu0
  %2247 = vmatprep.mubr.bf16.mxu0 0
  %2248 = vmatmul.mubr.bf16.gmra.mxu0 %v101
  %v2249 = vpop.f32.mrf.mxu0
  %v2250 = vadd.f32 0.0, %v2249
  %v2251 = vpop.f32.mrf.mxu0
  %v2252 = vpop.f32.mrf.mxu0
  %v2253 = vadd.f32 0.0, %v2252
  %v2254 = vpop.f32.mrf.mxu0
  %2255 = vdwg.mxu0
  %v2256 = vpack.c.bf16 %v2197, %v2194
  %v2257 = vpack.c.bf16 %v2205, %v2202
  %v2258 = vpack.c.bf16 %v2213, %v2210
  %v2259 = vpack.c.bf16 %v2221, %v2218
  %v2260 = vpack.c.bf16 %v2229, %v2226
  %v2261 = vpack.c.bf16 %v2237, %v2234
  %v2262 = vpack.c.bf16 %v2245, %v2242
  %v2263 = vpack.c.bf16 %v2253, %v2250
  %v2265 = vlaneseq
  %v2266 = vshrl.u32 %v2265, 7
  %v2267 = vsub.s32 0, %v2266
  %v2268 = vrot.slane %v2150, %v2267
  %v2286 = vunpack.c.l.b16 %v2133
  %v2287 = vunpack.c.l.b16 %v2134
  %v2288 = vunpack.c.l.b16 %v2135
  %v2289 = vunpack.c.l.b16 %v2136
  %v2290 = vunpack.c.l.b16 %v2137
  %v2291 = vunpack.c.l.b16 %v2138
  %v2292 = vunpack.c.l.b16 %v2139
  %v2293 = vunpack.c.l.b16 %v2140
  %v2294 = vunpack.c.l.b16 %v2141
  %v2295 = vunpack.c.l.b16 %v2142
  %v2296 = vunpack.c.l.b16 %v2143
  %v2297 = vunpack.c.l.b16 %v2144
  %v2298 = vunpack.c.l.b16 %v2145
  %v2299 = vunpack.c.l.b16 %v2146
  %v2300 = vunpack.c.l.b16 %v2147
  %v2301 = vunpack.c.l.b16 %v2148
  %v2302 = vpack.c.b16 %v2287, %v2286
  %v2303 = vpack.c.b16 %v2289, %v2288
  %v2304 = vpack.c.b16 %v2291, %v2290
  %v2305 = vpack.c.b16 %v2293, %v2292
  %v2306 = vpack.c.b16 %v2295, %v2294
  %v2307 = vpack.c.b16 %v2297, %v2296
  %v2308 = vpack.c.b16 %v2299, %v2298
  %v2309 = vpack.c.b16 %v2301, %v2300
  %2318 = vmatprep.subr.bf16.mxu0 0
  %2319 = vmatpush1.bf16.msra.mxu0 %v2309
  %2320 = vmatprep.subr.bf16.mxu0 0
  %2321 = vmatpush1.bf16.msra.mxu0 %v2308
  %2322 = vmatprep.subr.bf16.mxu0 0
  %2323 = vmatpush1.bf16.msra.mxu0 %v2307
  %2324 = vmatprep.subr.bf16.mxu0 0
  %2325 = vmatpush1.bf16.msra.mxu0 %v2306
  %2326 = vmatprep.subr.bf16.mxu0 0
  %2327 = vmatpush1.bf16.msra.mxu0 %v2305
  %2328 = vmatprep.subr.bf16.mxu0 0
  %2329 = vmatpush1.bf16.msra.mxu0 %v2304
  %2330 = vmatprep.subr.bf16.mxu0 0
  %2331 = vmatpush1.bf16.msra.mxu0 %v2303
  %2332 = vmatprep.subr.bf16.mxu0 0
  %2333 = vmatpush1.bf16.msra.mxu0 %v2302
  %2334 = vmatprep.subr.bf16.mxu0 0
  %2335 = vmatpush2.bf16.msra.mxu0 0
  %2336 = vmatprep.subr.bf16.mxu0 0
  %2337 = vmatpush2.bf16.msra.mxu0 0
  %2338 = vmatprep.subr.bf16.mxu0 0
  %2339 = vmatpush2.bf16.msra.mxu0 0
  %2340 = vmatprep.subr.bf16.mxu0 0
  %2341 = vmatpush2.bf16.msra.mxu0 0
  %2342 = vmatprep.subr.bf16.mxu0 0
  %2343 = vmatpush2.bf16.msra.mxu0 0
  %2344 = vmatprep.subr.bf16.mxu0 0
  %2345 = vmatpush2.bf16.msra.mxu0 0
  %2346 = vmatprep.subr.bf16.mxu0 0
  %2347 = vmatpush2.bf16.msra.mxu0 0
  %2348 = vmatprep.subr.bf16.mxu0 0
  %2349 = vmatpush2.bf16.msra.mxu0 0
  %2350 = vmatprep.mubr.bf16.mxu0 0
  %2351 = vmatmul.mubr.bf16.gmra.mxu0 %v2256
  %v2352 = vpop.f32.mrf.mxu0
  %v2353 = vadd.f32 %v2268, %v2352
  %v2354 = vpop.f32.mrf.mxu0
  %v2355 = vpop.f32.mrf.mxu0
  %v2356 = vadd.f32 %v2268, %v2355
  %v2357 = vpop.f32.mrf.mxu0
  %2358 = vmatprep.mubr.bf16.mxu0 0
  %2359 = vmatmul.mubr.bf16.gmra.mxu0 %v2257
  %v2360 = vpop.f32.mrf.mxu0
  %v2361 = vadd.f32 %v2268, %v2360
  %v2362 = vpop.f32.mrf.mxu0
  %v2363 = vpop.f32.mrf.mxu0
  %v2364 = vadd.f32 %v2268, %v2363
  %v2365 = vpop.f32.mrf.mxu0
  %2366 = vmatprep.mubr.bf16.mxu0 0
  %2367 = vmatmul.mubr.bf16.gmra.mxu0 %v2258
  %v2368 = vpop.f32.mrf.mxu0
  %v2369 = vadd.f32 %v2268, %v2368
  %v2370 = vpop.f32.mrf.mxu0
  %v2371 = vpop.f32.mrf.mxu0
  %v2372 = vadd.f32 %v2268, %v2371
  %v2373 = vpop.f32.mrf.mxu0
  %2374 = vmatprep.mubr.bf16.mxu0 0
  %2375 = vmatmul.mubr.bf16.gmra.mxu0 %v2259
  %v2376 = vpop.f32.mrf.mxu0
  %v2377 = vadd.f32 %v2268, %v2376
  %v2378 = vpop.f32.mrf.mxu0
  %v2379 = vpop.f32.mrf.mxu0
  %v2380 = vadd.f32 %v2268, %v2379
  %v2381 = vpop.f32.mrf.mxu0
  %2382 = vmatprep.mubr.bf16.mxu0 0
  %2383 = vmatmul.mubr.bf16.gmra.mxu0 %v2260
  %v2384 = vpop.f32.mrf.mxu0
  %v2385 = vadd.f32 %v2268, %v2384
  %v2386 = vpop.f32.mrf.mxu0
  %v2387 = vpop.f32.mrf.mxu0
  %v2388 = vadd.f32 %v2268, %v2387
  %v2389 = vpop.f32.mrf.mxu0
  %2390 = vmatprep.mubr.bf16.mxu0 0
  %2391 = vmatmul.mubr.bf16.gmra.mxu0 %v2261
  %v2392 = vpop.f32.mrf.mxu0
  %v2393 = vadd.f32 %v2268, %v2392
  %v2394 = vpop.f32.mrf.mxu0
  %v2395 = vpop.f32.mrf.mxu0
  %v2396 = vadd.f32 %v2268, %v2395
  %v2397 = vpop.f32.mrf.mxu0
  %2398 = vmatprep.mubr.bf16.mxu0 0
  %2399 = vmatmul.mubr.bf16.gmra.mxu0 %v2262
  %v2400 = vpop.f32.mrf.mxu0
  %v2401 = vadd.f32 %v2268, %v2400
  %v2402 = vpop.f32.mrf.mxu0
  %v2403 = vpop.f32.mrf.mxu0
  %v2404 = vadd.f32 %v2268, %v2403
  %v2405 = vpop.f32.mrf.mxu0
  %2406 = vmatprep.mubr.bf16.mxu0 0
  %2407 = vmatmul.mubr.bf16.gmra.mxu0 %v2263
  %v2408 = vpop.f32.mrf.mxu0
  %v2409 = vadd.f32 %v2268, %v2408
  %v2410 = vpop.f32.mrf.mxu0
  %v2411 = vpop.f32.mrf.mxu0
  %v2412 = vadd.f32 %v2268, %v2411
  %v2413 = vpop.f32.mrf.mxu0
  %2414 = vdwg.mxu0
  %vm2415 = vcmp.gt.f32.partialorder %v2353, 0.0
  %vm2416 = vcmp.gt.f32.partialorder %v2356, 0.0
  %vm2417 = vcmp.gt.f32.partialorder %v2361, 0.0
  %vm2418 = vcmp.gt.f32.partialorder %v2364, 0.0
  %vm2419 = vcmp.gt.f32.partialorder %v2369, 0.0
  %vm2420 = vcmp.gt.f32.partialorder %v2372, 0.0
  %vm2421 = vcmp.gt.f32.partialorder %v2377, 0.0
  %vm2422 = vcmp.gt.f32.partialorder %v2380, 0.0
  %vm2423 = vcmp.gt.f32.partialorder %v2385, 0.0
  %vm2424 = vcmp.gt.f32.partialorder %v2388, 0.0
  %vm2425 = vcmp.gt.f32.partialorder %v2393, 0.0
  %vm2426 = vcmp.gt.f32.partialorder %v2396, 0.0
  %vm2427 = vcmp.gt.f32.partialorder %v2401, 0.0
  %vm2428 = vcmp.gt.f32.partialorder %v2404, 0.0
  %vm2429 = vcmp.gt.f32.partialorder %v2409, 0.0
  %vm2430 = vcmp.gt.f32.partialorder %v2412, 0.0
  %v2431 = vmul.f32 %v2353, 0.01
  %v2432 = vmul.f32 %v2356, 0.01
  %v2433 = vmul.f32 %v2361, 0.01
  %v2434 = vmul.f32 %v2364, 0.01
  %v2435 = vmul.f32 %v2369, 0.01
  %v2436 = vmul.f32 %v2372, 0.01
  %v2437 = vmul.f32 %v2377, 0.01
  %v2438 = vmul.f32 %v2380, 0.01
  %v2439 = vmul.f32 %v2385, 0.01
  %v2440 = vmul.f32 %v2388, 0.01
  %v2441 = vmul.f32 %v2393, 0.01
  %v2442 = vmul.f32 %v2396, 0.01
  %v2443 = vmul.f32 %v2401, 0.01
  %v2444 = vmul.f32 %v2404, 0.01
  %v2445 = vmul.f32 %v2409, 0.01
  %v2446 = vmul.f32 %v2412, 0.01
  %v2447 = vsel %vm2415, %v2353, %v2431
  %v2448 = vsel %vm2416, %v2356, %v2432
  %v2449 = vsel %vm2417, %v2361, %v2433
  %v2450 = vsel %vm2418, %v2364, %v2434
  %v2451 = vsel %vm2419, %v2369, %v2435
  %v2452 = vsel %vm2420, %v2372, %v2436
  %v2453 = vsel %vm2421, %v2377, %v2437
  %v2454 = vsel %vm2422, %v2380, %v2438
  %v2455 = vsel %vm2423, %v2385, %v2439
  %v2456 = vsel %vm2424, %v2388, %v2440
  %v2457 = vsel %vm2425, %v2393, %v2441
  %v2458 = vsel %vm2426, %v2396, %v2442
  %v2459 = vsel %vm2427, %v2401, %v2443
  %v2460 = vsel %vm2428, %v2404, %v2444
  %v2461 = vsel %vm2429, %v2409, %v2445
  %v2462 = vsel %vm2430, %v2412, %v2446
  %s2463 = scalar_lea.vmem %s4, 384
  %v2464 = vld [vmem:[%s2463] sm:$0xf]
  %v2465 = vld [vmem:[%s2463 + $0x4] sm:$0xf]
  %v2466 = vld [vmem:[%s2463 + $0x8] sm:$0xf]
  %v2467 = vld [vmem:[%s2463 + $0xc] sm:$0xf]
  %v2468 = vld [vmem:[%s2463 + $0x10] sm:$0xf]
  %v2469 = vld [vmem:[%s2463 + $0x14] sm:$0xf]
  %v2470 = vld [vmem:[%s2463 + $0x18] sm:$0xf]
  %v2471 = vld [vmem:[%s2463 + $0x1c] sm:$0xf]
  %v2472 = vld [vmem:[%s2463 + $0x20] sm:$0xf]
  %v2473 = vld [vmem:[%s2463 + $0x24] sm:$0xf]
  %v2474 = vld [vmem:[%s2463 + $0x28] sm:$0xf]
  %v2475 = vld [vmem:[%s2463 + $0x2c] sm:$0xf]
  %v2476 = vld [vmem:[%s2463 + $0x30] sm:$0xf]
  %v2477 = vld [vmem:[%s2463 + $0x34] sm:$0xf]
  %v2478 = vld [vmem:[%s2463 + $0x38] sm:$0xf]
  %v2479 = vld [vmem:[%s2463 + $0x3c] sm:$0xf]
  %s2480 = scalar_lea.vmem %s5, 6
  %v2481 = vld [vmem:[%s2480] sm:$0x1]
  %v2482 = vpack.c.bf16 %v2448, %v2447
  %v2483 = vpack.c.bf16 %v2450, %v2449
  %v2484 = vpack.c.bf16 %v2452, %v2451
  %v2485 = vpack.c.bf16 %v2454, %v2453
  %v2486 = vpack.c.bf16 %v2456, %v2455
  %v2487 = vpack.c.bf16 %v2458, %v2457
  %v2488 = vpack.c.bf16 %v2460, %v2459
  %v2489 = vpack.c.bf16 %v2462, %v2461
  %2490 = vmatprep.subr.bf16.mxu0 0
  %2491 = vmatpush1.bf16.msra.mxu0 %v2489
  %2492 = vmatprep.subr.bf16.mxu0 0
  %2493 = vmatpush1.bf16.msra.mxu0 %v2488
  %2494 = vmatprep.subr.bf16.mxu0 0
  %2495 = vmatpush1.bf16.msra.mxu0 %v2487
  %2496 = vmatprep.subr.bf16.mxu0 0
  %2497 = vmatpush1.bf16.msra.mxu0 %v2486
  %2498 = vmatprep.subr.bf16.mxu0 0
  %2499 = vmatpush1.bf16.msra.mxu0 %v2485
  %2500 = vmatprep.subr.bf16.mxu0 0
  %2501 = vmatpush1.bf16.msra.mxu0 %v2484
  %2502 = vmatprep.subr.bf16.mxu0 0
  %2503 = vmatpush1.bf16.msra.mxu0 %v2483
  %2504 = vmatprep.subr.bf16.mxu0 0
  %2505 = vmatpush1.bf16.msra.mxu0 %v2482
  %2506 = vmatprep.subr.bf16.mxu0 0
  %2507 = vmatpush2.bf16.msra.mxu0 0
  %2508 = vmatprep.subr.bf16.mxu0 0
  %2509 = vmatpush2.bf16.msra.mxu0 0
  %2510 = vmatprep.subr.bf16.mxu0 0
  %2511 = vmatpush2.bf16.msra.mxu0 0
  %2512 = vmatprep.subr.bf16.mxu0 0
  %2513 = vmatpush2.bf16.msra.mxu0 0
  %2514 = vmatprep.subr.bf16.mxu0 0
  %2515 = vmatpush2.bf16.msra.mxu0 0
  %2516 = vmatprep.subr.bf16.mxu0 0
  %2517 = vmatpush2.bf16.msra.mxu0 0
  %2518 = vmatprep.subr.bf16.mxu0 0
  %2519 = vmatpush2.bf16.msra.mxu0 0
  %2520 = vmatprep.subr.bf16.mxu0 0
  %2521 = vmatpush2.bf16.msra.mxu0 0
  %2522 = vmatprep.mubr.bf16.mxu0 0
  %2523 = vmatmul.mubr.bf16.gmra.mxu0 %v94
  %v2524 = vpop.f32.mrf.mxu0
  %v2525 = vadd.f32 0.0, %v2524
  %v2526 = vpop.f32.mrf.mxu0
  %v2527 = vpop.f32.mrf.mxu0
  %v2528 = vadd.f32 0.0, %v2527
  %v2529 = vpop.f32.mrf.mxu0
  %2530 = vmatprep.mubr.bf16.mxu0 0
  %2531 = vmatmul.mubr.bf16.gmra.mxu0 %v95
  %v2532 = vpop.f32.mrf.mxu0
  %v2533 = vadd.f32 0.0, %v2532
  %v2534 = vpop.f32.mrf.mxu0
  %v2535 = vpop.f32.mrf.mxu0
  %v2536 = vadd.f32 0.0, %v2535
  %v2537 = vpop.f32.mrf.mxu0
  %2538 = vmatprep.mubr.bf16.mxu0 0
  %2539 = vmatmul.mubr.bf16.gmra.mxu0 %v96
  %v2540 = vpop.f32.mrf.mxu0
  %v2541 = vadd.f32 0.0, %v2540
  %v2542 = vpop.f32.mrf.mxu0
  %v2543 = vpop.f32.mrf.mxu0
  %v2544 = vadd.f32 0.0, %v2543
  %v2545 = vpop.f32.mrf.mxu0
  %2546 = vmatprep.mubr.bf16.mxu0 0
  %2547 = vmatmul.mubr.bf16.gmra.mxu0 %v97
  %v2548 = vpop.f32.mrf.mxu0
  %v2549 = vadd.f32 0.0, %v2548
  %v2550 = vpop.f32.mrf.mxu0
  %v2551 = vpop.f32.mrf.mxu0
  %v2552 = vadd.f32 0.0, %v2551
  %v2553 = vpop.f32.mrf.mxu0
  %2554 = vmatprep.mubr.bf16.mxu0 0
  %2555 = vmatmul.mubr.bf16.gmra.mxu0 %v98
  %v2556 = vpop.f32.mrf.mxu0
  %v2557 = vadd.f32 0.0, %v2556
  %v2558 = vpop.f32.mrf.mxu0
  %v2559 = vpop.f32.mrf.mxu0
  %v2560 = vadd.f32 0.0, %v2559
  %v2561 = vpop.f32.mrf.mxu0
  %2562 = vmatprep.mubr.bf16.mxu0 0
  %2563 = vmatmul.mubr.bf16.gmra.mxu0 %v99
  %v2564 = vpop.f32.mrf.mxu0
  %v2565 = vadd.f32 0.0, %v2564
  %v2566 = vpop.f32.mrf.mxu0
  %v2567 = vpop.f32.mrf.mxu0
  %v2568 = vadd.f32 0.0, %v2567
  %v2569 = vpop.f32.mrf.mxu0
  %2570 = vmatprep.mubr.bf16.mxu0 0
  %2571 = vmatmul.mubr.bf16.gmra.mxu0 %v100
  %v2572 = vpop.f32.mrf.mxu0
  %v2573 = vadd.f32 0.0, %v2572
  %v2574 = vpop.f32.mrf.mxu0
  %v2575 = vpop.f32.mrf.mxu0
  %v2576 = vadd.f32 0.0, %v2575
  %v2577 = vpop.f32.mrf.mxu0
  %2578 = vmatprep.mubr.bf16.mxu0 0
  %2579 = vmatmul.mubr.bf16.gmra.mxu0 %v101
  %v2580 = vpop.f32.mrf.mxu0
  %v2581 = vadd.f32 0.0, %v2580
  %v2582 = vpop.f32.mrf.mxu0
  %v2583 = vpop.f32.mrf.mxu0
  %v2584 = vadd.f32 0.0, %v2583
  %v2585 = vpop.f32.mrf.mxu0
  %2586 = vdwg.mxu0
  %v2587 = vpack.c.bf16 %v2528, %v2525
  %v2588 = vpack.c.bf16 %v2536, %v2533
  %v2589 = vpack.c.bf16 %v2544, %v2541
  %v2590 = vpack.c.bf16 %v2552, %v2549
  %v2591 = vpack.c.bf16 %v2560, %v2557
  %v2592 = vpack.c.bf16 %v2568, %v2565
  %v2593 = vpack.c.bf16 %v2576, %v2573
  %v2594 = vpack.c.bf16 %v2584, %v2581
  %v2596 = vlaneseq
  %v2597 = vshrl.u32 %v2596, 7
  %v2598 = vsub.s32 0, %v2597
  %v2599 = vrot.slane %v2481, %v2598
  %v2617 = vunpack.c.l.b16 %v2464
  %v2618 = vunpack.c.l.b16 %v2465
  %v2619 = vunpack.c.l.b16 %v2466
  %v2620 = vunpack.c.l.b16 %v2467
  %v2621 = vunpack.c.l.b16 %v2468
  %v2622 = vunpack.c.l.b16 %v2469
  %v2623 = vunpack.c.l.b16 %v2470
  %v2624 = vunpack.c.l.b16 %v2471
  %v2625 = vunpack.c.l.b16 %v2472
  %v2626 = vunpack.c.l.b16 %v2473
  %v2627 = vunpack.c.l.b16 %v2474
  %v2628 = vunpack.c.l.b16 %v2475
  %v2629 = vunpack.c.l.b16 %v2476
  %v2630 = vunpack.c.l.b16 %v2477
  %v2631 = vunpack.c.l.b16 %v2478
  %v2632 = vunpack.c.l.b16 %v2479
  %v2633 = vpack.c.b16 %v2618, %v2617
  %v2634 = vpack.c.b16 %v2620, %v2619
  %v2635 = vpack.c.b16 %v2622, %v2621
  %v2636 = vpack.c.b16 %v2624, %v2623
  %v2637 = vpack.c.b16 %v2626, %v2625
  %v2638 = vpack.c.b16 %v2628, %v2627
  %v2639 = vpack.c.b16 %v2630, %v2629
  %v2640 = vpack.c.b16 %v2632, %v2631
  %2649 = vmatprep.subr.bf16.mxu0 0
  %2650 = vmatpush1.bf16.msra.mxu0 %v2640
  %2651 = vmatprep.subr.bf16.mxu0 0
  %2652 = vmatpush1.bf16.msra.mxu0 %v2639
  %2653 = vmatprep.subr.bf16.mxu0 0
  %2654 = vmatpush1.bf16.msra.mxu0 %v2638
  %2655 = vmatprep.subr.bf16.mxu0 0
  %2656 = vmatpush1.bf16.msra.mxu0 %v2637
  %2657 = vmatprep.subr.bf16.mxu0 0
  %2658 = vmatpush1.bf16.msra.mxu0 %v2636
  %2659 = vmatprep.subr.bf16.mxu0 0
  %2660 = vmatpush1.bf16.msra.mxu0 %v2635
  %2661 = vmatprep.subr.bf16.mxu0 0
  %2662 = vmatpush1.bf16.msra.mxu0 %v2634
  %2663 = vmatprep.subr.bf16.mxu0 0
  %2664 = vmatpush1.bf16.msra.mxu0 %v2633
  %2665 = vmatprep.subr.bf16.mxu0 0
  %2666 = vmatpush2.bf16.msra.mxu0 0
  %2667 = vmatprep.subr.bf16.mxu0 0
  %2668 = vmatpush2.bf16.msra.mxu0 0
  %2669 = vmatprep.subr.bf16.mxu0 0
  %2670 = vmatpush2.bf16.msra.mxu0 0
  %2671 = vmatprep.subr.bf16.mxu0 0
  %2672 = vmatpush2.bf16.msra.mxu0 0
  %2673 = vmatprep.subr.bf16.mxu0 0
  %2674 = vmatpush2.bf16.msra.mxu0 0
  %2675 = vmatprep.subr.bf16.mxu0 0
  %2676 = vmatpush2.bf16.msra.mxu0 0
  %2677 = vmatprep.subr.bf16.mxu0 0
  %2678 = vmatpush2.bf16.msra.mxu0 0
  %2679 = vmatprep.subr.bf16.mxu0 0
  %2680 = vmatpush2.bf16.msra.mxu0 0
  %2681 = vmatprep.mubr.bf16.mxu0 0
  %2682 = vmatmul.mubr.bf16.gmra.mxu0 %v2587
  %v2683 = vpop.f32.mrf.mxu0
  %v2684 = vadd.f32 %v2599, %v2683
  %v2685 = vpop.f32.mrf.mxu0
  %v2686 = vpop.f32.mrf.mxu0
  %v2687 = vadd.f32 %v2599, %v2686
  %v2688 = vpop.f32.mrf.mxu0
  %2689 = vmatprep.mubr.bf16.mxu0 0
  %2690 = vmatmul.mubr.bf16.gmra.mxu0 %v2588
  %v2691 = vpop.f32.mrf.mxu0
  %v2692 = vadd.f32 %v2599, %v2691
  %v2693 = vpop.f32.mrf.mxu0
  %v2694 = vpop.f32.mrf.mxu0
  %v2695 = vadd.f32 %v2599, %v2694
  %v2696 = vpop.f32.mrf.mxu0
  %2697 = vmatprep.mubr.bf16.mxu0 0
  %2698 = vmatmul.mubr.bf16.gmra.mxu0 %v2589
  %v2699 = vpop.f32.mrf.mxu0
  %v2700 = vadd.f32 %v2599, %v2699
  %v2701 = vpop.f32.mrf.mxu0
  %v2702 = vpop.f32.mrf.mxu0
  %v2703 = vadd.f32 %v2599, %v2702
  %v2704 = vpop.f32.mrf.mxu0
  %2705 = vmatprep.mubr.bf16.mxu0 0
  %2706 = vmatmul.mubr.bf16.gmra.mxu0 %v2590
  %v2707 = vpop.f32.mrf.mxu0
  %v2708 = vadd.f32 %v2599, %v2707
  %v2709 = vpop.f32.mrf.mxu0
  %v2710 = vpop.f32.mrf.mxu0
  %v2711 = vadd.f32 %v2599, %v2710
  %v2712 = vpop.f32.mrf.mxu0
  %2713 = vmatprep.mubr.bf16.mxu0 0
  %2714 = vmatmul.mubr.bf16.gmra.mxu0 %v2591
  %v2715 = vpop.f32.mrf.mxu0
  %v2716 = vadd.f32 %v2599, %v2715
  %v2717 = vpop.f32.mrf.mxu0
  %v2718 = vpop.f32.mrf.mxu0
  %v2719 = vadd.f32 %v2599, %v2718
  %v2720 = vpop.f32.mrf.mxu0
  %2721 = vmatprep.mubr.bf16.mxu0 0
  %2722 = vmatmul.mubr.bf16.gmra.mxu0 %v2592
  %v2723 = vpop.f32.mrf.mxu0
  %v2724 = vadd.f32 %v2599, %v2723
  %v2725 = vpop.f32.mrf.mxu0
  %v2726 = vpop.f32.mrf.mxu0
  %v2727 = vadd.f32 %v2599, %v2726
  %v2728 = vpop.f32.mrf.mxu0
  %2729 = vmatprep.mubr.bf16.mxu0 0
  %2730 = vmatmul.mubr.bf16.gmra.mxu0 %v2593
  %v2731 = vpop.f32.mrf.mxu0
  %v2732 = vadd.f32 %v2599, %v2731
  %v2733 = vpop.f32.mrf.mxu0
  %v2734 = vpop.f32.mrf.mxu0
  %v2735 = vadd.f32 %v2599, %v2734
  %v2736 = vpop.f32.mrf.mxu0
  %2737 = vmatprep.mubr.bf16.mxu0 0
  %2738 = vmatmul.mubr.bf16.gmra.mxu0 %v2594
  %v2739 = vpop.f32.mrf.mxu0
  %v2740 = vadd.f32 %v2599, %v2739
  %v2741 = vpop.f32.mrf.mxu0
  %v2742 = vpop.f32.mrf.mxu0
  %v2743 = vadd.f32 %v2599, %v2742
  %v2744 = vpop.f32.mrf.mxu0
  %2745 = vdwg.mxu0
  %vm2746 = vcmp.gt.f32.partialorder %v2684, 0.0
  %vm2747 = vcmp.gt.f32.partialorder %v2687, 0.0
  %vm2748 = vcmp.gt.f32.partialorder %v2692, 0.0
  %vm2749 = vcmp.gt.f32.partialorder %v2695, 0.0
  %vm2750 = vcmp.gt.f32.partialorder %v2700, 0.0
  %vm2751 = vcmp.gt.f32.partialorder %v2703, 0.0
  %vm2752 = vcmp.gt.f32.partialorder %v2708, 0.0
  %vm2753 = vcmp.gt.f32.partialorder %v2711, 0.0
  %vm2754 = vcmp.gt.f32.partialorder %v2716, 0.0
  %vm2755 = vcmp.gt.f32.partialorder %v2719, 0.0
  %vm2756 = vcmp.gt.f32.partialorder %v2724, 0.0
  %vm2757 = vcmp.gt.f32.partialorder %v2727, 0.0
  %vm2758 = vcmp.gt.f32.partialorder %v2732, 0.0
  %vm2759 = vcmp.gt.f32.partialorder %v2735, 0.0
  %vm2760 = vcmp.gt.f32.partialorder %v2740, 0.0
  %vm2761 = vcmp.gt.f32.partialorder %v2743, 0.0
  %v2762 = vmul.f32 %v2684, 0.01
  %v2763 = vmul.f32 %v2687, 0.01
  %v2764 = vmul.f32 %v2692, 0.01
  %v2765 = vmul.f32 %v2695, 0.01
  %v2766 = vmul.f32 %v2700, 0.01
  %v2767 = vmul.f32 %v2703, 0.01
  %v2768 = vmul.f32 %v2708, 0.01
  %v2769 = vmul.f32 %v2711, 0.01
  %v2770 = vmul.f32 %v2716, 0.01
  %v2771 = vmul.f32 %v2719, 0.01
  %v2772 = vmul.f32 %v2724, 0.01
  %v2773 = vmul.f32 %v2727, 0.01
  %v2774 = vmul.f32 %v2732, 0.01
  %v2775 = vmul.f32 %v2735, 0.01
  %v2776 = vmul.f32 %v2740, 0.01
  %v2777 = vmul.f32 %v2743, 0.01
  %v2778 = vsel %vm2746, %v2684, %v2762
  %v2779 = vsel %vm2747, %v2687, %v2763
  %v2780 = vsel %vm2748, %v2692, %v2764
  %v2781 = vsel %vm2749, %v2695, %v2765
  %v2782 = vsel %vm2750, %v2700, %v2766
  %v2783 = vsel %vm2751, %v2703, %v2767
  %v2784 = vsel %vm2752, %v2708, %v2768
  %v2785 = vsel %vm2753, %v2711, %v2769
  %v2786 = vsel %vm2754, %v2716, %v2770
  %v2787 = vsel %vm2755, %v2719, %v2771
  %v2788 = vsel %vm2756, %v2724, %v2772
  %v2789 = vsel %vm2757, %v2727, %v2773
  %v2790 = vsel %vm2758, %v2732, %v2774
  %v2791 = vsel %vm2759, %v2735, %v2775
  %v2792 = vsel %vm2760, %v2740, %v2776
  %v2793 = vsel %vm2761, %v2743, %v2777
  %s2794 = scalar_lea.vmem %s4, 448
  %v2795 = vld [vmem:[%s2794] sm:$0xf]
  %v2796 = vld [vmem:[%s2794 + $0x4] sm:$0xf]
  %v2797 = vld [vmem:[%s2794 + $0x8] sm:$0xf]
  %v2798 = vld [vmem:[%s2794 + $0xc] sm:$0xf]
  %v2799 = vld [vmem:[%s2794 + $0x10] sm:$0xf]
  %v2800 = vld [vmem:[%s2794 + $0x14] sm:$0xf]
  %v2801 = vld [vmem:[%s2794 + $0x18] sm:$0xf]
  %v2802 = vld [vmem:[%s2794 + $0x1c] sm:$0xf]
  %v2803 = vld [vmem:[%s2794 + $0x20] sm:$0xf]
  %v2804 = vld [vmem:[%s2794 + $0x24] sm:$0xf]
  %v2805 = vld [vmem:[%s2794 + $0x28] sm:$0xf]
  %v2806 = vld [vmem:[%s2794 + $0x2c] sm:$0xf]
  %v2807 = vld [vmem:[%s2794 + $0x30] sm:$0xf]
  %v2808 = vld [vmem:[%s2794 + $0x34] sm:$0xf]
  %v2809 = vld [vmem:[%s2794 + $0x38] sm:$0xf]
  %v2810 = vld [vmem:[%s2794 + $0x3c] sm:$0xf]
  %s2811 = scalar_lea.vmem %s5, 7
  %v2812 = vld [vmem:[%s2811] sm:$0x1]
  %v2813 = vpack.c.bf16 %v2779, %v2778
  %v2814 = vpack.c.bf16 %v2781, %v2780
  %v2815 = vpack.c.bf16 %v2783, %v2782
  %v2816 = vpack.c.bf16 %v2785, %v2784
  %v2817 = vpack.c.bf16 %v2787, %v2786
  %v2818 = vpack.c.bf16 %v2789, %v2788
  %v2819 = vpack.c.bf16 %v2791, %v2790
  %v2820 = vpack.c.bf16 %v2793, %v2792
  %2821 = vmatprep.subr.bf16.mxu0 0
  %2822 = vmatpush1.bf16.msra.mxu0 %v2820
  %2823 = vmatprep.subr.bf16.mxu0 0
  %2824 = vmatpush1.bf16.msra.mxu0 %v2819
  %2825 = vmatprep.subr.bf16.mxu0 0
  %2826 = vmatpush1.bf16.msra.mxu0 %v2818
  %2827 = vmatprep.subr.bf16.mxu0 0
  %2828 = vmatpush1.bf16.msra.mxu0 %v2817
  %2829 = vmatprep.subr.bf16.mxu0 0
  %2830 = vmatpush1.bf16.msra.mxu0 %v2816
  %2831 = vmatprep.subr.bf16.mxu0 0
  %2832 = vmatpush1.bf16.msra.mxu0 %v2815
  %2833 = vmatprep.subr.bf16.mxu0 0
  %2834 = vmatpush1.bf16.msra.mxu0 %v2814
  %2835 = vmatprep.subr.bf16.mxu0 0
  %2836 = vmatpush1.bf16.msra.mxu0 %v2813
  %2837 = vmatprep.subr.bf16.mxu0 0
  %2838 = vmatpush2.bf16.msra.mxu0 0
  %2839 = vmatprep.subr.bf16.mxu0 0
  %2840 = vmatpush2.bf16.msra.mxu0 0
  %2841 = vmatprep.subr.bf16.mxu0 0
  %2842 = vmatpush2.bf16.msra.mxu0 0
  %2843 = vmatprep.subr.bf16.mxu0 0
  %2844 = vmatpush2.bf16.msra.mxu0 0
  %2845 = vmatprep.subr.bf16.mxu0 0
  %2846 = vmatpush2.bf16.msra.mxu0 0
  %2847 = vmatprep.subr.bf16.mxu0 0
  %2848 = vmatpush2.bf16.msra.mxu0 0
  %2849 = vmatprep.subr.bf16.mxu0 0
  %2850 = vmatpush2.bf16.msra.mxu0 0
  %2851 = vmatprep.subr.bf16.mxu0 0
  %2852 = vmatpush2.bf16.msra.mxu0 0
  %2853 = vmatprep.mubr.bf16.mxu0 0
  %2854 = vmatmul.mubr.bf16.gmra.mxu0 %v94
  %v2855 = vpop.f32.mrf.mxu0
  %v2856 = vadd.f32 0.0, %v2855
  %v2857 = vpop.f32.mrf.mxu0
  %v2858 = vpop.f32.mrf.mxu0
  %v2859 = vadd.f32 0.0, %v2858
  %v2860 = vpop.f32.mrf.mxu0
  %2861 = vmatprep.mubr.bf16.mxu0 0
  %2862 = vmatmul.mubr.bf16.gmra.mxu0 %v95
  %v2863 = vpop.f32.mrf.mxu0
  %v2864 = vadd.f32 0.0, %v2863
  %v2865 = vpop.f32.mrf.mxu0
  %v2866 = vpop.f32.mrf.mxu0
  %v2867 = vadd.f32 0.0, %v2866
  %v2868 = vpop.f32.mrf.mxu0
  %2869 = vmatprep.mubr.bf16.mxu0 0
  %2870 = vmatmul.mubr.bf16.gmra.mxu0 %v96
  %v2871 = vpop.f32.mrf.mxu0
  %v2872 = vadd.f32 0.0, %v2871
  %v2873 = vpop.f32.mrf.mxu0
  %v2874 = vpop.f32.mrf.mxu0
  %v2875 = vadd.f32 0.0, %v2874
  %v2876 = vpop.f32.mrf.mxu0
  %2877 = vmatprep.mubr.bf16.mxu0 0
  %2878 = vmatmul.mubr.bf16.gmra.mxu0 %v97
  %v2879 = vpop.f32.mrf.mxu0
  %v2880 = vadd.f32 0.0, %v2879
  %v2881 = vpop.f32.mrf.mxu0
  %v2882 = vpop.f32.mrf.mxu0
  %v2883 = vadd.f32 0.0, %v2882
  %v2884 = vpop.f32.mrf.mxu0
  %2885 = vmatprep.mubr.bf16.mxu0 0
  %2886 = vmatmul.mubr.bf16.gmra.mxu0 %v98
  %v2887 = vpop.f32.mrf.mxu0
  %v2888 = vadd.f32 0.0, %v2887
  %v2889 = vpop.f32.mrf.mxu0
  %v2890 = vpop.f32.mrf.mxu0
  %v2891 = vadd.f32 0.0, %v2890
  %v2892 = vpop.f32.mrf.mxu0
  %2893 = vmatprep.mubr.bf16.mxu0 0
  %2894 = vmatmul.mubr.bf16.gmra.mxu0 %v99
  %v2895 = vpop.f32.mrf.mxu0
  %v2896 = vadd.f32 0.0, %v2895
  %v2897 = vpop.f32.mrf.mxu0
  %v2898 = vpop.f32.mrf.mxu0
  %v2899 = vadd.f32 0.0, %v2898
  %v2900 = vpop.f32.mrf.mxu0
  %2901 = vmatprep.mubr.bf16.mxu0 0
  %2902 = vmatmul.mubr.bf16.gmra.mxu0 %v100
  %v2903 = vpop.f32.mrf.mxu0
  %v2904 = vadd.f32 0.0, %v2903
  %v2905 = vpop.f32.mrf.mxu0
  %v2906 = vpop.f32.mrf.mxu0
  %v2907 = vadd.f32 0.0, %v2906
  %v2908 = vpop.f32.mrf.mxu0
  %2909 = vmatprep.mubr.bf16.mxu0 0
  %2910 = vmatmul.mubr.bf16.gmra.mxu0 %v101
  %v2911 = vpop.f32.mrf.mxu0
  %v2912 = vadd.f32 0.0, %v2911
  %v2913 = vpop.f32.mrf.mxu0
  %v2914 = vpop.f32.mrf.mxu0
  %v2915 = vadd.f32 0.0, %v2914
  %v2916 = vpop.f32.mrf.mxu0
  %2917 = vdwg.mxu0
  %v2918 = vpack.c.bf16 %v2859, %v2856
  %v2919 = vpack.c.bf16 %v2867, %v2864
  %v2920 = vpack.c.bf16 %v2875, %v2872
  %v2921 = vpack.c.bf16 %v2883, %v2880
  %v2922 = vpack.c.bf16 %v2891, %v2888
  %v2923 = vpack.c.bf16 %v2899, %v2896
  %v2924 = vpack.c.bf16 %v2907, %v2904
  %v2925 = vpack.c.bf16 %v2915, %v2912
  %v2927 = vlaneseq
  %v2928 = vshrl.u32 %v2927, 7
  %v2929 = vsub.s32 0, %v2928
  %v2930 = vrot.slane %v2812, %v2929
  %v2948 = vunpack.c.l.b16 %v2795
  %v2949 = vunpack.c.l.b16 %v2796
  %v2950 = vunpack.c.l.b16 %v2797
  %v2951 = vunpack.c.l.b16 %v2798
  %v2952 = vunpack.c.l.b16 %v2799
  %v2953 = vunpack.c.l.b16 %v2800
  %v2954 = vunpack.c.l.b16 %v2801
  %v2955 = vunpack.c.l.b16 %v2802
  %v2956 = vunpack.c.l.b16 %v2803
  %v2957 = vunpack.c.l.b16 %v2804
  %v2958 = vunpack.c.l.b16 %v2805
  %v2959 = vunpack.c.l.b16 %v2806
  %v2960 = vunpack.c.l.b16 %v2807
  %v2961 = vunpack.c.l.b16 %v2808
  %v2962 = vunpack.c.l.b16 %v2809
  %v2963 = vunpack.c.l.b16 %v2810
  %v2964 = vpack.c.b16 %v2949, %v2948
  %v2965 = vpack.c.b16 %v2951, %v2950
  %v2966 = vpack.c.b16 %v2953, %v2952
  %v2967 = vpack.c.b16 %v2955, %v2954
  %v2968 = vpack.c.b16 %v2957, %v2956
  %v2969 = vpack.c.b16 %v2959, %v2958
  %v2970 = vpack.c.b16 %v2961, %v2960
  %v2971 = vpack.c.b16 %v2963, %v2962
  %2980 = vmatprep.subr.bf16.mxu0 0
  %2981 = vmatpush1.bf16.msra.mxu0 %v2971
  %2982 = vmatprep.subr.bf16.mxu0 0
  %2983 = vmatpush1.bf16.msra.mxu0 %v2970
  %2984 = vmatprep.subr.bf16.mxu0 0
  %2985 = vmatpush1.bf16.msra.mxu0 %v2969
  %2986 = vmatprep.subr.bf16.mxu0 0
  %2987 = vmatpush1.bf16.msra.mxu0 %v2968
  %2988 = vmatprep.subr.bf16.mxu0 0
  %2989 = vmatpush1.bf16.msra.mxu0 %v2967
  %2990 = vmatprep.subr.bf16.mxu0 0
  %2991 = vmatpush1.bf16.msra.mxu0 %v2966
  %2992 = vmatprep.subr.bf16.mxu0 0
  %2993 = vmatpush1.bf16.msra.mxu0 %v2965
  %2994 = vmatprep.subr.bf16.mxu0 0
  %2995 = vmatpush1.bf16.msra.mxu0 %v2964
  %2996 = vmatprep.subr.bf16.mxu0 0
  %2997 = vmatpush2.bf16.msra.mxu0 0
  %2998 = vmatprep.subr.bf16.mxu0 0
  %2999 = vmatpush2.bf16.msra.mxu0 0
  %3000 = vmatprep.subr.bf16.mxu0 0
  %3001 = vmatpush2.bf16.msra.mxu0 0
  %3002 = vmatprep.subr.bf16.mxu0 0
  %3003 = vmatpush2.bf16.msra.mxu0 0
  %3004 = vmatprep.subr.bf16.mxu0 0
  %3005 = vmatpush2.bf16.msra.mxu0 0
  %3006 = vmatprep.subr.bf16.mxu0 0
  %3007 = vmatpush2.bf16.msra.mxu0 0
  %3008 = vmatprep.subr.bf16.mxu0 0
  %3009 = vmatpush2.bf16.msra.mxu0 0
  %3010 = vmatprep.subr.bf16.mxu0 0
  %3011 = vmatpush2.bf16.msra.mxu0 0
  %3012 = vmatprep.mubr.bf16.mxu0 0
  %3013 = vmatmul.mubr.bf16.gmra.mxu0 %v2918
  %v3014 = vpop.f32.mrf.mxu0
  %v3015 = vadd.f32 %v2930, %v3014
  %v3016 = vpop.f32.mrf.mxu0
  %v3017 = vpop.f32.mrf.mxu0
  %v3018 = vadd.f32 %v2930, %v3017
  %v3019 = vpop.f32.mrf.mxu0
  %3020 = vmatprep.mubr.bf16.mxu0 0
  %3021 = vmatmul.mubr.bf16.gmra.mxu0 %v2919
  %v3022 = vpop.f32.mrf.mxu0
  %v3023 = vadd.f32 %v2930, %v3022
  %v3024 = vpop.f32.mrf.mxu0
  %v3025 = vpop.f32.mrf.mxu0
  %v3026 = vadd.f32 %v2930, %v3025
  %v3027 = vpop.f32.mrf.mxu0
  %3028 = vmatprep.mubr.bf16.mxu0 0
  %3029 = vmatmul.mubr.bf16.gmra.mxu0 %v2920
  %v3030 = vpop.f32.mrf.mxu0
  %v3031 = vadd.f32 %v2930, %v3030
  %v3032 = vpop.f32.mrf.mxu0
  %v3033 = vpop.f32.mrf.mxu0
  %v3034 = vadd.f32 %v2930, %v3033
  %v3035 = vpop.f32.mrf.mxu0
  %3036 = vmatprep.mubr.bf16.mxu0 0
  %3037 = vmatmul.mubr.bf16.gmra.mxu0 %v2921
  %v3038 = vpop.f32.mrf.mxu0
  %v3039 = vadd.f32 %v2930, %v3038
  %v3040 = vpop.f32.mrf.mxu0
  %v3041 = vpop.f32.mrf.mxu0
  %v3042 = vadd.f32 %v2930, %v3041
  %v3043 = vpop.f32.mrf.mxu0
  %3044 = vmatprep.mubr.bf16.mxu0 0
  %3045 = vmatmul.mubr.bf16.gmra.mxu0 %v2922
  %v3046 = vpop.f32.mrf.mxu0
  %v3047 = vadd.f32 %v2930, %v3046
  %v3048 = vpop.f32.mrf.mxu0
  %v3049 = vpop.f32.mrf.mxu0
  %v3050 = vadd.f32 %v2930, %v3049
  %v3051 = vpop.f32.mrf.mxu0
  %3052 = vmatprep.mubr.bf16.mxu0 0
  %3053 = vmatmul.mubr.bf16.gmra.mxu0 %v2923
  %v3054 = vpop.f32.mrf.mxu0
  %v3055 = vadd.f32 %v2930, %v3054
  %v3056 = vpop.f32.mrf.mxu0
  %v3057 = vpop.f32.mrf.mxu0
  %v3058 = vadd.f32 %v2930, %v3057
  %v3059 = vpop.f32.mrf.mxu0
  %3060 = vmatprep.mubr.bf16.mxu0 0
  %3061 = vmatmul.mubr.bf16.gmra.mxu0 %v2924
  %v3062 = vpop.f32.mrf.mxu0
  %v3063 = vadd.f32 %v2930, %v3062
  %v3064 = vpop.f32.mrf.mxu0
  %v3065 = vpop.f32.mrf.mxu0
  %v3066 = vadd.f32 %v2930, %v3065
  %v3067 = vpop.f32.mrf.mxu0
  %3068 = vmatprep.mubr.bf16.mxu0 0
  %3069 = vmatmul.mubr.bf16.gmra.mxu0 %v2925
  %v3070 = vpop.f32.mrf.mxu0
  %v3071 = vadd.f32 %v2930, %v3070
  %v3072 = vpop.f32.mrf.mxu0
  %v3073 = vpop.f32.mrf.mxu0
  %v3074 = vadd.f32 %v2930, %v3073
  %v3075 = vpop.f32.mrf.mxu0
  %3076 = vdwg.mxu0
  %vm3077 = vcmp.gt.f32.partialorder %v3015, 0.0
  %vm3078 = vcmp.gt.f32.partialorder %v3018, 0.0
  %vm3079 = vcmp.gt.f32.partialorder %v3023, 0.0
  %vm3080 = vcmp.gt.f32.partialorder %v3026, 0.0
  %vm3081 = vcmp.gt.f32.partialorder %v3031, 0.0
  %vm3082 = vcmp.gt.f32.partialorder %v3034, 0.0
  %vm3083 = vcmp.gt.f32.partialorder %v3039, 0.0
  %vm3084 = vcmp.gt.f32.partialorder %v3042, 0.0
  %vm3085 = vcmp.gt.f32.partialorder %v3047, 0.0
  %vm3086 = vcmp.gt.f32.partialorder %v3050, 0.0
  %vm3087 = vcmp.gt.f32.partialorder %v3055, 0.0
  %vm3088 = vcmp.gt.f32.partialorder %v3058, 0.0
  %vm3089 = vcmp.gt.f32.partialorder %v3063, 0.0
  %vm3090 = vcmp.gt.f32.partialorder %v3066, 0.0
  %vm3091 = vcmp.gt.f32.partialorder %v3071, 0.0
  %vm3092 = vcmp.gt.f32.partialorder %v3074, 0.0
  %v3093 = vmul.f32 %v3015, 0.01
  %v3094 = vmul.f32 %v3018, 0.01
  %v3095 = vmul.f32 %v3023, 0.01
  %v3096 = vmul.f32 %v3026, 0.01
  %v3097 = vmul.f32 %v3031, 0.01
  %v3098 = vmul.f32 %v3034, 0.01
  %v3099 = vmul.f32 %v3039, 0.01
  %v3100 = vmul.f32 %v3042, 0.01
  %v3101 = vmul.f32 %v3047, 0.01
  %v3102 = vmul.f32 %v3050, 0.01
  %v3103 = vmul.f32 %v3055, 0.01
  %v3104 = vmul.f32 %v3058, 0.01
  %v3105 = vmul.f32 %v3063, 0.01
  %v3106 = vmul.f32 %v3066, 0.01
  %v3107 = vmul.f32 %v3071, 0.01
  %v3108 = vmul.f32 %v3074, 0.01
  %v3109 = vsel %vm3077, %v3015, %v3093
  %v3110 = vsel %vm3078, %v3018, %v3094
  %v3111 = vsel %vm3079, %v3023, %v3095
  %v3112 = vsel %vm3080, %v3026, %v3096
  %v3113 = vsel %vm3081, %v3031, %v3097
  %v3114 = vsel %vm3082, %v3034, %v3098
  %v3115 = vsel %vm3083, %v3039, %v3099
  %v3116 = vsel %vm3084, %v3042, %v3100
  %v3117 = vsel %vm3085, %v3047, %v3101
  %v3118 = vsel %vm3086, %v3050, %v3102
  %v3119 = vsel %vm3087, %v3055, %v3103
  %v3120 = vsel %vm3088, %v3058, %v3104
  %v3121 = vsel %vm3089, %v3063, %v3105
  %v3122 = vsel %vm3090, %v3066, %v3106
  %v3123 = vsel %vm3091, %v3071, %v3107
  %v3124 = vsel %vm3092, %v3074, %v3108
  %s3125 = scalar_lea.vmem %s4, 512
  %v3126 = vld [vmem:[%s3125] sm:$0xf]
  %v3127 = vld [vmem:[%s3125 + $0x4] sm:$0xf]
  %v3128 = vld [vmem:[%s3125 + $0x8] sm:$0xf]
  %v3129 = vld [vmem:[%s3125 + $0xc] sm:$0xf]
  %v3130 = vld [vmem:[%s3125 + $0x10] sm:$0xf]
  %v3131 = vld [vmem:[%s3125 + $0x14] sm:$0xf]
  %v3132 = vld [vmem:[%s3125 + $0x18] sm:$0xf]
  %v3133 = vld [vmem:[%s3125 + $0x1c] sm:$0xf]
  %v3134 = vld [vmem:[%s3125 + $0x20] sm:$0xf]
  %v3135 = vld [vmem:[%s3125 + $0x24] sm:$0xf]
  %v3136 = vld [vmem:[%s3125 + $0x28] sm:$0xf]
  %v3137 = vld [vmem:[%s3125 + $0x2c] sm:$0xf]
  %v3138 = vld [vmem:[%s3125 + $0x30] sm:$0xf]
  %v3139 = vld [vmem:[%s3125 + $0x34] sm:$0xf]
  %v3140 = vld [vmem:[%s3125 + $0x38] sm:$0xf]
  %v3141 = vld [vmem:[%s3125 + $0x3c] sm:$0xf]
  %s3142 = scalar_lea.vmem %s5, 8
  %v3143 = vld [vmem:[%s3142] sm:$0x1]
  %v3144 = vpack.c.bf16 %v3110, %v3109
  %v3145 = vpack.c.bf16 %v3112, %v3111
  %v3146 = vpack.c.bf16 %v3114, %v3113
  %v3147 = vpack.c.bf16 %v3116, %v3115
  %v3148 = vpack.c.bf16 %v3118, %v3117
  %v3149 = vpack.c.bf16 %v3120, %v3119
  %v3150 = vpack.c.bf16 %v3122, %v3121
  %v3151 = vpack.c.bf16 %v3124, %v3123
  %3152 = vmatprep.subr.bf16.mxu0 0
  %3153 = vmatpush1.bf16.msra.mxu0 %v3151
  %3154 = vmatprep.subr.bf16.mxu0 0
  %3155 = vmatpush1.bf16.msra.mxu0 %v3150
  %3156 = vmatprep.subr.bf16.mxu0 0
  %3157 = vmatpush1.bf16.msra.mxu0 %v3149
  %3158 = vmatprep.subr.bf16.mxu0 0
  %3159 = vmatpush1.bf16.msra.mxu0 %v3148
  %3160 = vmatprep.subr.bf16.mxu0 0
  %3161 = vmatpush1.bf16.msra.mxu0 %v3147
  %3162 = vmatprep.subr.bf16.mxu0 0
  %3163 = vmatpush1.bf16.msra.mxu0 %v3146
  %3164 = vmatprep.subr.bf16.mxu0 0
  %3165 = vmatpush1.bf16.msra.mxu0 %v3145
  %3166 = vmatprep.subr.bf16.mxu0 0
  %3167 = vmatpush1.bf16.msra.mxu0 %v3144
  %3168 = vmatprep.subr.bf16.mxu0 0
  %3169 = vmatpush2.bf16.msra.mxu0 0
  %3170 = vmatprep.subr.bf16.mxu0 0
  %3171 = vmatpush2.bf16.msra.mxu0 0
  %3172 = vmatprep.subr.bf16.mxu0 0
  %3173 = vmatpush2.bf16.msra.mxu0 0
  %3174 = vmatprep.subr.bf16.mxu0 0
  %3175 = vmatpush2.bf16.msra.mxu0 0
  %3176 = vmatprep.subr.bf16.mxu0 0
  %3177 = vmatpush2.bf16.msra.mxu0 0
  %3178 = vmatprep.subr.bf16.mxu0 0
  %3179 = vmatpush2.bf16.msra.mxu0 0
  %3180 = vmatprep.subr.bf16.mxu0 0
  %3181 = vmatpush2.bf16.msra.mxu0 0
  %3182 = vmatprep.subr.bf16.mxu0 0
  %3183 = vmatpush2.bf16.msra.mxu0 0
  %3184 = vmatprep.mubr.bf16.mxu0 0
  %3185 = vmatmul.mubr.bf16.gmra.mxu0 %v94
  %v3186 = vpop.f32.mrf.mxu0
  %v3187 = vadd.f32 0.0, %v3186
  %v3188 = vpop.f32.mrf.mxu0
  %v3189 = vpop.f32.mrf.mxu0
  %v3190 = vadd.f32 0.0, %v3189
  %v3191 = vpop.f32.mrf.mxu0
  %3192 = vmatprep.mubr.bf16.mxu0 0
  %3193 = vmatmul.mubr.bf16.gmra.mxu0 %v95
  %v3194 = vpop.f32.mrf.mxu0
  %v3195 = vadd.f32 0.0, %v3194
  %v3196 = vpop.f32.mrf.mxu0
  %v3197 = vpop.f32.mrf.mxu0
  %v3198 = vadd.f32 0.0, %v3197
  %v3199 = vpop.f32.mrf.mxu0
  %3200 = vmatprep.mubr.bf16.mxu0 0
  %3201 = vmatmul.mubr.bf16.gmra.mxu0 %v96
  %v3202 = vpop.f32.mrf.mxu0
  %v3203 = vadd.f32 0.0, %v3202
  %v3204 = vpop.f32.mrf.mxu0
  %v3205 = vpop.f32.mrf.mxu0
  %v3206 = vadd.f32 0.0, %v3205
  %v3207 = vpop.f32.mrf.mxu0
  %3208 = vmatprep.mubr.bf16.mxu0 0
  %3209 = vmatmul.mubr.bf16.gmra.mxu0 %v97
  %v3210 = vpop.f32.mrf.mxu0
  %v3211 = vadd.f32 0.0, %v3210
  %v3212 = vpop.f32.mrf.mxu0
  %v3213 = vpop.f32.mrf.mxu0
  %v3214 = vadd.f32 0.0, %v3213
  %v3215 = vpop.f32.mrf.mxu0
  %3216 = vmatprep.mubr.bf16.mxu0 0
  %3217 = vmatmul.mubr.bf16.gmra.mxu0 %v98
  %v3218 = vpop.f32.mrf.mxu0
  %v3219 = vadd.f32 0.0, %v3218
  %v3220 = vpop.f32.mrf.mxu0
  %v3221 = vpop.f32.mrf.mxu0
  %v3222 = vadd.f32 0.0, %v3221
  %v3223 = vpop.f32.mrf.mxu0
  %3224 = vmatprep.mubr.bf16.mxu0 0
  %3225 = vmatmul.mubr.bf16.gmra.mxu0 %v99
  %v3226 = vpop.f32.mrf.mxu0
  %v3227 = vadd.f32 0.0, %v3226
  %v3228 = vpop.f32.mrf.mxu0
  %v3229 = vpop.f32.mrf.mxu0
  %v3230 = vadd.f32 0.0, %v3229
  %v3231 = vpop.f32.mrf.mxu0
  %3232 = vmatprep.mubr.bf16.mxu0 0
  %3233 = vmatmul.mubr.bf16.gmra.mxu0 %v100
  %v3234 = vpop.f32.mrf.mxu0
  %v3235 = vadd.f32 0.0, %v3234
  %v3236 = vpop.f32.mrf.mxu0
  %v3237 = vpop.f32.mrf.mxu0
  %v3238 = vadd.f32 0.0, %v3237
  %v3239 = vpop.f32.mrf.mxu0
  %3240 = vmatprep.mubr.bf16.mxu0 0
  %3241 = vmatmul.mubr.bf16.gmra.mxu0 %v101
  %v3242 = vpop.f32.mrf.mxu0
  %v3243 = vadd.f32 0.0, %v3242
  %v3244 = vpop.f32.mrf.mxu0
  %v3245 = vpop.f32.mrf.mxu0
  %v3246 = vadd.f32 0.0, %v3245
  %v3247 = vpop.f32.mrf.mxu0
  %3248 = vdwg.mxu0
  %v3249 = vpack.c.bf16 %v3190, %v3187
  %v3250 = vpack.c.bf16 %v3198, %v3195
  %v3251 = vpack.c.bf16 %v3206, %v3203
  %v3252 = vpack.c.bf16 %v3214, %v3211
  %v3253 = vpack.c.bf16 %v3222, %v3219
  %v3254 = vpack.c.bf16 %v3230, %v3227
  %v3255 = vpack.c.bf16 %v3238, %v3235
  %v3256 = vpack.c.bf16 %v3246, %v3243
  %v3258 = vlaneseq
  %v3259 = vshrl.u32 %v3258, 7
  %v3260 = vsub.s32 0, %v3259
  %v3261 = vrot.slane %v3143, %v3260
  %v3279 = vunpack.c.l.b16 %v3126
  %v3280 = vunpack.c.l.b16 %v3127
  %v3281 = vunpack.c.l.b16 %v3128
  %v3282 = vunpack.c.l.b16 %v3129
  %v3283 = vunpack.c.l.b16 %v3130
  %v3284 = vunpack.c.l.b16 %v3131
  %v3285 = vunpack.c.l.b16 %v3132
  %v3286 = vunpack.c.l.b16 %v3133
  %v3287 = vunpack.c.l.b16 %v3134
  %v3288 = vunpack.c.l.b16 %v3135
  %v3289 = vunpack.c.l.b16 %v3136
  %v3290 = vunpack.c.l.b16 %v3137
  %v3291 = vunpack.c.l.b16 %v3138
  %v3292 = vunpack.c.l.b16 %v3139
  %v3293 = vunpack.c.l.b16 %v3140
  %v3294 = vunpack.c.l.b16 %v3141
  %v3295 = vpack.c.b16 %v3280, %v3279
  %v3296 = vpack.c.b16 %v3282, %v3281
  %v3297 = vpack.c.b16 %v3284, %v3283
  %v3298 = vpack.c.b16 %v3286, %v3285
  %v3299 = vpack.c.b16 %v3288, %v3287
  %v3300 = vpack.c.b16 %v3290, %v3289
  %v3301 = vpack.c.b16 %v3292, %v3291
  %v3302 = vpack.c.b16 %v3294, %v3293
  %3311 = vmatprep.subr.bf16.mxu0 0
  %3312 = vmatpush1.bf16.msra.mxu0 %v3302
  %3313 = vmatprep.subr.bf16.mxu0 0
  %3314 = vmatpush1.bf16.msra.mxu0 %v3301
  %3315 = vmatprep.subr.bf16.mxu0 0
  %3316 = vmatpush1.bf16.msra.mxu0 %v3300
  %3317 = vmatprep.subr.bf16.mxu0 0
  %3318 = vmatpush1.bf16.msra.mxu0 %v3299
  %3319 = vmatprep.subr.bf16.mxu0 0
  %3320 = vmatpush1.bf16.msra.mxu0 %v3298
  %3321 = vmatprep.subr.bf16.mxu0 0
  %3322 = vmatpush1.bf16.msra.mxu0 %v3297
  %3323 = vmatprep.subr.bf16.mxu0 0
  %3324 = vmatpush1.bf16.msra.mxu0 %v3296
  %3325 = vmatprep.subr.bf16.mxu0 0
  %3326 = vmatpush1.bf16.msra.mxu0 %v3295
  %3327 = vmatprep.subr.bf16.mxu0 0
  %3328 = vmatpush2.bf16.msra.mxu0 0
  %3329 = vmatprep.subr.bf16.mxu0 0
  %3330 = vmatpush2.bf16.msra.mxu0 0
  %3331 = vmatprep.subr.bf16.mxu0 0
  %3332 = vmatpush2.bf16.msra.mxu0 0
  %3333 = vmatprep.subr.bf16.mxu0 0
  %3334 = vmatpush2.bf16.msra.mxu0 0
  %3335 = vmatprep.subr.bf16.mxu0 0
  %3336 = vmatpush2.bf16.msra.mxu0 0
  %3337 = vmatprep.subr.bf16.mxu0 0
  %3338 = vmatpush2.bf16.msra.mxu0 0
  %3339 = vmatprep.subr.bf16.mxu0 0
  %3340 = vmatpush2.bf16.msra.mxu0 0
  %3341 = vmatprep.subr.bf16.mxu0 0
  %3342 = vmatpush2.bf16.msra.mxu0 0
  %3343 = vmatprep.mubr.bf16.mxu0 0
  %3344 = vmatmul.mubr.bf16.gmra.mxu0 %v3249
  %v3345 = vpop.f32.mrf.mxu0
  %v3346 = vadd.f32 %v3261, %v3345
  %v3347 = vpop.f32.mrf.mxu0
  %v3348 = vpop.f32.mrf.mxu0
  %v3349 = vadd.f32 %v3261, %v3348
  %v3350 = vpop.f32.mrf.mxu0
  %3351 = vmatprep.mubr.bf16.mxu0 0
  %3352 = vmatmul.mubr.bf16.gmra.mxu0 %v3250
  %v3353 = vpop.f32.mrf.mxu0
  %v3354 = vadd.f32 %v3261, %v3353
  %v3355 = vpop.f32.mrf.mxu0
  %v3356 = vpop.f32.mrf.mxu0
  %v3357 = vadd.f32 %v3261, %v3356
  %v3358 = vpop.f32.mrf.mxu0
  %3359 = vmatprep.mubr.bf16.mxu0 0
  %3360 = vmatmul.mubr.bf16.gmra.mxu0 %v3251
  %v3361 = vpop.f32.mrf.mxu0
  %v3362 = vadd.f32 %v3261, %v3361
  %v3363 = vpop.f32.mrf.mxu0
  %v3364 = vpop.f32.mrf.mxu0
  %v3365 = vadd.f32 %v3261, %v3364
  %v3366 = vpop.f32.mrf.mxu0
  %3367 = vmatprep.mubr.bf16.mxu0 0
  %3368 = vmatmul.mubr.bf16.gmra.mxu0 %v3252
  %v3369 = vpop.f32.mrf.mxu0
  %v3370 = vadd.f32 %v3261, %v3369
  %v3371 = vpop.f32.mrf.mxu0
  %v3372 = vpop.f32.mrf.mxu0
  %v3373 = vadd.f32 %v3261, %v3372
  %v3374 = vpop.f32.mrf.mxu0
  %3375 = vmatprep.mubr.bf16.mxu0 0
  %3376 = vmatmul.mubr.bf16.gmra.mxu0 %v3253
  %v3377 = vpop.f32.mrf.mxu0
  %v3378 = vadd.f32 %v3261, %v3377
  %v3379 = vpop.f32.mrf.mxu0
  %v3380 = vpop.f32.mrf.mxu0
  %v3381 = vadd.f32 %v3261, %v3380
  %v3382 = vpop.f32.mrf.mxu0
  %3383 = vmatprep.mubr.bf16.mxu0 0
  %3384 = vmatmul.mubr.bf16.gmra.mxu0 %v3254
  %v3385 = vpop.f32.mrf.mxu0
  %v3386 = vadd.f32 %v3261, %v3385
  %v3387 = vpop.f32.mrf.mxu0
  %v3388 = vpop.f32.mrf.mxu0
  %v3389 = vadd.f32 %v3261, %v3388
  %v3390 = vpop.f32.mrf.mxu0
  %3391 = vmatprep.mubr.bf16.mxu0 0
  %3392 = vmatmul.mubr.bf16.gmra.mxu0 %v3255
  %v3393 = vpop.f32.mrf.mxu0
  %v3394 = vadd.f32 %v3261, %v3393
  %v3395 = vpop.f32.mrf.mxu0
  %v3396 = vpop.f32.mrf.mxu0
  %v3397 = vadd.f32 %v3261, %v3396
  %v3398 = vpop.f32.mrf.mxu0
  %3399 = vmatprep.mubr.bf16.mxu0 0
  %3400 = vmatmul.mubr.bf16.gmra.mxu0 %v3256
  %v3401 = vpop.f32.mrf.mxu0
  %v3402 = vadd.f32 %v3261, %v3401
  %v3403 = vpop.f32.mrf.mxu0
  %v3404 = vpop.f32.mrf.mxu0
  %v3405 = vadd.f32 %v3261, %v3404
  %v3406 = vpop.f32.mrf.mxu0
  %3407 = vdwg.mxu0
  %vm3408 = vcmp.gt.f32.partialorder %v3346, 0.0
  %vm3409 = vcmp.gt.f32.partialorder %v3349, 0.0
  %vm3410 = vcmp.gt.f32.partialorder %v3354, 0.0
  %vm3411 = vcmp.gt.f32.partialorder %v3357, 0.0
  %vm3412 = vcmp.gt.f32.partialorder %v3362, 0.0
  %vm3413 = vcmp.gt.f32.partialorder %v3365, 0.0
  %vm3414 = vcmp.gt.f32.partialorder %v3370, 0.0
  %vm3415 = vcmp.gt.f32.partialorder %v3373, 0.0
  %vm3416 = vcmp.gt.f32.partialorder %v3378, 0.0
  %vm3417 = vcmp.gt.f32.partialorder %v3381, 0.0
  %vm3418 = vcmp.gt.f32.partialorder %v3386, 0.0
  %vm3419 = vcmp.gt.f32.partialorder %v3389, 0.0
  %vm3420 = vcmp.gt.f32.partialorder %v3394, 0.0
  %vm3421 = vcmp.gt.f32.partialorder %v3397, 0.0
  %vm3422 = vcmp.gt.f32.partialorder %v3402, 0.0
  %vm3423 = vcmp.gt.f32.partialorder %v3405, 0.0
  %v3424 = vmul.f32 %v3346, 0.01
  %v3425 = vmul.f32 %v3349, 0.01
  %v3426 = vmul.f32 %v3354, 0.01
  %v3427 = vmul.f32 %v3357, 0.01
  %v3428 = vmul.f32 %v3362, 0.01
  %v3429 = vmul.f32 %v3365, 0.01
  %v3430 = vmul.f32 %v3370, 0.01
  %v3431 = vmul.f32 %v3373, 0.01
  %v3432 = vmul.f32 %v3378, 0.01
  %v3433 = vmul.f32 %v3381, 0.01
  %v3434 = vmul.f32 %v3386, 0.01
  %v3435 = vmul.f32 %v3389, 0.01
  %v3436 = vmul.f32 %v3394, 0.01
  %v3437 = vmul.f32 %v3397, 0.01
  %v3438 = vmul.f32 %v3402, 0.01
  %v3439 = vmul.f32 %v3405, 0.01
  %v3440 = vsel %vm3408, %v3346, %v3424
  %v3441 = vsel %vm3409, %v3349, %v3425
  %v3442 = vsel %vm3410, %v3354, %v3426
  %v3443 = vsel %vm3411, %v3357, %v3427
  %v3444 = vsel %vm3412, %v3362, %v3428
  %v3445 = vsel %vm3413, %v3365, %v3429
  %v3446 = vsel %vm3414, %v3370, %v3430
  %v3447 = vsel %vm3415, %v3373, %v3431
  %v3448 = vsel %vm3416, %v3378, %v3432
  %v3449 = vsel %vm3417, %v3381, %v3433
  %v3450 = vsel %vm3418, %v3386, %v3434
  %v3451 = vsel %vm3419, %v3389, %v3435
  %v3452 = vsel %vm3420, %v3394, %v3436
  %v3453 = vsel %vm3421, %v3397, %v3437
  %v3454 = vsel %vm3422, %v3402, %v3438
  %v3455 = vsel %vm3423, %v3405, %v3439
  %s3456 = scalar_lea.vmem %s4, 576
  %v3457 = vld [vmem:[%s3456] sm:$0xf]
  %v3458 = vld [vmem:[%s3456 + $0x4] sm:$0xf]
  %v3459 = vld [vmem:[%s3456 + $0x8] sm:$0xf]
  %v3460 = vld [vmem:[%s3456 + $0xc] sm:$0xf]
  %v3461 = vld [vmem:[%s3456 + $0x10] sm:$0xf]
  %v3462 = vld [vmem:[%s3456 + $0x14] sm:$0xf]
  %v3463 = vld [vmem:[%s3456 + $0x18] sm:$0xf]
  %v3464 = vld [vmem:[%s3456 + $0x1c] sm:$0xf]
  %v3465 = vld [vmem:[%s3456 + $0x20] sm:$0xf]
  %v3466 = vld [vmem:[%s3456 + $0x24] sm:$0xf]
  %v3467 = vld [vmem:[%s3456 + $0x28] sm:$0xf]
  %v3468 = vld [vmem:[%s3456 + $0x2c] sm:$0xf]
  %v3469 = vld [vmem:[%s3456 + $0x30] sm:$0xf]
  %v3470 = vld [vmem:[%s3456 + $0x34] sm:$0xf]
  %v3471 = vld [vmem:[%s3456 + $0x38] sm:$0xf]
  %v3472 = vld [vmem:[%s3456 + $0x3c] sm:$0xf]
  %s3473 = scalar_lea.vmem %s5, 9
  %v3474 = vld [vmem:[%s3473] sm:$0x1]
  %v3475 = vpack.c.bf16 %v3441, %v3440
  %v3476 = vpack.c.bf16 %v3443, %v3442
  %v3477 = vpack.c.bf16 %v3445, %v3444
  %v3478 = vpack.c.bf16 %v3447, %v3446
  %v3479 = vpack.c.bf16 %v3449, %v3448
  %v3480 = vpack.c.bf16 %v3451, %v3450
  %v3481 = vpack.c.bf16 %v3453, %v3452
  %v3482 = vpack.c.bf16 %v3455, %v3454
  %3483 = vmatprep.subr.bf16.mxu0 0
  %3484 = vmatpush1.bf16.msra.mxu0 %v3482
  %3485 = vmatprep.subr.bf16.mxu0 0
  %3486 = vmatpush1.bf16.msra.mxu0 %v3481
  %3487 = vmatprep.subr.bf16.mxu0 0
  %3488 = vmatpush1.bf16.msra.mxu0 %v3480
  %3489 = vmatprep.subr.bf16.mxu0 0
  %3490 = vmatpush1.bf16.msra.mxu0 %v3479
  %3491 = vmatprep.subr.bf16.mxu0 0
  %3492 = vmatpush1.bf16.msra.mxu0 %v3478
  %3493 = vmatprep.subr.bf16.mxu0 0
  %3494 = vmatpush1.bf16.msra.mxu0 %v3477
  %3495 = vmatprep.subr.bf16.mxu0 0
  %3496 = vmatpush1.bf16.msra.mxu0 %v3476
  %3497 = vmatprep.subr.bf16.mxu0 0
  %3498 = vmatpush1.bf16.msra.mxu0 %v3475
  %3499 = vmatprep.subr.bf16.mxu0 0
  %3500 = vmatpush2.bf16.msra.mxu0 0
  %3501 = vmatprep.subr.bf16.mxu0 0
  %3502 = vmatpush2.bf16.msra.mxu0 0
  %3503 = vmatprep.subr.bf16.mxu0 0
  %3504 = vmatpush2.bf16.msra.mxu0 0
  %3505 = vmatprep.subr.bf16.mxu0 0
  %3506 = vmatpush2.bf16.msra.mxu0 0
  %3507 = vmatprep.subr.bf16.mxu0 0
  %3508 = vmatpush2.bf16.msra.mxu0 0
  %3509 = vmatprep.subr.bf16.mxu0 0
  %3510 = vmatpush2.bf16.msra.mxu0 0
  %3511 = vmatprep.subr.bf16.mxu0 0
  %3512 = vmatpush2.bf16.msra.mxu0 0
  %3513 = vmatprep.subr.bf16.mxu0 0
  %3514 = vmatpush2.bf16.msra.mxu0 0
  %3515 = vmatprep.mubr.bf16.mxu0 0
  %3516 = vmatmul.mubr.bf16.gmra.mxu0 %v94
  %v3517 = vpop.f32.mrf.mxu0
  %v3518 = vadd.f32 0.0, %v3517
  %v3519 = vpop.f32.mrf.mxu0
  %v3520 = vpop.f32.mrf.mxu0
  %v3521 = vadd.f32 0.0, %v3520
  %v3522 = vpop.f32.mrf.mxu0
  %3523 = vmatprep.mubr.bf16.mxu0 0
  %3524 = vmatmul.mubr.bf16.gmra.mxu0 %v95
  %v3525 = vpop.f32.mrf.mxu0
  %v3526 = vadd.f32 0.0, %v3525
  %v3527 = vpop.f32.mrf.mxu0
  %v3528 = vpop.f32.mrf.mxu0
  %v3529 = vadd.f32 0.0, %v3528
  %v3530 = vpop.f32.mrf.mxu0
  %3531 = vmatprep.mubr.bf16.mxu0 0
  %3532 = vmatmul.mubr.bf16.gmra.mxu0 %v96
  %v3533 = vpop.f32.mrf.mxu0
  %v3534 = vadd.f32 0.0, %v3533
  %v3535 = vpop.f32.mrf.mxu0
  %v3536 = vpop.f32.mrf.mxu0
  %v3537 = vadd.f32 0.0, %v3536
  %v3538 = vpop.f32.mrf.mxu0
  %3539 = vmatprep.mubr.bf16.mxu0 0
  %3540 = vmatmul.mubr.bf16.gmra.mxu0 %v97
  %v3541 = vpop.f32.mrf.mxu0
  %v3542 = vadd.f32 0.0, %v3541
  %v3543 = vpop.f32.mrf.mxu0
  %v3544 = vpop.f32.mrf.mxu0
  %v3545 = vadd.f32 0.0, %v3544
  %v3546 = vpop.f32.mrf.mxu0
  %3547 = vmatprep.mubr.bf16.mxu0 0
  %3548 = vmatmul.mubr.bf16.gmra.mxu0 %v98
  %v3549 = vpop.f32.mrf.mxu0
  %v3550 = vadd.f32 0.0, %v3549
  %v3551 = vpop.f32.mrf.mxu0
  %v3552 = vpop.f32.mrf.mxu0
  %v3553 = vadd.f32 0.0, %v3552
  %v3554 = vpop.f32.mrf.mxu0
  %3555 = vmatprep.mubr.bf16.mxu0 0
  %3556 = vmatmul.mubr.bf16.gmra.mxu0 %v99
  %v3557 = vpop.f32.mrf.mxu0
  %v3558 = vadd.f32 0.0, %v3557
  %v3559 = vpop.f32.mrf.mxu0
  %v3560 = vpop.f32.mrf.mxu0
  %v3561 = vadd.f32 0.0, %v3560
  %v3562 = vpop.f32.mrf.mxu0
  %3563 = vmatprep.mubr.bf16.mxu0 0
  %3564 = vmatmul.mubr.bf16.gmra.mxu0 %v100
  %v3565 = vpop.f32.mrf.mxu0
  %v3566 = vadd.f32 0.0, %v3565
  %v3567 = vpop.f32.mrf.mxu0
  %v3568 = vpop.f32.mrf.mxu0
  %v3569 = vadd.f32 0.0, %v3568
  %v3570 = vpop.f32.mrf.mxu0
  %3571 = vmatprep.mubr.bf16.mxu0 0
  %3572 = vmatmul.mubr.bf16.gmra.mxu0 %v101
  %v3573 = vpop.f32.mrf.mxu0
  %v3574 = vadd.f32 0.0, %v3573
  %v3575 = vpop.f32.mrf.mxu0
  %v3576 = vpop.f32.mrf.mxu0
  %v3577 = vadd.f32 0.0, %v3576
  %v3578 = vpop.f32.mrf.mxu0
  %3579 = vdwg.mxu0
  %v3580 = vpack.c.bf16 %v3521, %v3518
  %v3581 = vpack.c.bf16 %v3529, %v3526
  %v3582 = vpack.c.bf16 %v3537, %v3534
  %v3583 = vpack.c.bf16 %v3545, %v3542
  %v3584 = vpack.c.bf16 %v3553, %v3550
  %v3585 = vpack.c.bf16 %v3561, %v3558
  %v3586 = vpack.c.bf16 %v3569, %v3566
  %v3587 = vpack.c.bf16 %v3577, %v3574
  %v3589 = vlaneseq
  %v3590 = vshrl.u32 %v3589, 7
  %v3591 = vsub.s32 0, %v3590
  %v3592 = vrot.slane %v3474, %v3591
  %v3610 = vunpack.c.l.b16 %v3457
  %v3611 = vunpack.c.l.b16 %v3458
  %v3612 = vunpack.c.l.b16 %v3459
  %v3613 = vunpack.c.l.b16 %v3460
  %v3614 = vunpack.c.l.b16 %v3461
  %v3615 = vunpack.c.l.b16 %v3462
  %v3616 = vunpack.c.l.b16 %v3463
  %v3617 = vunpack.c.l.b16 %v3464
  %v3618 = vunpack.c.l.b16 %v3465
  %v3619 = vunpack.c.l.b16 %v3466
  %v3620 = vunpack.c.l.b16 %v3467
  %v3621 = vunpack.c.l.b16 %v3468
  %v3622 = vunpack.c.l.b16 %v3469
  %v3623 = vunpack.c.l.b16 %v3470
  %v3624 = vunpack.c.l.b16 %v3471
  %v3625 = vunpack.c.l.b16 %v3472
  %v3626 = vpack.c.b16 %v3611, %v3610
  %v3627 = vpack.c.b16 %v3613, %v3612
  %v3628 = vpack.c.b16 %v3615, %v3614
  %v3629 = vpack.c.b16 %v3617, %v3616
  %v3630 = vpack.c.b16 %v3619, %v3618
  %v3631 = vpack.c.b16 %v3621, %v3620
  %v3632 = vpack.c.b16 %v3623, %v3622
  %v3633 = vpack.c.b16 %v3625, %v3624
  %3642 = vmatprep.subr.bf16.mxu0 0
  %3643 = vmatpush1.bf16.msra.mxu0 %v3633
  %3644 = vmatprep.subr.bf16.mxu0 0
  %3645 = vmatpush1.bf16.msra.mxu0 %v3632
  %3646 = vmatprep.subr.bf16.mxu0 0
  %3647 = vmatpush1.bf16.msra.mxu0 %v3631
  %3648 = vmatprep.subr.bf16.mxu0 0
  %3649 = vmatpush1.bf16.msra.mxu0 %v3630
  %3650 = vmatprep.subr.bf16.mxu0 0
  %3651 = vmatpush1.bf16.msra.mxu0 %v3629
  %3652 = vmatprep.subr.bf16.mxu0 0
  %3653 = vmatpush1.bf16.msra.mxu0 %v3628
  %3654 = vmatprep.subr.bf16.mxu0 0
  %3655 = vmatpush1.bf16.msra.mxu0 %v3627
  %3656 = vmatprep.subr.bf16.mxu0 0
  %3657 = vmatpush1.bf16.msra.mxu0 %v3626
  %3658 = vmatprep.subr.bf16.mxu0 0
  %3659 = vmatpush2.bf16.msra.mxu0 0
  %3660 = vmatprep.subr.bf16.mxu0 0
  %3661 = vmatpush2.bf16.msra.mxu0 0
  %3662 = vmatprep.subr.bf16.mxu0 0
  %3663 = vmatpush2.bf16.msra.mxu0 0
  %3664 = vmatprep.subr.bf16.mxu0 0
  %3665 = vmatpush2.bf16.msra.mxu0 0
  %3666 = vmatprep.subr.bf16.mxu0 0
  %3667 = vmatpush2.bf16.msra.mxu0 0
  %3668 = vmatprep.subr.bf16.mxu0 0
  %3669 = vmatpush2.bf16.msra.mxu0 0
  %3670 = vmatprep.subr.bf16.mxu0 0
  %3671 = vmatpush2.bf16.msra.mxu0 0
  %3672 = vmatprep.subr.bf16.mxu0 0
  %3673 = vmatpush2.bf16.msra.mxu0 0
  %3674 = vmatprep.mubr.bf16.mxu0 0
  %3675 = vmatmul.mubr.bf16.gmra.mxu0 %v3580
  %v3676 = vpop.f32.mrf.mxu0
  %v3677 = vadd.f32 %v3592, %v3676
  %v3678 = vpop.f32.mrf.mxu0
  %v3679 = vpop.f32.mrf.mxu0
  %v3680 = vadd.f32 %v3592, %v3679
  %v3681 = vpop.f32.mrf.mxu0
  %3682 = vmatprep.mubr.bf16.mxu0 0
  %3683 = vmatmul.mubr.bf16.gmra.mxu0 %v3581
  %v3684 = vpop.f32.mrf.mxu0
  %v3685 = vadd.f32 %v3592, %v3684
  %v3686 = vpop.f32.mrf.mxu0
  %v3687 = vpop.f32.mrf.mxu0
  %v3688 = vadd.f32 %v3592, %v3687
  %v3689 = vpop.f32.mrf.mxu0
  %3690 = vmatprep.mubr.bf16.mxu0 0
  %3691 = vmatmul.mubr.bf16.gmra.mxu0 %v3582
  %v3692 = vpop.f32.mrf.mxu0
  %v3693 = vadd.f32 %v3592, %v3692
  %v3694 = vpop.f32.mrf.mxu0
  %v3695 = vpop.f32.mrf.mxu0
  %v3696 = vadd.f32 %v3592, %v3695
  %v3697 = vpop.f32.mrf.mxu0
  %3698 = vmatprep.mubr.bf16.mxu0 0
  %3699 = vmatmul.mubr.bf16.gmra.mxu0 %v3583
  %v3700 = vpop.f32.mrf.mxu0
  %v3701 = vadd.f32 %v3592, %v3700
  %v3702 = vpop.f32.mrf.mxu0
  %v3703 = vpop.f32.mrf.mxu0
  %v3704 = vadd.f32 %v3592, %v3703
  %v3705 = vpop.f32.mrf.mxu0
  %3706 = vmatprep.mubr.bf16.mxu0 0
  %3707 = vmatmul.mubr.bf16.gmra.mxu0 %v3584
  %v3708 = vpop.f32.mrf.mxu0
  %v3709 = vadd.f32 %v3592, %v3708
  %v3710 = vpop.f32.mrf.mxu0
  %v3711 = vpop.f32.mrf.mxu0
  %v3712 = vadd.f32 %v3592, %v3711
  %v3713 = vpop.f32.mrf.mxu0
  %3714 = vmatprep.mubr.bf16.mxu0 0
  %3715 = vmatmul.mubr.bf16.gmra.mxu0 %v3585
  %v3716 = vpop.f32.mrf.mxu0
  %v3717 = vadd.f32 %v3592, %v3716
  %v3718 = vpop.f32.mrf.mxu0
  %v3719 = vpop.f32.mrf.mxu0
  %v3720 = vadd.f32 %v3592, %v3719
  %v3721 = vpop.f32.mrf.mxu0
  %3722 = vmatprep.mubr.bf16.mxu0 0
  %3723 = vmatmul.mubr.bf16.gmra.mxu0 %v3586
  %v3724 = vpop.f32.mrf.mxu0
  %v3725 = vadd.f32 %v3592, %v3724
  %v3726 = vpop.f32.mrf.mxu0
  %v3727 = vpop.f32.mrf.mxu0
  %v3728 = vadd.f32 %v3592, %v3727
  %v3729 = vpop.f32.mrf.mxu0
  %3730 = vmatprep.mubr.bf16.mxu0 0
  %3731 = vmatmul.mubr.bf16.gmra.mxu0 %v3587
  %v3732 = vpop.f32.mrf.mxu0
  %v3733 = vadd.f32 %v3592, %v3732
  %v3734 = vpop.f32.mrf.mxu0
  %v3735 = vpop.f32.mrf.mxu0
  %v3736 = vadd.f32 %v3592, %v3735
  %v3737 = vpop.f32.mrf.mxu0
  %3738 = vdwg.mxu0
  %vm3739 = vcmp.gt.f32.partialorder %v3677, 0.0
  %vm3740 = vcmp.gt.f32.partialorder %v3680, 0.0
  %vm3741 = vcmp.gt.f32.partialorder %v3685, 0.0
  %vm3742 = vcmp.gt.f32.partialorder %v3688, 0.0
  %vm3743 = vcmp.gt.f32.partialorder %v3693, 0.0
  %vm3744 = vcmp.gt.f32.partialorder %v3696, 0.0
  %vm3745 = vcmp.gt.f32.partialorder %v3701, 0.0
  %vm3746 = vcmp.gt.f32.partialorder %v3704, 0.0
  %vm3747 = vcmp.gt.f32.partialorder %v3709, 0.0
  %vm3748 = vcmp.gt.f32.partialorder %v3712, 0.0
  %vm3749 = vcmp.gt.f32.partialorder %v3717, 0.0
  %vm3750 = vcmp.gt.f32.partialorder %v3720, 0.0
  %vm3751 = vcmp.gt.f32.partialorder %v3725, 0.0
  %vm3752 = vcmp.gt.f32.partialorder %v3728, 0.0
  %vm3753 = vcmp.gt.f32.partialorder %v3733, 0.0
  %vm3754 = vcmp.gt.f32.partialorder %v3736, 0.0
  %v3755 = vmul.f32 %v3677, 0.01
  %v3756 = vmul.f32 %v3680, 0.01
  %v3757 = vmul.f32 %v3685, 0.01
  %v3758 = vmul.f32 %v3688, 0.01
  %v3759 = vmul.f32 %v3693, 0.01
  %v3760 = vmul.f32 %v3696, 0.01
  %v3761 = vmul.f32 %v3701, 0.01
  %v3762 = vmul.f32 %v3704, 0.01
  %v3763 = vmul.f32 %v3709, 0.01
  %v3764 = vmul.f32 %v3712, 0.01
  %v3765 = vmul.f32 %v3717, 0.01
  %v3766 = vmul.f32 %v3720, 0.01
  %v3767 = vmul.f32 %v3725, 0.01
  %v3768 = vmul.f32 %v3728, 0.01
  %v3769 = vmul.f32 %v3733, 0.01
  %v3770 = vmul.f32 %v3736, 0.01
  %v3771 = vsel %vm3739, %v3677, %v3755
  %v3772 = vsel %vm3740, %v3680, %v3756
  %v3773 = vsel %vm3741, %v3685, %v3757
  %v3774 = vsel %vm3742, %v3688, %v3758
  %v3775 = vsel %vm3743, %v3693, %v3759
  %v3776 = vsel %vm3744, %v3696, %v3760
  %v3777 = vsel %vm3745, %v3701, %v3761
  %v3778 = vsel %vm3746, %v3704, %v3762
  %v3779 = vsel %vm3747, %v3709, %v3763
  %v3780 = vsel %vm3748, %v3712, %v3764
  %v3781 = vsel %vm3749, %v3717, %v3765
  %v3782 = vsel %vm3750, %v3720, %v3766
  %v3783 = vsel %vm3751, %v3725, %v3767
  %v3784 = vsel %vm3752, %v3728, %v3768
  %v3785 = vsel %vm3753, %v3733, %v3769
  %v3786 = vsel %vm3754, %v3736, %v3770
  %s3787 = scalar_lea.vmem %s4, 640
  %v3788 = vld [vmem:[%s3787] sm:$0xf]
  %v3789 = vld [vmem:[%s3787 + $0x4] sm:$0xf]
  %v3790 = vld [vmem:[%s3787 + $0x8] sm:$0xf]
  %v3791 = vld [vmem:[%s3787 + $0xc] sm:$0xf]
  %v3792 = vld [vmem:[%s3787 + $0x10] sm:$0xf]
  %v3793 = vld [vmem:[%s3787 + $0x14] sm:$0xf]
  %v3794 = vld [vmem:[%s3787 + $0x18] sm:$0xf]
  %v3795 = vld [vmem:[%s3787 + $0x1c] sm:$0xf]
  %v3796 = vld [vmem:[%s3787 + $0x20] sm:$0xf]
  %v3797 = vld [vmem:[%s3787 + $0x24] sm:$0xf]
  %v3798 = vld [vmem:[%s3787 + $0x28] sm:$0xf]
  %v3799 = vld [vmem:[%s3787 + $0x2c] sm:$0xf]
  %v3800 = vld [vmem:[%s3787 + $0x30] sm:$0xf]
  %v3801 = vld [vmem:[%s3787 + $0x34] sm:$0xf]
  %v3802 = vld [vmem:[%s3787 + $0x38] sm:$0xf]
  %v3803 = vld [vmem:[%s3787 + $0x3c] sm:$0xf]
  %s3804 = scalar_lea.vmem %s5, 10
  %v3805 = vld [vmem:[%s3804] sm:$0x1]
  %v3806 = vpack.c.bf16 %v3772, %v3771
  %v3807 = vpack.c.bf16 %v3774, %v3773
  %v3808 = vpack.c.bf16 %v3776, %v3775
  %v3809 = vpack.c.bf16 %v3778, %v3777
  %v3810 = vpack.c.bf16 %v3780, %v3779
  %v3811 = vpack.c.bf16 %v3782, %v3781
  %v3812 = vpack.c.bf16 %v3784, %v3783
  %v3813 = vpack.c.bf16 %v3786, %v3785
  %3814 = vmatprep.subr.bf16.mxu0 0
  %3815 = vmatpush1.bf16.msra.mxu0 %v3813
  %3816 = vmatprep.subr.bf16.mxu0 0
  %3817 = vmatpush1.bf16.msra.mxu0 %v3812
  %3818 = vmatprep.subr.bf16.mxu0 0
  %3819 = vmatpush1.bf16.msra.mxu0 %v3811
  %3820 = vmatprep.subr.bf16.mxu0 0
  %3821 = vmatpush1.bf16.msra.mxu0 %v3810
  %3822 = vmatprep.subr.bf16.mxu0 0
  %3823 = vmatpush1.bf16.msra.mxu0 %v3809
  %3824 = vmatprep.subr.bf16.mxu0 0
  %3825 = vmatpush1.bf16.msra.mxu0 %v3808
  %3826 = vmatprep.subr.bf16.mxu0 0
  %3827 = vmatpush1.bf16.msra.mxu0 %v3807
  %3828 = vmatprep.subr.bf16.mxu0 0
  %3829 = vmatpush1.bf16.msra.mxu0 %v3806
  %3830 = vmatprep.subr.bf16.mxu0 0
  %3831 = vmatpush2.bf16.msra.mxu0 0
  %3832 = vmatprep.subr.bf16.mxu0 0
  %3833 = vmatpush2.bf16.msra.mxu0 0
  %3834 = vmatprep.subr.bf16.mxu0 0
  %3835 = vmatpush2.bf16.msra.mxu0 0
  %3836 = vmatprep.subr.bf16.mxu0 0
  %3837 = vmatpush2.bf16.msra.mxu0 0
  %3838 = vmatprep.subr.bf16.mxu0 0
  %3839 = vmatpush2.bf16.msra.mxu0 0
  %3840 = vmatprep.subr.bf16.mxu0 0
  %3841 = vmatpush2.bf16.msra.mxu0 0
  %3842 = vmatprep.subr.bf16.mxu0 0
  %3843 = vmatpush2.bf16.msra.mxu0 0
  %3844 = vmatprep.subr.bf16.mxu0 0
  %3845 = vmatpush2.bf16.msra.mxu0 0
  %3846 = vmatprep.mubr.bf16.mxu0 0
  %3847 = vmatmul.mubr.bf16.gmra.mxu0 %v94
  %v3848 = vpop.f32.mrf.mxu0
  %v3849 = vadd.f32 0.0, %v3848
  %v3850 = vpop.f32.mrf.mxu0
  %v3851 = vpop.f32.mrf.mxu0
  %v3852 = vadd.f32 0.0, %v3851
  %v3853 = vpop.f32.mrf.mxu0
  %3854 = vmatprep.mubr.bf16.mxu0 0
  %3855 = vmatmul.mubr.bf16.gmra.mxu0 %v95
  %v3856 = vpop.f32.mrf.mxu0
  %v3857 = vadd.f32 0.0, %v3856
  %v3858 = vpop.f32.mrf.mxu0
  %v3859 = vpop.f32.mrf.mxu0
  %v3860 = vadd.f32 0.0, %v3859
  %v3861 = vpop.f32.mrf.mxu0
  %3862 = vmatprep.mubr.bf16.mxu0 0
  %3863 = vmatmul.mubr.bf16.gmra.mxu0 %v96
  %v3864 = vpop.f32.mrf.mxu0
  %v3865 = vadd.f32 0.0, %v3864
  %v3866 = vpop.f32.mrf.mxu0
  %v3867 = vpop.f32.mrf.mxu0
  %v3868 = vadd.f32 0.0, %v3867
  %v3869 = vpop.f32.mrf.mxu0
  %3870 = vmatprep.mubr.bf16.mxu0 0
  %3871 = vmatmul.mubr.bf16.gmra.mxu0 %v97
  %v3872 = vpop.f32.mrf.mxu0
  %v3873 = vadd.f32 0.0, %v3872
  %v3874 = vpop.f32.mrf.mxu0
  %v3875 = vpop.f32.mrf.mxu0
  %v3876 = vadd.f32 0.0, %v3875
  %v3877 = vpop.f32.mrf.mxu0
  %3878 = vmatprep.mubr.bf16.mxu0 0
  %3879 = vmatmul.mubr.bf16.gmra.mxu0 %v98
  %v3880 = vpop.f32.mrf.mxu0
  %v3881 = vadd.f32 0.0, %v3880
  %v3882 = vpop.f32.mrf.mxu0
  %v3883 = vpop.f32.mrf.mxu0
  %v3884 = vadd.f32 0.0, %v3883
  %v3885 = vpop.f32.mrf.mxu0
  %3886 = vmatprep.mubr.bf16.mxu0 0
  %3887 = vmatmul.mubr.bf16.gmra.mxu0 %v99
  %v3888 = vpop.f32.mrf.mxu0
  %v3889 = vadd.f32 0.0, %v3888
  %v3890 = vpop.f32.mrf.mxu0
  %v3891 = vpop.f32.mrf.mxu0
  %v3892 = vadd.f32 0.0, %v3891
  %v3893 = vpop.f32.mrf.mxu0
  %3894 = vmatprep.mubr.bf16.mxu0 0
  %3895 = vmatmul.mubr.bf16.gmra.mxu0 %v100
  %v3896 = vpop.f32.mrf.mxu0
  %v3897 = vadd.f32 0.0, %v3896
  %v3898 = vpop.f32.mrf.mxu0
  %v3899 = vpop.f32.mrf.mxu0
  %v3900 = vadd.f32 0.0, %v3899
  %v3901 = vpop.f32.mrf.mxu0
  %3902 = vmatprep.mubr.bf16.mxu0 0
  %3903 = vmatmul.mubr.bf16.gmra.mxu0 %v101
  %v3904 = vpop.f32.mrf.mxu0
  %v3905 = vadd.f32 0.0, %v3904
  %v3906 = vpop.f32.mrf.mxu0
  %v3907 = vpop.f32.mrf.mxu0
  %v3908 = vadd.f32 0.0, %v3907
  %v3909 = vpop.f32.mrf.mxu0
  %3910 = vdwg.mxu0
  %v3911 = vpack.c.bf16 %v3852, %v3849
  %v3912 = vpack.c.bf16 %v3860, %v3857
  %v3913 = vpack.c.bf16 %v3868, %v3865
  %v3914 = vpack.c.bf16 %v3876, %v3873
  %v3915 = vpack.c.bf16 %v3884, %v3881
  %v3916 = vpack.c.bf16 %v3892, %v3889
  %v3917 = vpack.c.bf16 %v3900, %v3897
  %v3918 = vpack.c.bf16 %v3908, %v3905
  %v3920 = vlaneseq
  %v3921 = vshrl.u32 %v3920, 7
  %v3922 = vsub.s32 0, %v3921
  %v3923 = vrot.slane %v3805, %v3922
  %v3941 = vunpack.c.l.b16 %v3788
  %v3942 = vunpack.c.l.b16 %v3789
  %v3943 = vunpack.c.l.b16 %v3790
  %v3944 = vunpack.c.l.b16 %v3791
  %v3945 = vunpack.c.l.b16 %v3792
  %v3946 = vunpack.c.l.b16 %v3793
  %v3947 = vunpack.c.l.b16 %v3794
  %v3948 = vunpack.c.l.b16 %v3795
  %v3949 = vunpack.c.l.b16 %v3796
  %v3950 = vunpack.c.l.b16 %v3797
  %v3951 = vunpack.c.l.b16 %v3798
  %v3952 = vunpack.c.l.b16 %v3799
  %v3953 = vunpack.c.l.b16 %v3800
  %v3954 = vunpack.c.l.b16 %v3801
  %v3955 = vunpack.c.l.b16 %v3802
  %v3956 = vunpack.c.l.b16 %v3803
  %v3957 = vpack.c.b16 %v3942, %v3941
  %v3958 = vpack.c.b16 %v3944, %v3943
  %v3959 = vpack.c.b16 %v3946, %v3945
  %v3960 = vpack.c.b16 %v3948, %v3947
  %v3961 = vpack.c.b16 %v3950, %v3949
  %v3962 = vpack.c.b16 %v3952, %v3951
  %v3963 = vpack.c.b16 %v3954, %v3953
  %v3964 = vpack.c.b16 %v3956, %v3955
  %3973 = vmatprep.subr.bf16.mxu0 0
  %3974 = vmatpush1.bf16.msra.mxu0 %v3964
  %3975 = vmatprep.subr.bf16.mxu0 0
  %3976 = vmatpush1.bf16.msra.mxu0 %v3963
  %3977 = vmatprep.subr.bf16.mxu0 0
  %3978 = vmatpush1.bf16.msra.mxu0 %v3962
  %3979 = vmatprep.subr.bf16.mxu0 0
  %3980 = vmatpush1.bf16.msra.mxu0 %v3961
  %3981 = vmatprep.subr.bf16.mxu0 0
  %3982 = vmatpush1.bf16.msra.mxu0 %v3960
  %3983 = vmatprep.subr.bf16.mxu0 0
  %3984 = vmatpush1.bf16.msra.mxu0 %v3959
  %3985 = vmatprep.subr.bf16.mxu0 0
  %3986 = vmatpush1.bf16.msra.mxu0 %v3958
  %3987 = vmatprep.subr.bf16.mxu0 0
  %3988 = vmatpush1.bf16.msra.mxu0 %v3957
  %3989 = vmatprep.subr.bf16.mxu0 0
  %3990 = vmatpush2.bf16.msra.mxu0 0
  %3991 = vmatprep.subr.bf16.mxu0 0
  %3992 = vmatpush2.bf16.msra.mxu0 0
  %3993 = vmatprep.subr.bf16.mxu0 0
  %3994 = vmatpush2.bf16.msra.mxu0 0
  %3995 = vmatprep.subr.bf16.mxu0 0
  %3996 = vmatpush2.bf16.msra.mxu0 0
  %3997 = vmatprep.subr.bf16.mxu0 0
  %3998 = vmatpush2.bf16.msra.mxu0 0
  %3999 = vmatprep.subr.bf16.mxu0 0
  %4000 = vmatpush2.bf16.msra.mxu0 0
  %4001 = vmatprep.subr.bf16.mxu0 0
  %4002 = vmatpush2.bf16.msra.mxu0 0
  %4003 = vmatprep.subr.bf16.mxu0 0
  %4004 = vmatpush2.bf16.msra.mxu0 0
  %4005 = vmatprep.mubr.bf16.mxu0 0
  %4006 = vmatmul.mubr.bf16.gmra.mxu0 %v3911
  %v4007 = vpop.f32.mrf.mxu0
  %v4008 = vadd.f32 %v3923, %v4007
  %v4009 = vpop.f32.mrf.mxu0
  %v4010 = vpop.f32.mrf.mxu0
  %v4011 = vadd.f32 %v3923, %v4010
  %v4012 = vpop.f32.mrf.mxu0
  %4013 = vmatprep.mubr.bf16.mxu0 0
  %4014 = vmatmul.mubr.bf16.gmra.mxu0 %v3912
  %v4015 = vpop.f32.mrf.mxu0
  %v4016 = vadd.f32 %v3923, %v4015
  %v4017 = vpop.f32.mrf.mxu0
  %v4018 = vpop.f32.mrf.mxu0
  %v4019 = vadd.f32 %v3923, %v4018
  %v4020 = vpop.f32.mrf.mxu0
  %4021 = vmatprep.mubr.bf16.mxu0 0
  %4022 = vmatmul.mubr.bf16.gmra.mxu0 %v3913
  %v4023 = vpop.f32.mrf.mxu0
  %v4024 = vadd.f32 %v3923, %v4023
  %v4025 = vpop.f32.mrf.mxu0
  %v4026 = vpop.f32.mrf.mxu0
  %v4027 = vadd.f32 %v3923, %v4026
  %v4028 = vpop.f32.mrf.mxu0
  %4029 = vmatprep.mubr.bf16.mxu0 0
  %4030 = vmatmul.mubr.bf16.gmra.mxu0 %v3914
  %v4031 = vpop.f32.mrf.mxu0
  %v4032 = vadd.f32 %v3923, %v4031
  %v4033 = vpop.f32.mrf.mxu0
  %v4034 = vpop.f32.mrf.mxu0
  %v4035 = vadd.f32 %v3923, %v4034
  %v4036 = vpop.f32.mrf.mxu0
  %4037 = vmatprep.mubr.bf16.mxu0 0
  %4038 = vmatmul.mubr.bf16.gmra.mxu0 %v3915
  %v4039 = vpop.f32.mrf.mxu0
  %v4040 = vadd.f32 %v3923, %v4039
  %v4041 = vpop.f32.mrf.mxu0
  %v4042 = vpop.f32.mrf.mxu0
  %v4043 = vadd.f32 %v3923, %v4042
  %v4044 = vpop.f32.mrf.mxu0
  %4045 = vmatprep.mubr.bf16.mxu0 0
  %4046 = vmatmul.mubr.bf16.gmra.mxu0 %v3916
  %v4047 = vpop.f32.mrf.mxu0
  %v4048 = vadd.f32 %v3923, %v4047
  %v4049 = vpop.f32.mrf.mxu0
  %v4050 = vpop.f32.mrf.mxu0
  %v4051 = vadd.f32 %v3923, %v4050
  %v4052 = vpop.f32.mrf.mxu0
  %4053 = vmatprep.mubr.bf16.mxu0 0
  %4054 = vmatmul.mubr.bf16.gmra.mxu0 %v3917
  %v4055 = vpop.f32.mrf.mxu0
  %v4056 = vadd.f32 %v3923, %v4055
  %v4057 = vpop.f32.mrf.mxu0
  %v4058 = vpop.f32.mrf.mxu0
  %v4059 = vadd.f32 %v3923, %v4058
  %v4060 = vpop.f32.mrf.mxu0
  %4061 = vmatprep.mubr.bf16.mxu0 0
  %4062 = vmatmul.mubr.bf16.gmra.mxu0 %v3918
  %v4063 = vpop.f32.mrf.mxu0
  %v4064 = vadd.f32 %v3923, %v4063
  %v4065 = vpop.f32.mrf.mxu0
  %v4066 = vpop.f32.mrf.mxu0
  %v4067 = vadd.f32 %v3923, %v4066
  %v4068 = vpop.f32.mrf.mxu0
  %4069 = vdwg.mxu0
  %vm4070 = vcmp.gt.f32.partialorder %v4008, 0.0
  %vm4071 = vcmp.gt.f32.partialorder %v4011, 0.0
  %vm4072 = vcmp.gt.f32.partialorder %v4016, 0.0
  %vm4073 = vcmp.gt.f32.partialorder %v4019, 0.0
  %vm4074 = vcmp.gt.f32.partialorder %v4024, 0.0
  %vm4075 = vcmp.gt.f32.partialorder %v4027, 0.0
  %vm4076 = vcmp.gt.f32.partialorder %v4032, 0.0
  %vm4077 = vcmp.gt.f32.partialorder %v4035, 0.0
  %vm4078 = vcmp.gt.f32.partialorder %v4040, 0.0
  %vm4079 = vcmp.gt.f32.partialorder %v4043, 0.0
  %vm4080 = vcmp.gt.f32.partialorder %v4048, 0.0
  %vm4081 = vcmp.gt.f32.partialorder %v4051, 0.0
  %vm4082 = vcmp.gt.f32.partialorder %v4056, 0.0
  %vm4083 = vcmp.gt.f32.partialorder %v4059, 0.0
  %vm4084 = vcmp.gt.f32.partialorder %v4064, 0.0
  %vm4085 = vcmp.gt.f32.partialorder %v4067, 0.0
  %v4086 = vmul.f32 %v4008, 0.01
  %v4087 = vmul.f32 %v4011, 0.01
  %v4088 = vmul.f32 %v4016, 0.01
  %v4089 = vmul.f32 %v4019, 0.01
  %v4090 = vmul.f32 %v4024, 0.01
  %v4091 = vmul.f32 %v4027, 0.01
  %v4092 = vmul.f32 %v4032, 0.01
  %v4093 = vmul.f32 %v4035, 0.01
  %v4094 = vmul.f32 %v4040, 0.01
  %v4095 = vmul.f32 %v4043, 0.01
  %v4096 = vmul.f32 %v4048, 0.01
  %v4097 = vmul.f32 %v4051, 0.01
  %v4098 = vmul.f32 %v4056, 0.01
  %v4099 = vmul.f32 %v4059, 0.01
  %v4100 = vmul.f32 %v4064, 0.01
  %v4101 = vmul.f32 %v4067, 0.01
  %v4102 = vsel %vm4070, %v4008, %v4086
  %v4103 = vsel %vm4071, %v4011, %v4087
  %v4104 = vsel %vm4072, %v4016, %v4088
  %v4105 = vsel %vm4073, %v4019, %v4089
  %v4106 = vsel %vm4074, %v4024, %v4090
  %v4107 = vsel %vm4075, %v4027, %v4091
  %v4108 = vsel %vm4076, %v4032, %v4092
  %v4109 = vsel %vm4077, %v4035, %v4093
  %v4110 = vsel %vm4078, %v4040, %v4094
  %v4111 = vsel %vm4079, %v4043, %v4095
  %v4112 = vsel %vm4080, %v4048, %v4096
  %v4113 = vsel %vm4081, %v4051, %v4097
  %v4114 = vsel %vm4082, %v4056, %v4098
  %v4115 = vsel %vm4083, %v4059, %v4099
  %v4116 = vsel %vm4084, %v4064, %v4100
  %v4117 = vsel %vm4085, %v4067, %v4101
  %s4118 = scalar_lea.vmem %s4, 704
  %v4119 = vld [vmem:[%s4118] sm:$0xf]
  %v4120 = vld [vmem:[%s4118 + $0x4] sm:$0xf]
  %v4121 = vld [vmem:[%s4118 + $0x8] sm:$0xf]
  %v4122 = vld [vmem:[%s4118 + $0xc] sm:$0xf]
  %v4123 = vld [vmem:[%s4118 + $0x10] sm:$0xf]
  %v4124 = vld [vmem:[%s4118 + $0x14] sm:$0xf]
  %v4125 = vld [vmem:[%s4118 + $0x18] sm:$0xf]
  %v4126 = vld [vmem:[%s4118 + $0x1c] sm:$0xf]
  %v4127 = vld [vmem:[%s4118 + $0x20] sm:$0xf]
  %v4128 = vld [vmem:[%s4118 + $0x24] sm:$0xf]
  %v4129 = vld [vmem:[%s4118 + $0x28] sm:$0xf]
  %v4130 = vld [vmem:[%s4118 + $0x2c] sm:$0xf]
  %v4131 = vld [vmem:[%s4118 + $0x30] sm:$0xf]
  %v4132 = vld [vmem:[%s4118 + $0x34] sm:$0xf]
  %v4133 = vld [vmem:[%s4118 + $0x38] sm:$0xf]
  %v4134 = vld [vmem:[%s4118 + $0x3c] sm:$0xf]
  %s4135 = scalar_lea.vmem %s5, 11
  %v4136 = vld [vmem:[%s4135] sm:$0x1]
  %v4137 = vpack.c.bf16 %v4103, %v4102
  %v4138 = vpack.c.bf16 %v4105, %v4104
  %v4139 = vpack.c.bf16 %v4107, %v4106
  %v4140 = vpack.c.bf16 %v4109, %v4108
  %v4141 = vpack.c.bf16 %v4111, %v4110
  %v4142 = vpack.c.bf16 %v4113, %v4112
  %v4143 = vpack.c.bf16 %v4115, %v4114
  %v4144 = vpack.c.bf16 %v4117, %v4116
  %4145 = vmatprep.subr.bf16.mxu0 0
  %4146 = vmatpush1.bf16.msra.mxu0 %v4144
  %4147 = vmatprep.subr.bf16.mxu0 0
  %4148 = vmatpush1.bf16.msra.mxu0 %v4143
  %4149 = vmatprep.subr.bf16.mxu0 0
  %4150 = vmatpush1.bf16.msra.mxu0 %v4142
  %4151 = vmatprep.subr.bf16.mxu0 0
  %4152 = vmatpush1.bf16.msra.mxu0 %v4141
  %4153 = vmatprep.subr.bf16.mxu0 0
  %4154 = vmatpush1.bf16.msra.mxu0 %v4140
  %4155 = vmatprep.subr.bf16.mxu0 0
  %4156 = vmatpush1.bf16.msra.mxu0 %v4139
  %4157 = vmatprep.subr.bf16.mxu0 0
  %4158 = vmatpush1.bf16.msra.mxu0 %v4138
  %4159 = vmatprep.subr.bf16.mxu0 0
  %4160 = vmatpush1.bf16.msra.mxu0 %v4137
  %4161 = vmatprep.subr.bf16.mxu0 0
  %4162 = vmatpush2.bf16.msra.mxu0 0
  %4163 = vmatprep.subr.bf16.mxu0 0
  %4164 = vmatpush2.bf16.msra.mxu0 0
  %4165 = vmatprep.subr.bf16.mxu0 0
  %4166 = vmatpush2.bf16.msra.mxu0 0
  %4167 = vmatprep.subr.bf16.mxu0 0
  %4168 = vmatpush2.bf16.msra.mxu0 0
  %4169 = vmatprep.subr.bf16.mxu0 0
  %4170 = vmatpush2.bf16.msra.mxu0 0
  %4171 = vmatprep.subr.bf16.mxu0 0
  %4172 = vmatpush2.bf16.msra.mxu0 0
  %4173 = vmatprep.subr.bf16.mxu0 0
  %4174 = vmatpush2.bf16.msra.mxu0 0
  %4175 = vmatprep.subr.bf16.mxu0 0
  %4176 = vmatpush2.bf16.msra.mxu0 0
  %4177 = vmatprep.mubr.bf16.mxu0 0
  %4178 = vmatmul.mubr.bf16.gmra.mxu0 %v94
  %v4179 = vpop.f32.mrf.mxu0
  %v4180 = vadd.f32 0.0, %v4179
  %v4181 = vpop.f32.mrf.mxu0
  %v4182 = vpop.f32.mrf.mxu0
  %v4183 = vadd.f32 0.0, %v4182
  %v4184 = vpop.f32.mrf.mxu0
  %4185 = vmatprep.mubr.bf16.mxu0 0
  %4186 = vmatmul.mubr.bf16.gmra.mxu0 %v95
  %v4187 = vpop.f32.mrf.mxu0
  %v4188 = vadd.f32 0.0, %v4187
  %v4189 = vpop.f32.mrf.mxu0
  %v4190 = vpop.f32.mrf.mxu0
  %v4191 = vadd.f32 0.0, %v4190
  %v4192 = vpop.f32.mrf.mxu0
  %4193 = vmatprep.mubr.bf16.mxu0 0
  %4194 = vmatmul.mubr.bf16.gmra.mxu0 %v96
  %v4195 = vpop.f32.mrf.mxu0
  %v4196 = vadd.f32 0.0, %v4195
  %v4197 = vpop.f32.mrf.mxu0
  %v4198 = vpop.f32.mrf.mxu0
  %v4199 = vadd.f32 0.0, %v4198
  %v4200 = vpop.f32.mrf.mxu0
  %4201 = vmatprep.mubr.bf16.mxu0 0
  %4202 = vmatmul.mubr.bf16.gmra.mxu0 %v97
  %v4203 = vpop.f32.mrf.mxu0
  %v4204 = vadd.f32 0.0, %v4203
  %v4205 = vpop.f32.mrf.mxu0
  %v4206 = vpop.f32.mrf.mxu0
  %v4207 = vadd.f32 0.0, %v4206
  %v4208 = vpop.f32.mrf.mxu0
  %4209 = vmatprep.mubr.bf16.mxu0 0
  %4210 = vmatmul.mubr.bf16.gmra.mxu0 %v98
  %v4211 = vpop.f32.mrf.mxu0
  %v4212 = vadd.f32 0.0, %v4211
  %v4213 = vpop.f32.mrf.mxu0
  %v4214 = vpop.f32.mrf.mxu0
  %v4215 = vadd.f32 0.0, %v4214
  %v4216 = vpop.f32.mrf.mxu0
  %4217 = vmatprep.mubr.bf16.mxu0 0
  %4218 = vmatmul.mubr.bf16.gmra.mxu0 %v99
  %v4219 = vpop.f32.mrf.mxu0
  %v4220 = vadd.f32 0.0, %v4219
  %v4221 = vpop.f32.mrf.mxu0
  %v4222 = vpop.f32.mrf.mxu0
  %v4223 = vadd.f32 0.0, %v4222
  %v4224 = vpop.f32.mrf.mxu0
  %4225 = vmatprep.mubr.bf16.mxu0 0
  %4226 = vmatmul.mubr.bf16.gmra.mxu0 %v100
  %v4227 = vpop.f32.mrf.mxu0
  %v4228 = vadd.f32 0.0, %v4227
  %v4229 = vpop.f32.mrf.mxu0
  %v4230 = vpop.f32.mrf.mxu0
  %v4231 = vadd.f32 0.0, %v4230
  %v4232 = vpop.f32.mrf.mxu0
  %4233 = vmatprep.mubr.bf16.mxu0 0
  %4234 = vmatmul.mubr.bf16.gmra.mxu0 %v101
  %v4235 = vpop.f32.mrf.mxu0
  %v4236 = vadd.f32 0.0, %v4235
  %v4237 = vpop.f32.mrf.mxu0
  %v4238 = vpop.f32.mrf.mxu0
  %v4239 = vadd.f32 0.0, %v4238
  %v4240 = vpop.f32.mrf.mxu0
  %4241 = vdwg.mxu0
  %v4242 = vpack.c.bf16 %v4183, %v4180
  %v4243 = vpack.c.bf16 %v4191, %v4188
  %v4244 = vpack.c.bf16 %v4199, %v4196
  %v4245 = vpack.c.bf16 %v4207, %v4204
  %v4246 = vpack.c.bf16 %v4215, %v4212
  %v4247 = vpack.c.bf16 %v4223, %v4220
  %v4248 = vpack.c.bf16 %v4231, %v4228
  %v4249 = vpack.c.bf16 %v4239, %v4236
  %v4251 = vlaneseq
  %v4252 = vshrl.u32 %v4251, 7
  %v4253 = vsub.s32 0, %v4252
  %v4254 = vrot.slane %v4136, %v4253
  %v4272 = vunpack.c.l.b16 %v4119
  %v4273 = vunpack.c.l.b16 %v4120
  %v4274 = vunpack.c.l.b16 %v4121
  %v4275 = vunpack.c.l.b16 %v4122
  %v4276 = vunpack.c.l.b16 %v4123
  %v4277 = vunpack.c.l.b16 %v4124
  %v4278 = vunpack.c.l.b16 %v4125
  %v4279 = vunpack.c.l.b16 %v4126
  %v4280 = vunpack.c.l.b16 %v4127
  %v4281 = vunpack.c.l.b16 %v4128
  %v4282 = vunpack.c.l.b16 %v4129
  %v4283 = vunpack.c.l.b16 %v4130
  %v4284 = vunpack.c.l.b16 %v4131
  %v4285 = vunpack.c.l.b16 %v4132
  %v4286 = vunpack.c.l.b16 %v4133
  %v4287 = vunpack.c.l.b16 %v4134
  %v4288 = vpack.c.b16 %v4273, %v4272
  %v4289 = vpack.c.b16 %v4275, %v4274
  %v4290 = vpack.c.b16 %v4277, %v4276
  %v4291 = vpack.c.b16 %v4279, %v4278
  %v4292 = vpack.c.b16 %v4281, %v4280
  %v4293 = vpack.c.b16 %v4283, %v4282
  %v4294 = vpack.c.b16 %v4285, %v4284
  %v4295 = vpack.c.b16 %v4287, %v4286
  %4304 = vmatprep.subr.bf16.mxu0 0
  %4305 = vmatpush1.bf16.msra.mxu0 %v4295
  %4306 = vmatprep.subr.bf16.mxu0 0
  %4307 = vmatpush1.bf16.msra.mxu0 %v4294
  %4308 = vmatprep.subr.bf16.mxu0 0
  %4309 = vmatpush1.bf16.msra.mxu0 %v4293
  %4310 = vmatprep.subr.bf16.mxu0 0
  %4311 = vmatpush1.bf16.msra.mxu0 %v4292
  %4312 = vmatprep.subr.bf16.mxu0 0
  %4313 = vmatpush1.bf16.msra.mxu0 %v4291
  %4314 = vmatprep.subr.bf16.mxu0 0
  %4315 = vmatpush1.bf16.msra.mxu0 %v4290
  %4316 = vmatprep.subr.bf16.mxu0 0
  %4317 = vmatpush1.bf16.msra.mxu0 %v4289
  %4318 = vmatprep.subr.bf16.mxu0 0
  %4319 = vmatpush1.bf16.msra.mxu0 %v4288
  %4320 = vmatprep.subr.bf16.mxu0 0
  %4321 = vmatpush2.bf16.msra.mxu0 0
  %4322 = vmatprep.subr.bf16.mxu0 0
  %4323 = vmatpush2.bf16.msra.mxu0 0
  %4324 = vmatprep.subr.bf16.mxu0 0
  %4325 = vmatpush2.bf16.msra.mxu0 0
  %4326 = vmatprep.subr.bf16.mxu0 0
  %4327 = vmatpush2.bf16.msra.mxu0 0
  %4328 = vmatprep.subr.bf16.mxu0 0
  %4329 = vmatpush2.bf16.msra.mxu0 0
  %4330 = vmatprep.subr.bf16.mxu0 0
  %4331 = vmatpush2.bf16.msra.mxu0 0
  %4332 = vmatprep.subr.bf16.mxu0 0
  %4333 = vmatpush2.bf16.msra.mxu0 0
  %4334 = vmatprep.subr.bf16.mxu0 0
  %4335 = vmatpush2.bf16.msra.mxu0 0
  %4336 = vmatprep.mubr.bf16.mxu0 0
  %4337 = vmatmul.mubr.bf16.gmra.mxu0 %v4242
  %v4338 = vpop.f32.mrf.mxu0
  %v4339 = vadd.f32 %v4254, %v4338
  %v4340 = vpop.f32.mrf.mxu0
  %v4341 = vpop.f32.mrf.mxu0
  %v4342 = vadd.f32 %v4254, %v4341
  %v4343 = vpop.f32.mrf.mxu0
  %4344 = vmatprep.mubr.bf16.mxu0 0
  %4345 = vmatmul.mubr.bf16.gmra.mxu0 %v4243
  %v4346 = vpop.f32.mrf.mxu0
  %v4347 = vadd.f32 %v4254, %v4346
  %v4348 = vpop.f32.mrf.mxu0
  %v4349 = vpop.f32.mrf.mxu0
  %v4350 = vadd.f32 %v4254, %v4349
  %v4351 = vpop.f32.mrf.mxu0
  %4352 = vmatprep.mubr.bf16.mxu0 0
  %4353 = vmatmul.mubr.bf16.gmra.mxu0 %v4244
  %v4354 = vpop.f32.mrf.mxu0
  %v4355 = vadd.f32 %v4254, %v4354
  %v4356 = vpop.f32.mrf.mxu0
  %v4357 = vpop.f32.mrf.mxu0
  %v4358 = vadd.f32 %v4254, %v4357
  %v4359 = vpop.f32.mrf.mxu0
  %4360 = vmatprep.mubr.bf16.mxu0 0
  %4361 = vmatmul.mubr.bf16.gmra.mxu0 %v4245
  %v4362 = vpop.f32.mrf.mxu0
  %v4363 = vadd.f32 %v4254, %v4362
  %v4364 = vpop.f32.mrf.mxu0
  %v4365 = vpop.f32.mrf.mxu0
  %v4366 = vadd.f32 %v4254, %v4365
  %v4367 = vpop.f32.mrf.mxu0
  %4368 = vmatprep.mubr.bf16.mxu0 0
  %4369 = vmatmul.mubr.bf16.gmra.mxu0 %v4246
  %v4370 = vpop.f32.mrf.mxu0
  %v4371 = vadd.f32 %v4254, %v4370
  %v4372 = vpop.f32.mrf.mxu0
  %v4373 = vpop.f32.mrf.mxu0
  %v4374 = vadd.f32 %v4254, %v4373
  %v4375 = vpop.f32.mrf.mxu0
  %4376 = vmatprep.mubr.bf16.mxu0 0
  %4377 = vmatmul.mubr.bf16.gmra.mxu0 %v4247
  %v4378 = vpop.f32.mrf.mxu0
  %v4379 = vadd.f32 %v4254, %v4378
  %v4380 = vpop.f32.mrf.mxu0
  %v4381 = vpop.f32.mrf.mxu0
  %v4382 = vadd.f32 %v4254, %v4381
  %v4383 = vpop.f32.mrf.mxu0
  %4384 = vmatprep.mubr.bf16.mxu0 0
  %4385 = vmatmul.mubr.bf16.gmra.mxu0 %v4248
  %v4386 = vpop.f32.mrf.mxu0
  %v4387 = vadd.f32 %v4254, %v4386
  %v4388 = vpop.f32.mrf.mxu0
  %v4389 = vpop.f32.mrf.mxu0
  %v4390 = vadd.f32 %v4254, %v4389
  %v4391 = vpop.f32.mrf.mxu0
  %4392 = vmatprep.mubr.bf16.mxu0 0
  %4393 = vmatmul.mubr.bf16.gmra.mxu0 %v4249
  %v4394 = vpop.f32.mrf.mxu0
  %v4395 = vadd.f32 %v4254, %v4394
  %v4396 = vpop.f32.mrf.mxu0
  %v4397 = vpop.f32.mrf.mxu0
  %v4398 = vadd.f32 %v4254, %v4397
  %v4399 = vpop.f32.mrf.mxu0
  %4400 = vdwg.mxu0
  %vm4401 = vcmp.gt.f32.partialorder %v4339, 0.0
  %vm4402 = vcmp.gt.f32.partialorder %v4342, 0.0
  %vm4403 = vcmp.gt.f32.partialorder %v4347, 0.0
  %vm4404 = vcmp.gt.f32.partialorder %v4350, 0.0
  %vm4405 = vcmp.gt.f32.partialorder %v4355, 0.0
  %vm4406 = vcmp.gt.f32.partialorder %v4358, 0.0
  %vm4407 = vcmp.gt.f32.partialorder %v4363, 0.0
  %vm4408 = vcmp.gt.f32.partialorder %v4366, 0.0
  %vm4409 = vcmp.gt.f32.partialorder %v4371, 0.0
  %vm4410 = vcmp.gt.f32.partialorder %v4374, 0.0
  %vm4411 = vcmp.gt.f32.partialorder %v4379, 0.0
  %vm4412 = vcmp.gt.f32.partialorder %v4382, 0.0
  %vm4413 = vcmp.gt.f32.partialorder %v4387, 0.0
  %vm4414 = vcmp.gt.f32.partialorder %v4390, 0.0
  %vm4415 = vcmp.gt.f32.partialorder %v4395, 0.0
  %vm4416 = vcmp.gt.f32.partialorder %v4398, 0.0
  %v4417 = vmul.f32 %v4339, 0.01
  %v4418 = vmul.f32 %v4342, 0.01
  %v4419 = vmul.f32 %v4347, 0.01
  %v4420 = vmul.f32 %v4350, 0.01
  %v4421 = vmul.f32 %v4355, 0.01
  %v4422 = vmul.f32 %v4358, 0.01
  %v4423 = vmul.f32 %v4363, 0.01
  %v4424 = vmul.f32 %v4366, 0.01
  %v4425 = vmul.f32 %v4371, 0.01
  %v4426 = vmul.f32 %v4374, 0.01
  %v4427 = vmul.f32 %v4379, 0.01
  %v4428 = vmul.f32 %v4382, 0.01
  %v4429 = vmul.f32 %v4387, 0.01
  %v4430 = vmul.f32 %v4390, 0.01
  %v4431 = vmul.f32 %v4395, 0.01
  %v4432 = vmul.f32 %v4398, 0.01
  %v4433 = vsel %vm4401, %v4339, %v4417
  %v4434 = vsel %vm4402, %v4342, %v4418
  %v4435 = vsel %vm4403, %v4347, %v4419
  %v4436 = vsel %vm4404, %v4350, %v4420
  %v4437 = vsel %vm4405, %v4355, %v4421
  %v4438 = vsel %vm4406, %v4358, %v4422
  %v4439 = vsel %vm4407, %v4363, %v4423
  %v4440 = vsel %vm4408, %v4366, %v4424
  %v4441 = vsel %vm4409, %v4371, %v4425
  %v4442 = vsel %vm4410, %v4374, %v4426
  %v4443 = vsel %vm4411, %v4379, %v4427
  %v4444 = vsel %vm4412, %v4382, %v4428
  %v4445 = vsel %vm4413, %v4387, %v4429
  %v4446 = vsel %vm4414, %v4390, %v4430
  %v4447 = vsel %vm4415, %v4395, %v4431
  %v4448 = vsel %vm4416, %v4398, %v4432
  %s4449 = scalar_lea.vmem %s4, 768
  %v4450 = vld [vmem:[%s4449] sm:$0xf]
  %v4451 = vld [vmem:[%s4449 + $0x4] sm:$0xf]
  %v4452 = vld [vmem:[%s4449 + $0x8] sm:$0xf]
  %v4453 = vld [vmem:[%s4449 + $0xc] sm:$0xf]
  %v4454 = vld [vmem:[%s4449 + $0x10] sm:$0xf]
  %v4455 = vld [vmem:[%s4449 + $0x14] sm:$0xf]
  %v4456 = vld [vmem:[%s4449 + $0x18] sm:$0xf]
  %v4457 = vld [vmem:[%s4449 + $0x1c] sm:$0xf]
  %v4458 = vld [vmem:[%s4449 + $0x20] sm:$0xf]
  %v4459 = vld [vmem:[%s4449 + $0x24] sm:$0xf]
  %v4460 = vld [vmem:[%s4449 + $0x28] sm:$0xf]
  %v4461 = vld [vmem:[%s4449 + $0x2c] sm:$0xf]
  %v4462 = vld [vmem:[%s4449 + $0x30] sm:$0xf]
  %v4463 = vld [vmem:[%s4449 + $0x34] sm:$0xf]
  %v4464 = vld [vmem:[%s4449 + $0x38] sm:$0xf]
  %v4465 = vld [vmem:[%s4449 + $0x3c] sm:$0xf]
  %s4466 = scalar_lea.vmem %s5, 12
  %v4467 = vld [vmem:[%s4466] sm:$0x1]
  %v4468 = vpack.c.bf16 %v4434, %v4433
  %v4469 = vpack.c.bf16 %v4436, %v4435
  %v4470 = vpack.c.bf16 %v4438, %v4437
  %v4471 = vpack.c.bf16 %v4440, %v4439
  %v4472 = vpack.c.bf16 %v4442, %v4441
  %v4473 = vpack.c.bf16 %v4444, %v4443
  %v4474 = vpack.c.bf16 %v4446, %v4445
  %v4475 = vpack.c.bf16 %v4448, %v4447
  %4476 = vmatprep.subr.bf16.mxu0 0
  %4477 = vmatpush1.bf16.msra.mxu0 %v4475
  %4478 = vmatprep.subr.bf16.mxu0 0
  %4479 = vmatpush1.bf16.msra.mxu0 %v4474
  %4480 = vmatprep.subr.bf16.mxu0 0
  %4481 = vmatpush1.bf16.msra.mxu0 %v4473
  %4482 = vmatprep.subr.bf16.mxu0 0
  %4483 = vmatpush1.bf16.msra.mxu0 %v4472
  %4484 = vmatprep.subr.bf16.mxu0 0
  %4485 = vmatpush1.bf16.msra.mxu0 %v4471
  %4486 = vmatprep.subr.bf16.mxu0 0
  %4487 = vmatpush1.bf16.msra.mxu0 %v4470
  %4488 = vmatprep.subr.bf16.mxu0 0
  %4489 = vmatpush1.bf16.msra.mxu0 %v4469
  %4490 = vmatprep.subr.bf16.mxu0 0
  %4491 = vmatpush1.bf16.msra.mxu0 %v4468
  %4492 = vmatprep.subr.bf16.mxu0 0
  %4493 = vmatpush2.bf16.msra.mxu0 0
  %4494 = vmatprep.subr.bf16.mxu0 0
  %4495 = vmatpush2.bf16.msra.mxu0 0
  %4496 = vmatprep.subr.bf16.mxu0 0
  %4497 = vmatpush2.bf16.msra.mxu0 0
  %4498 = vmatprep.subr.bf16.mxu0 0
  %4499 = vmatpush2.bf16.msra.mxu0 0
  %4500 = vmatprep.subr.bf16.mxu0 0
  %4501 = vmatpush2.bf16.msra.mxu0 0
  %4502 = vmatprep.subr.bf16.mxu0 0
  %4503 = vmatpush2.bf16.msra.mxu0 0
  %4504 = vmatprep.subr.bf16.mxu0 0
  %4505 = vmatpush2.bf16.msra.mxu0 0
  %4506 = vmatprep.subr.bf16.mxu0 0
  %4507 = vmatpush2.bf16.msra.mxu0 0
  %4508 = vmatprep.mubr.bf16.mxu0 0
  %4509 = vmatmul.mubr.bf16.gmra.mxu0 %v94
  %v4510 = vpop.f32.mrf.mxu0
  %v4511 = vadd.f32 0.0, %v4510
  %v4512 = vpop.f32.mrf.mxu0
  %v4513 = vpop.f32.mrf.mxu0
  %v4514 = vadd.f32 0.0, %v4513
  %v4515 = vpop.f32.mrf.mxu0
  %4516 = vmatprep.mubr.bf16.mxu0 0
  %4517 = vmatmul.mubr.bf16.gmra.mxu0 %v95
  %v4518 = vpop.f32.mrf.mxu0
  %v4519 = vadd.f32 0.0, %v4518
  %v4520 = vpop.f32.mrf.mxu0
  %v4521 = vpop.f32.mrf.mxu0
  %v4522 = vadd.f32 0.0, %v4521
  %v4523 = vpop.f32.mrf.mxu0
  %4524 = vmatprep.mubr.bf16.mxu0 0
  %4525 = vmatmul.mubr.bf16.gmra.mxu0 %v96
  %v4526 = vpop.f32.mrf.mxu0
  %v4527 = vadd.f32 0.0, %v4526
  %v4528 = vpop.f32.mrf.mxu0
  %v4529 = vpop.f32.mrf.mxu0
  %v4530 = vadd.f32 0.0, %v4529
  %v4531 = vpop.f32.mrf.mxu0
  %4532 = vmatprep.mubr.bf16.mxu0 0
  %4533 = vmatmul.mubr.bf16.gmra.mxu0 %v97
  %v4534 = vpop.f32.mrf.mxu0
  %v4535 = vadd.f32 0.0, %v4534
  %v4536 = vpop.f32.mrf.mxu0
  %v4537 = vpop.f32.mrf.mxu0
  %v4538 = vadd.f32 0.0, %v4537
  %v4539 = vpop.f32.mrf.mxu0
  %4540 = vmatprep.mubr.bf16.mxu0 0
  %4541 = vmatmul.mubr.bf16.gmra.mxu0 %v98
  %v4542 = vpop.f32.mrf.mxu0
  %v4543 = vadd.f32 0.0, %v4542
  %v4544 = vpop.f32.mrf.mxu0
  %v4545 = vpop.f32.mrf.mxu0
  %v4546 = vadd.f32 0.0, %v4545
  %v4547 = vpop.f32.mrf.mxu0
  %4548 = vmatprep.mubr.bf16.mxu0 0
  %4549 = vmatmul.mubr.bf16.gmra.mxu0 %v99
  %v4550 = vpop.f32.mrf.mxu0
  %v4551 = vadd.f32 0.0, %v4550
  %v4552 = vpop.f32.mrf.mxu0
  %v4553 = vpop.f32.mrf.mxu0
  %v4554 = vadd.f32 0.0, %v4553
  %v4555 = vpop.f32.mrf.mxu0
  %4556 = vmatprep.mubr.bf16.mxu0 0
  %4557 = vmatmul.mubr.bf16.gmra.mxu0 %v100
  %v4558 = vpop.f32.mrf.mxu0
  %v4559 = vadd.f32 0.0, %v4558
  %v4560 = vpop.f32.mrf.mxu0
  %v4561 = vpop.f32.mrf.mxu0
  %v4562 = vadd.f32 0.0, %v4561
  %v4563 = vpop.f32.mrf.mxu0
  %4564 = vmatprep.mubr.bf16.mxu0 0
  %4565 = vmatmul.mubr.bf16.gmra.mxu0 %v101
  %v4566 = vpop.f32.mrf.mxu0
  %v4567 = vadd.f32 0.0, %v4566
  %v4568 = vpop.f32.mrf.mxu0
  %v4569 = vpop.f32.mrf.mxu0
  %v4570 = vadd.f32 0.0, %v4569
  %v4571 = vpop.f32.mrf.mxu0
  %4572 = vdwg.mxu0
  %v4573 = vpack.c.bf16 %v4514, %v4511
  %v4574 = vpack.c.bf16 %v4522, %v4519
  %v4575 = vpack.c.bf16 %v4530, %v4527
  %v4576 = vpack.c.bf16 %v4538, %v4535
  %v4577 = vpack.c.bf16 %v4546, %v4543
  %v4578 = vpack.c.bf16 %v4554, %v4551
  %v4579 = vpack.c.bf16 %v4562, %v4559
  %v4580 = vpack.c.bf16 %v4570, %v4567
  %v4582 = vlaneseq
  %v4583 = vshrl.u32 %v4582, 7
  %v4584 = vsub.s32 0, %v4583
  %v4585 = vrot.slane %v4467, %v4584
  %v4603 = vunpack.c.l.b16 %v4450
  %v4604 = vunpack.c.l.b16 %v4451
  %v4605 = vunpack.c.l.b16 %v4452
  %v4606 = vunpack.c.l.b16 %v4453
  %v4607 = vunpack.c.l.b16 %v4454
  %v4608 = vunpack.c.l.b16 %v4455
  %v4609 = vunpack.c.l.b16 %v4456
  %v4610 = vunpack.c.l.b16 %v4457
  %v4611 = vunpack.c.l.b16 %v4458
  %v4612 = vunpack.c.l.b16 %v4459
  %v4613 = vunpack.c.l.b16 %v4460
  %v4614 = vunpack.c.l.b16 %v4461
  %v4615 = vunpack.c.l.b16 %v4462
  %v4616 = vunpack.c.l.b16 %v4463
  %v4617 = vunpack.c.l.b16 %v4464
  %v4618 = vunpack.c.l.b16 %v4465
  %v4619 = vpack.c.b16 %v4604, %v4603
  %v4620 = vpack.c.b16 %v4606, %v4605
  %v4621 = vpack.c.b16 %v4608, %v4607
  %v4622 = vpack.c.b16 %v4610, %v4609
  %v4623 = vpack.c.b16 %v4612, %v4611
  %v4624 = vpack.c.b16 %v4614, %v4613
  %v4625 = vpack.c.b16 %v4616, %v4615
  %v4626 = vpack.c.b16 %v4618, %v4617
  %4635 = vmatprep.subr.bf16.mxu0 0
  %4636 = vmatpush1.bf16.msra.mxu0 %v4626
  %4637 = vmatprep.subr.bf16.mxu0 0
  %4638 = vmatpush1.bf16.msra.mxu0 %v4625
  %4639 = vmatprep.subr.bf16.mxu0 0
  %4640 = vmatpush1.bf16.msra.mxu0 %v4624
  %4641 = vmatprep.subr.bf16.mxu0 0
  %4642 = vmatpush1.bf16.msra.mxu0 %v4623
  %4643 = vmatprep.subr.bf16.mxu0 0
  %4644 = vmatpush1.bf16.msra.mxu0 %v4622
  %4645 = vmatprep.subr.bf16.mxu0 0
  %4646 = vmatpush1.bf16.msra.mxu0 %v4621
  %4647 = vmatprep.subr.bf16.mxu0 0
  %4648 = vmatpush1.bf16.msra.mxu0 %v4620
  %4649 = vmatprep.subr.bf16.mxu0 0
  %4650 = vmatpush1.bf16.msra.mxu0 %v4619
  %4651 = vmatprep.subr.bf16.mxu0 0
  %4652 = vmatpush2.bf16.msra.mxu0 0
  %4653 = vmatprep.subr.bf16.mxu0 0
  %4654 = vmatpush2.bf16.msra.mxu0 0
  %4655 = vmatprep.subr.bf16.mxu0 0
  %4656 = vmatpush2.bf16.msra.mxu0 0
  %4657 = vmatprep.subr.bf16.mxu0 0
  %4658 = vmatpush2.bf16.msra.mxu0 0
  %4659 = vmatprep.subr.bf16.mxu0 0
  %4660 = vmatpush2.bf16.msra.mxu0 0
  %4661 = vmatprep.subr.bf16.mxu0 0
  %4662 = vmatpush2.bf16.msra.mxu0 0
  %4663 = vmatprep.subr.bf16.mxu0 0
  %4664 = vmatpush2.bf16.msra.mxu0 0
  %4665 = vmatprep.subr.bf16.mxu0 0
  %4666 = vmatpush2.bf16.msra.mxu0 0
  %4667 = vmatprep.mubr.bf16.mxu0 0
  %4668 = vmatmul.mubr.bf16.gmra.mxu0 %v4573
  %v4669 = vpop.f32.mrf.mxu0
  %v4670 = vadd.f32 %v4585, %v4669
  %v4671 = vpop.f32.mrf.mxu0
  %v4672 = vpop.f32.mrf.mxu0
  %v4673 = vadd.f32 %v4585, %v4672
  %v4674 = vpop.f32.mrf.mxu0
  %4675 = vmatprep.mubr.bf16.mxu0 0
  %4676 = vmatmul.mubr.bf16.gmra.mxu0 %v4574
  %v4677 = vpop.f32.mrf.mxu0
  %v4678 = vadd.f32 %v4585, %v4677
  %v4679 = vpop.f32.mrf.mxu0
  %v4680 = vpop.f32.mrf.mxu0
  %v4681 = vadd.f32 %v4585, %v4680
  %v4682 = vpop.f32.mrf.mxu0
  %4683 = vmatprep.mubr.bf16.mxu0 0
  %4684 = vmatmul.mubr.bf16.gmra.mxu0 %v4575
  %v4685 = vpop.f32.mrf.mxu0
  %v4686 = vadd.f32 %v4585, %v4685
  %v4687 = vpop.f32.mrf.mxu0
  %v4688 = vpop.f32.mrf.mxu0
  %v4689 = vadd.f32 %v4585, %v4688
  %v4690 = vpop.f32.mrf.mxu0
  %4691 = vmatprep.mubr.bf16.mxu0 0
  %4692 = vmatmul.mubr.bf16.gmra.mxu0 %v4576
  %v4693 = vpop.f32.mrf.mxu0
  %v4694 = vadd.f32 %v4585, %v4693
  %v4695 = vpop.f32.mrf.mxu0
  %v4696 = vpop.f32.mrf.mxu0
  %v4697 = vadd.f32 %v4585, %v4696
  %v4698 = vpop.f32.mrf.mxu0
  %4699 = vmatprep.mubr.bf16.mxu0 0
  %4700 = vmatmul.mubr.bf16.gmra.mxu0 %v4577
  %v4701 = vpop.f32.mrf.mxu0
  %v4702 = vadd.f32 %v4585, %v4701
  %v4703 = vpop.f32.mrf.mxu0
  %v4704 = vpop.f32.mrf.mxu0
  %v4705 = vadd.f32 %v4585, %v4704
  %v4706 = vpop.f32.mrf.mxu0
  %4707 = vmatprep.mubr.bf16.mxu0 0
  %4708 = vmatmul.mubr.bf16.gmra.mxu0 %v4578
  %v4709 = vpop.f32.mrf.mxu0
  %v4710 = vadd.f32 %v4585, %v4709
  %v4711 = vpop.f32.mrf.mxu0
  %v4712 = vpop.f32.mrf.mxu0
  %v4713 = vadd.f32 %v4585, %v4712
  %v4714 = vpop.f32.mrf.mxu0
  %4715 = vmatprep.mubr.bf16.mxu0 0
  %4716 = vmatmul.mubr.bf16.gmra.mxu0 %v4579
  %v4717 = vpop.f32.mrf.mxu0
  %v4718 = vadd.f32 %v4585, %v4717
  %v4719 = vpop.f32.mrf.mxu0
  %v4720 = vpop.f32.mrf.mxu0
  %v4721 = vadd.f32 %v4585, %v4720
  %v4722 = vpop.f32.mrf.mxu0
  %4723 = vmatprep.mubr.bf16.mxu0 0
  %4724 = vmatmul.mubr.bf16.gmra.mxu0 %v4580
  %v4725 = vpop.f32.mrf.mxu0
  %v4726 = vadd.f32 %v4585, %v4725
  %v4727 = vpop.f32.mrf.mxu0
  %v4728 = vpop.f32.mrf.mxu0
  %v4729 = vadd.f32 %v4585, %v4728
  %v4730 = vpop.f32.mrf.mxu0
  %4731 = vdwg.mxu0
  %vm4732 = vcmp.gt.f32.partialorder %v4670, 0.0
  %vm4733 = vcmp.gt.f32.partialorder %v4673, 0.0
  %vm4734 = vcmp.gt.f32.partialorder %v4678, 0.0
  %vm4735 = vcmp.gt.f32.partialorder %v4681, 0.0
  %vm4736 = vcmp.gt.f32.partialorder %v4686, 0.0
  %vm4737 = vcmp.gt.f32.partialorder %v4689, 0.0
  %vm4738 = vcmp.gt.f32.partialorder %v4694, 0.0
  %vm4739 = vcmp.gt.f32.partialorder %v4697, 0.0
  %vm4740 = vcmp.gt.f32.partialorder %v4702, 0.0
  %vm4741 = vcmp.gt.f32.partialorder %v4705, 0.0
  %vm4742 = vcmp.gt.f32.partialorder %v4710, 0.0
  %vm4743 = vcmp.gt.f32.partialorder %v4713, 0.0
  %vm4744 = vcmp.gt.f32.partialorder %v4718, 0.0
  %vm4745 = vcmp.gt.f32.partialorder %v4721, 0.0
  %vm4746 = vcmp.gt.f32.partialorder %v4726, 0.0
  %vm4747 = vcmp.gt.f32.partialorder %v4729, 0.0
  %v4748 = vmul.f32 %v4670, 0.01
  %v4749 = vmul.f32 %v4673, 0.01
  %v4750 = vmul.f32 %v4678, 0.01
  %v4751 = vmul.f32 %v4681, 0.01
  %v4752 = vmul.f32 %v4686, 0.01
  %v4753 = vmul.f32 %v4689, 0.01
  %v4754 = vmul.f32 %v4694, 0.01
  %v4755 = vmul.f32 %v4697, 0.01
  %v4756 = vmul.f32 %v4702, 0.01
  %v4757 = vmul.f32 %v4705, 0.01
  %v4758 = vmul.f32 %v4710, 0.01
  %v4759 = vmul.f32 %v4713, 0.01
  %v4760 = vmul.f32 %v4718, 0.01
  %v4761 = vmul.f32 %v4721, 0.01
  %v4762 = vmul.f32 %v4726, 0.01
  %v4763 = vmul.f32 %v4729, 0.01
  %v4764 = vsel %vm4732, %v4670, %v4748
  %v4765 = vsel %vm4733, %v4673, %v4749
  %v4766 = vsel %vm4734, %v4678, %v4750
  %v4767 = vsel %vm4735, %v4681, %v4751
  %v4768 = vsel %vm4736, %v4686, %v4752
  %v4769 = vsel %vm4737, %v4689, %v4753
  %v4770 = vsel %vm4738, %v4694, %v4754
  %v4771 = vsel %vm4739, %v4697, %v4755
  %v4772 = vsel %vm4740, %v4702, %v4756
  %v4773 = vsel %vm4741, %v4705, %v4757
  %v4774 = vsel %vm4742, %v4710, %v4758
  %v4775 = vsel %vm4743, %v4713, %v4759
  %v4776 = vsel %vm4744, %v4718, %v4760
  %v4777 = vsel %vm4745, %v4721, %v4761
  %v4778 = vsel %vm4746, %v4726, %v4762
  %v4779 = vsel %vm4747, %v4729, %v4763
  %v4780 = vpack.c.bf16 %v4765, %v4764
  %v4781 = vpack.c.bf16 %v4767, %v4766
  %v4782 = vpack.c.bf16 %v4769, %v4768
  %v4783 = vpack.c.bf16 %v4771, %v4770
  %v4784 = vpack.c.bf16 %v4773, %v4772
  %v4785 = vpack.c.bf16 %v4775, %v4774
  %v4786 = vpack.c.bf16 %v4777, %v4776
  %v4787 = vpack.c.bf16 %v4779, %v4778
  %v4788 = vld [vmem:[%s6] sm:$0xf]
  %v4789 = vld [vmem:[%s6 + $0x4] sm:$0xf]
  %v4790 = vld [vmem:[%s6 + $0x8] sm:$0xf]
  %v4791 = vld [vmem:[%s6 + $0xc] sm:$0xf]
  %v4792 = vld [vmem:[%s6 + $0x10] sm:$0xf]
  %v4793 = vld [vmem:[%s6 + $0x14] sm:$0xf]
  %v4794 = vld [vmem:[%s6 + $0x18] sm:$0xf]
  %v4795 = vld [vmem:[%s6 + $0x1c] sm:$0xf]
  %v4796 = vld [vmem:[%s6 + $0x20] sm:$0xf]
  %v4797 = vld [vmem:[%s6 + $0x24] sm:$0xf]
  %v4798 = vld [vmem:[%s6 + $0x28] sm:$0xf]
  %v4799 = vld [vmem:[%s6 + $0x2c] sm:$0xf]
  %v4800 = vld [vmem:[%s6 + $0x30] sm:$0xf]
  %v4801 = vld [vmem:[%s6 + $0x34] sm:$0xf]
  %v4802 = vld [vmem:[%s6 + $0x38] sm:$0xf]
  %v4803 = vld [vmem:[%s6 + $0x3c] sm:$0xf]
  %v4804 = vld [vmem:[%s7] sm:$0x1]
  %v4806 = vlaneseq
  %v4807 = vshrl.u32 %v4806, 7
  %v4808 = vsub.s32 0, %v4807
  %v4809 = vrot.slane %v4804, %v4808
  %v4827 = vunpack.c.l.b16 %v4788
  %v4828 = vunpack.c.l.b16 %v4789
  %v4829 = vunpack.c.l.b16 %v4790
  %v4830 = vunpack.c.l.b16 %v4791
  %v4831 = vunpack.c.l.b16 %v4792
  %v4832 = vunpack.c.l.b16 %v4793
  %v4833 = vunpack.c.l.b16 %v4794
  %v4834 = vunpack.c.l.b16 %v4795
  %v4835 = vunpack.c.l.b16 %v4796
  %v4836 = vunpack.c.l.b16 %v4797
  %v4837 = vunpack.c.l.b16 %v4798
  %v4838 = vunpack.c.l.b16 %v4799
  %v4839 = vunpack.c.l.b16 %v4800
  %v4840 = vunpack.c.l.b16 %v4801
  %v4841 = vunpack.c.l.b16 %v4802
  %v4842 = vunpack.c.l.b16 %v4803
  %v4843 = vpack.c.b16 %v4828, %v4827
  %v4844 = vpack.c.b16 %v4830, %v4829
  %v4845 = vpack.c.b16 %v4832, %v4831
  %v4846 = vpack.c.b16 %v4834, %v4833
  %v4847 = vpack.c.b16 %v4836, %v4835
  %v4848 = vpack.c.b16 %v4838, %v4837
  %v4849 = vpack.c.b16 %v4840, %v4839
  %v4850 = vpack.c.b16 %v4842, %v4841
  %4859 = vmatprep.subr.bf16.mxu0 0
  %4860 = vmatpush1.bf16.msra.mxu0 %v4850
  %4861 = vmatprep.subr.bf16.mxu0 0
  %4862 = vmatpush1.bf16.msra.mxu0 %v4849
  %4863 = vmatprep.subr.bf16.mxu0 0
  %4864 = vmatpush1.bf16.msra.mxu0 %v4848
  %4865 = vmatprep.subr.bf16.mxu0 0
  %4866 = vmatpush1.bf16.msra.mxu0 %v4847
  %4867 = vmatprep.subr.bf16.mxu0 0
  %4868 = vmatpush1.bf16.msra.mxu0 %v4846
  %4869 = vmatprep.subr.bf16.mxu0 0
  %4870 = vmatpush1.bf16.msra.mxu0 %v4845
  %4871 = vmatprep.subr.bf16.mxu0 0
  %4872 = vmatpush1.bf16.msra.mxu0 %v4844
  %4873 = vmatprep.subr.bf16.mxu0 0
  %4874 = vmatpush1.bf16.msra.mxu0 %v4843
  %4875 = vmatprep.subr.bf16.mxu0 0
  %4876 = vmatpush2.bf16.msra.mxu0 0
  %4877 = vmatprep.subr.bf16.mxu0 0
  %4878 = vmatpush2.bf16.msra.mxu0 0
  %4879 = vmatprep.subr.bf16.mxu0 0
  %4880 = vmatpush2.bf16.msra.mxu0 0
  %4881 = vmatprep.subr.bf16.mxu0 0
  %4882 = vmatpush2.bf16.msra.mxu0 0
  %4883 = vmatprep.subr.bf16.mxu0 0
  %4884 = vmatpush2.bf16.msra.mxu0 0
  %4885 = vmatprep.subr.bf16.mxu0 0
  %4886 = vmatpush2.bf16.msra.mxu0 0
  %4887 = vmatprep.subr.bf16.mxu0 0
  %4888 = vmatpush2.bf16.msra.mxu0 0
  %4889 = vmatprep.subr.bf16.mxu0 0
  %4890 = vmatpush2.bf16.msra.mxu0 0
  %4891 = vmatprep.mubr.bf16.mxu0 0
  %4892 = vmatmul.mubr.bf16.gmra.mxu0 %v4780
  %v4893 = vpop.f32.mrf.mxu0
  %v4894 = vadd.f32 %v4809, %v4893
  %v4895 = vpop.f32.mrf.mxu0
  %v4896 = vpop.f32.mrf.mxu0
  %v4897 = vadd.f32 %v4809, %v4896
  %v4898 = vpop.f32.mrf.mxu0
  %4899 = vmatprep.mubr.bf16.mxu0 0
  %4900 = vmatmul.mubr.bf16.gmra.mxu0 %v4781
  %v4901 = vpop.f32.mrf.mxu0
  %v4902 = vadd.f32 %v4809, %v4901
  %v4903 = vpop.f32.mrf.mxu0
  %v4904 = vpop.f32.mrf.mxu0
  %v4905 = vadd.f32 %v4809, %v4904
  %v4906 = vpop.f32.mrf.mxu0
  %4907 = vmatprep.mubr.bf16.mxu0 0
  %4908 = vmatmul.mubr.bf16.gmra.mxu0 %v4782
  %v4909 = vpop.f32.mrf.mxu0
  %v4910 = vadd.f32 %v4809, %v4909
  %v4911 = vpop.f32.mrf.mxu0
  %v4912 = vpop.f32.mrf.mxu0
  %v4913 = vadd.f32 %v4809, %v4912
  %v4914 = vpop.f32.mrf.mxu0
  %4915 = vmatprep.mubr.bf16.mxu0 0
  %4916 = vmatmul.mubr.bf16.gmra.mxu0 %v4783
  %v4917 = vpop.f32.mrf.mxu0
  %v4918 = vadd.f32 %v4809, %v4917
  %v4919 = vpop.f32.mrf.mxu0
  %v4920 = vpop.f32.mrf.mxu0
  %v4921 = vadd.f32 %v4809, %v4920
  %v4922 = vpop.f32.mrf.mxu0
  %4923 = vmatprep.mubr.bf16.mxu0 0
  %4924 = vmatmul.mubr.bf16.gmra.mxu0 %v4784
  %v4925 = vpop.f32.mrf.mxu0
  %v4926 = vadd.f32 %v4809, %v4925
  %v4927 = vpop.f32.mrf.mxu0
  %v4928 = vpop.f32.mrf.mxu0
  %v4929 = vadd.f32 %v4809, %v4928
  %v4930 = vpop.f32.mrf.mxu0
  %4931 = vmatprep.mubr.bf16.mxu0 0
  %4932 = vmatmul.mubr.bf16.gmra.mxu0 %v4785
  %v4933 = vpop.f32.mrf.mxu0
  %v4934 = vadd.f32 %v4809, %v4933
  %v4935 = vpop.f32.mrf.mxu0
  %v4936 = vpop.f32.mrf.mxu0
  %v4937 = vadd.f32 %v4809, %v4936
  %v4938 = vpop.f32.mrf.mxu0
  %4939 = vmatprep.mubr.bf16.mxu0 0
  %4940 = vmatmul.mubr.bf16.gmra.mxu0 %v4786
  %v4941 = vpop.f32.mrf.mxu0
  %v4942 = vadd.f32 %v4809, %v4941
  %v4943 = vpop.f32.mrf.mxu0
  %v4944 = vpop.f32.mrf.mxu0
  %v4945 = vadd.f32 %v4809, %v4944
  %v4946 = vpop.f32.mrf.mxu0
  %4947 = vmatprep.mubr.bf16.mxu0 0
  %4948 = vmatmul.mubr.bf16.gmra.mxu0 %v4787
  %v4949 = vpop.f32.mrf.mxu0
  %v4950 = vadd.f32 %v4809, %v4949
  %v4951 = vpop.f32.mrf.mxu0
  %v4952 = vpop.f32.mrf.mxu0
  %v4953 = vadd.f32 %v4809, %v4952
  %v4954 = vpop.f32.mrf.mxu0
  %4955 = vdwg.mxu0
  %4956 = vst [vmem:[%s8] sm:$0xff] %v4894
  %4957 = vst [vmem:[%s8 + $0x8] sm:$0xff] %v4897
  %4958 = vst [vmem:[%s8 + $0x10] sm:$0xff] %v4902
  %4959 = vst [vmem:[%s8 + $0x18] sm:$0xff] %v4905
  %4960 = vst [vmem:[%s8 + $0x20] sm:$0xff] %v4910
  %4961 = vst [vmem:[%s8 + $0x28] sm:$0xff] %v4913
  %4962 = vst [vmem:[%s8 + $0x30] sm:$0xff] %v4918
  %4963 = vst [vmem:[%s8 + $0x38] sm:$0xff] %v4921
  %4964 = vst [vmem:[%s8 + $0x40] sm:$0xff] %v4926
  %4965 = vst [vmem:[%s8 + $0x48] sm:$0xff] %v4929
  %4966 = vst [vmem:[%s8 + $0x50] sm:$0xff] %v4934
  %4967 = vst [vmem:[%s8 + $0x58] sm:$0xff] %v4937
  %4968 = vst [vmem:[%s8 + $0x60] sm:$0xff] %v4942
  %4969 = vst [vmem:[%s8 + $0x68] sm:$0xff] %v4945
  %4970 = vst [vmem:[%s8 + $0x70] sm:$0xff] %v4950
  %4971 = vst [vmem:[%s8 + $0x78] sm:$0xff] %v4953
  // Predicated region
  $region34: #{gcn_forward.1} parent=0 // pred_check
    _
  $region35: #{gcn_forward.1} parent=0 // pred_check_branch
    %4973 = sbr.rel (0) target = $region37
  $region36: #{gcn_forward.1} parent=0 // pred_region
    _
  $region37: #{gcn_forward.1} parent=0 // pred_fallthru
    _
  // Predicated region
  $region38: #{gcn_forward.1} parent=0 // pred_check
    _
  $region39: #{gcn_forward.1} parent=0 // pred_check_branch
    %4975 = sbr.rel (0) target = $region41
  $region40: #{gcn_forward.1} parent=0 // pred_region
    _
  $region41: #{gcn_forward.1} parent=0 // pred_fallthru
    _

</llo_original>
